<compile_context>
chip_gen: v5e
topology: v5e:2x2
jax: 0.10.0
libtpu: 0.0.40
codegen_flags: <defaults>
</compile_context>

<pallas_src>
import functools

import jax
import jax.numpy as jnp
from jax.experimental import pallas as pl
from jax.experimental.pallas import tpu as pltpu


# ----------------------------------------------------------------------------
# Pallas kernels
# ----------------------------------------------------------------------------
def _matmul_bn_relu_kernel(x_ref, w_ref, scale_ref, shift_ref, o_ref):
    """o = relu((x @ w) * scale + shift); bf16 operands, fp32 epilogue."""
    acc = jnp.dot(x_ref[...], w_ref[...], preferred_element_type=jnp.float32)
    acc = acc * scale_ref[...] + shift_ref[...]
    o_ref[...] = jnp.maximum(acc, 0.0).astype(o_ref.dtype)


def _head_kernel(x_ref,
                 w3_ref, b3_ref, w4_ref, b4_ref, w5_ref, b5_ref,
                 wf1_ref, bf1_ref, wf2_ref, bf2_ref, wf3_ref, bf3_ref,
                 o_ref):
    """Fused classifier tail: conv3/4/5 (folded to 1x1 matmuls) + fc1/fc2/fc3.

    All six weight matrices stay resident in VMEM; intermediate activations
    never round-trip to HBM.  bf16 matmul operands, fp32 accumulate + epilogue.
    """
    def mm(h, w_ref, b_ref, relu):
        a = jnp.dot(h, w_ref[...], preferred_element_type=jnp.float32)
        a = a + b_ref[...]
        if relu:
            a = jnp.maximum(a, 0.0)
        return a

    h = x_ref[...]                                           # (M, 256) bf16
    h = mm(h, w3_ref, b3_ref, True).astype(jnp.bfloat16)     # conv3 (centre tap)
    h = mm(h, w4_ref, b4_ref, True).astype(jnp.bfloat16)     # conv4 (centre tap)
    h = mm(h, w5_ref, b5_ref, True).astype(jnp.bfloat16)     # conv5 (centre tap)
    # TODO(synk): Dropout is identity (eval mode); training-mode random masking not implemented.
    h = mm(h, wf1_ref, bf1_ref, True).astype(jnp.bfloat16)   # fc1
    h = mm(h, wf2_ref, bf2_ref, True).astype(jnp.bfloat16)   # fc2
    o_ref[...] = mm(h, wf3_ref, bf3_ref, False)              # fc3 (lane-padded to 128)


# ----------------------------------------------------------------------------
# Pallas wrappers
# ----------------------------------------------------------------------------
def _fs(shape):
    """Full-array block spec (grid of size 1)."""
    return pl.BlockSpec(shape, lambda i, _n=len(shape): (0,) * _n)


def fused_matmul_bn_relu(x, w, scale, shift, *, tm=512):
    """relu((x @ w) * scale + shift).

    x: (M, K) bf16, w: (K, N) bf16, scale/shift: (1, N) f32 -> (M, N) bf16.
    No host-side padding: full-array blocks, Mosaic pads internally.
    M is only tiled (and marked "parallel" for megacore) when it grows large.
    """
    M, K = x.shape
    Kw, N = w.shape
    assert K == Kw
    if M > tm:
        bm, grid, sem = tm, (pl.cdiv(M, tm),), ("parallel",)
    else:
        bm, grid, sem = M, (1,), ("arbitrary",)
    cost = pl.CostEstimate(
        flops=2 * M * K * N + 3 * M * N,
        transcendentals=0,
        bytes_accessed=2 * (M * K + K * N + M * N) + 8 * N,
    )
    return pl.pallas_call(
        _matmul_bn_relu_kernel,
        out_shape=jax.ShapeDtypeStruct((M, N), jnp.bfloat16),
        grid=grid,
        in_specs=[
            pl.BlockSpec((bm, K), lambda i: (i, 0)),
            pl.BlockSpec((K, N), lambda i: (0, 0)),
            pl.BlockSpec((1, N), lambda i: (0, 0)),
            pl.BlockSpec((1, N), lambda i: (0, 0)),
        ],
        out_specs=pl.BlockSpec((bm, N), lambda i: (i, 0)),
        compiler_params=pltpu.CompilerParams(dimension_semantics=sem),
        cost_estimate=cost,
    )(x, w, scale, shift)


def fused_head(x, prep):
    """x: (M, 256) bf16 -> (M, 128) f32 lane-padded logits (single kernel)."""
    M = x.shape[0]
    NP = prep["wf3"].shape[1]
    ws = [prep["w3"], prep["b3"], prep["w4"], prep["b4"], prep["w5"], prep["b5"],
          prep["wf1"], prep["bf1"], prep["wf2"], prep["bf2"], prep["wf3"], prep["bf3"]]
    flops = 2 * M * (256 * 384 + 384 * 384 + 384 * 256
                     + 256 * 256 + 256 * 256 + 256 * NP)
    wbytes = sum(int(a.size) * int(a.dtype.itemsize) for a in ws)
    cost = pl.CostEstimate(flops=flops, transcendentals=0,
                           bytes_accessed=wbytes + 2 * M * 256 + 4 * M * NP)
    return pl.pallas_call(
        _head_kernel,
        out_shape=jax.ShapeDtypeStruct((M, NP), jnp.float32),
        grid=(1,),
        in_specs=[_fs(x.shape)] + [_fs(a.shape) for a in ws],
        out_specs=_fs((M, NP)),
        compiler_params=pltpu.CompilerParams(dimension_semantics=("arbitrary",)),
        cost_estimate=cost,
    )(x, *ws)


# ----------------------------------------------------------------------------
# Host-side glue (pure JAX; XLA fuses the slicing)
# ----------------------------------------------------------------------------
def _im2col(x, kh, kw, stride, pad):
    """x: (N, H, W, C) NHWC -> (N*OH*OW, kh*kw*C) patches, column order (kh, kw, C).

    # TODO(synk): gathering the taps with pl.ds inside the matmul kernel would
    # avoid materializing the (bf16) patch matrix in HBM; kept as XLA glue here.
    """
    N, H, W, C = x.shape
    if pad > 0:
        x = jnp.pad(x, ((0, 0), (pad, pad), (pad, pad), (0, 0)))
    Hp, Wp = H + 2 * pad, W + 2 * pad
    OH = (Hp - kh) // stride + 1
    OW = (Wp - kw) // stride + 1
    cols = []
    for di in range(kh):
        for dj in range(kw):
            sl = jax.lax.slice(
                x,
                (0, di, dj, 0),
                (N, di + stride * (OH - 1) + 1, dj + stride * (OW - 1) + 1, C),
                (1, stride, stride, 1),
            )  # (N, OH, OW, C)
            cols.append(sl)
    patches = jnp.stack(cols, axis=3)  # (N, OH, OW, kh*kw, C)
    return patches.reshape(N * OH * OW, kh * kw * C), OH, OW


def maxpool_3x3_s2(x):
    """MaxPool2d(3, stride=2) on NHWC as a 9-way jnp.maximum (no HBM stack)."""
    N, H, W, C = x.shape
    OH = (H - 3) // 2 + 1
    OW = (W - 3) // 2 + 1
    out = None
    for di in range(3):
        for dj in range(3):
            sl = jax.lax.slice(
                x,
                (0, di, dj, 0),
                (N, di + 2 * (OH - 1) + 1, dj + 2 * (OW - 1) + 1, C),
                (1, 2, 2, 1),
            )  # (N, OH, OW, C)
            out = sl if out is None else jnp.maximum(out, sl)
    return out


def _bn_fold(gamma, beta, mean, var, eps=1e-5):
    scale = gamma / jnp.sqrt(var + eps)
    shift = beta - mean * scale
    return scale, shift


# ----------------------------------------------------------------------------
# Parameters
# ----------------------------------------------------------------------------
def init_params(key, num_classes=10):
    """Raw parameters in PyTorch layouts (same shapes as the nn.Module)."""
    ks = jax.random.split(key, 24)

    def nrm(k, shape, std=0.05):
        return jax.random.normal(k, shape, jnp.float32) * std

    def bn(k, c):
        k1, k2, k3, k4 = jax.random.split(k, 4)
        return dict(
            gamma=1.0 + nrm(k1, (c,), 0.02),
            beta=nrm(k2, (c,), 0.02),
            mean=nrm(k3, (c,), 0.02),
            var=1.0 + jnp.abs(nrm(k4, (c,), 0.1)),
        )

    p = {}
    p["conv1_w"] = nrm(ks[0], (96, 3, 11, 11))
    p["bn1"] = bn(ks[1], 96)
    p["conv2_w"] = nrm(ks[2], (256, 96, 5, 5), 0.02)
    p["bn2"] = bn(ks[3], 256)
    p["conv3_w"] = nrm(ks[4], (384, 256, 3, 3), 0.02)
    p["conv3_b"] = nrm(ks[5], (384,), 0.02)
    p["conv4_w"] = nrm(ks[6], (384, 384, 3, 3), 0.02)
    p["conv4_b"] = nrm(ks[7], (384,), 0.02)
    p["conv5_w"] = nrm(ks[8], (256, 384, 3, 3), 0.02)
    p["conv5_b"] = nrm(ks[9], (256,), 0.02)
    p["fc1_w"] = nrm(ks[10], (256, 256), 0.05)
    p["fc1_b"] = nrm(ks[11], (256,), 0.02)
    p["fc2_w"] = nrm(ks[12], (256, 256), 0.05)
    p["fc2_b"] = nrm(ks[13], (256,), 0.02)
    p["fc3_w"] = nrm(ks[14], (num_classes, 256), 0.05)
    p["fc3_b"] = nrm(ks[15], (num_classes,), 0.02)
    return p


def prepare_params(p):
    """One-time packing into kernel-ready layouts (done once, outside the forward):
    fold BN, build (KH*KW*IC, OC) conv matrices, transpose FC weights, pad output
    channels to 128 lanes (lane-dense stores), cast matmul operands to bf16."""
    def pad_cols(a, n):
        return jnp.zeros((a.shape[0], n), a.dtype).at[:, :a.shape[1]].set(a)

    def row_vec(v, n=None):
        n = v.shape[0] if n is None else n
        return jnp.zeros((1, n), jnp.float32).at[0, :v.shape[0]].set(v.astype(jnp.float32))

    out = {}

    # conv1: (96,3,11,11) -> (11*11*3, 128) bf16, OC padded 96->128 (lane-dense);
    # padded lanes get scale=shift=0 so they stay exactly zero downstream.
    w1 = jnp.transpose(p["conv1_w"], (2, 3, 1, 0)).reshape(11 * 11 * 3, 96)
    out["w1"] = pad_cols(w1, 128).astype(jnp.bfloat16)
    s1, b1 = _bn_fold(**p["bn1"])
    out["s1"], out["b1"] = row_vec(s1, 128), row_vec(b1, 128)

    # conv2: (256,96,5,5) -> (5*5*128, 256) bf16; IC padded 96->128 with zero
    # rows so it consumes the lane-padded conv1/pool1 activation directly.
    w2 = jnp.transpose(p["conv2_w"], (2, 3, 1, 0))              # (5,5,96,256)
    w2 = jnp.pad(w2, ((0, 0), (0, 0), (0, 128 - 96), (0, 0)))   # (5,5,128,256)
    out["w2"] = w2.reshape(5 * 5 * 128, 256).astype(jnp.bfloat16)
    s2, b2 = _bn_fold(**p["bn2"])
    out["s2"], out["b2"] = row_vec(s2), row_vec(b2)

    # conv3/4/5 act on 1x1 spatial input with pad=1: only the centre tap
    # w[:, :, 1, 1] ever multiplies non-zero data -> plain matmuls.
    out["w3"] = p["conv3_w"][:, :, 1, 1].T.astype(jnp.bfloat16)   # (256, 384)
    out["b3"] = row_vec(p["conv3_b"])
    out["w4"] = p["conv4_w"][:, :, 1, 1].T.astype(jnp.bfloat16)   # (384, 384)
    out["b4"] = row_vec(p["conv4_b"])
    out["w5"] = p["conv5_w"][:, :, 1, 1].T.astype(jnp.bfloat16)   # (384, 256)
    out["b5"] = row_vec(p["conv5_b"])

    # FC layers: pre-transposed; final layer lane-padded num_classes -> 128.
    nc = p["fc3_w"].shape[0]
    npad = -(-nc // 128) * 128
    out["wf1"] = p["fc1_w"].T.astype(jnp.bfloat16)
    out["bf1"] = row_vec(p["fc1_b"])
    out["wf2"] = p["fc2_w"].T.astype(jnp.bfloat16)
    out["bf2"] = row_vec(p["fc2_b"])
    out["wf3"] = pad_cols(p["fc3_w"].T.astype(jnp.float32), npad).astype(jnp.bfloat16)
    out["bf3"] = row_vec(p["fc3_b"], npad)
    return out


# ----------------------------------------------------------------------------
# Forward pass (eval-mode semantics: BN uses running stats, Dropout = identity)
# ----------------------------------------------------------------------------
def alexnet_forward(x_nchw, prep, *, num_classes=10):
    N = x_nchw.shape[0]
    # NCHW -> NHWC (channels on the 128-lane axis); bf16 matmul operands.
    x = jnp.transpose(x_nchw, (0, 2, 3, 1)).astype(jnp.bfloat16)

    # conv1 (11x11 / s4 / p2) + BN1 + ReLU -> (N, 7, 7, 128)  [96 real + 32 zero lanes]
    patches, OH, OW = _im2col(x, 11, 11, 4, 2)
    x = fused_matmul_bn_relu(patches, prep["w1"], prep["s1"], prep["b1"])
    x = x.reshape(N, OH, OW, 128)
    x = maxpool_3x3_s2(x)                                    # (N, 3, 3, 128)

    # conv2 (5x5 / s1 / p2) + BN2 + ReLU -> (N, 3, 3, 256)
    patches, OH, OW = _im2col(x, 5, 5, 1, 2)
    x = fused_matmul_bn_relu(patches, prep["w2"], prep["s2"], prep["b2"])
    x = x.reshape(N, OH, OW, 256)
    x = maxpool_3x3_s2(x)                                    # (N, 1, 1, 256)

    # view(N, 256) + fused classifier tail (conv3/4/5 as 1x1 matmuls + fc1-3).
    feats = x.reshape(N, 256)
    logits = fused_head(feats, prep)                         # (N, 128) f32
    return logits[:, :num_classes]


if __name__ == "__main__":
    key = jax.random.PRNGKey(0)
    kx, kp = jax.random.split(key)
    num_classes = 10
    raw = init_params(kp, num_classes=num_classes)
    prep = prepare_params(raw)   # one-time weight packing (hoisted out of the forward)
    # 32x32 input is the size the module's view(N, 256) implies (1x1 final spatial).
    x = jax.random.normal(kx, (2, 3, 32, 32), jnp.float32)

    fwd = jax.jit(functools.partial(alexnet_forward, num_classes=num_classes))
    out = fwd(x, prep)
    out = jax.block_until_ready(out)

    assert out.shape == (2, num_classes)
    assert bool(jnp.all(jnp.isfinite(out)))
    print("KERNEL_OK")
</pallas_src>

<mosaic_0001>
module attributes {stable_mosaic.version = 11 : i64} {
  func.func @_matmul_bn_relu_kernel(%arg0: i32, %arg1: memref<98x363xbf16, #tpu.memory_space<vmem>>, %arg2: memref<363x128xbf16, #tpu.memory_space<vmem>>, %arg3: memref<1x128xf32, #tpu.memory_space<vmem>>, %arg4: memref<1x128xf32, #tpu.memory_space<vmem>>, %arg5: memref<98x128xbf16, #tpu.memory_space<vmem>>) attributes {dimension_semantics = [#tpu.dimension_semantics<arbitrary>], iteration_bounds = array<i64: 1>, scalar_prefetch = 0 : i64, scratch_operands = 0 : i64, tpu.core_type = #tpu.core_type<tc>, window_params = [{transform_indices = @transform_0, window_bounds = array<i64: 98, 363>}, {pipeline_mode = #tpu.pipeline_mode<synchronous>, transform_indices = @transform_1, window_bounds = array<i64: 363, 128>}, {pipeline_mode = #tpu.pipeline_mode<synchronous>, transform_indices = @transform_2, window_bounds = array<i64: 1, 128>}, {pipeline_mode = #tpu.pipeline_mode<synchronous>, transform_indices = @transform_3, window_bounds = array<i64: 1, 128>}, {transform_indices = @transform_4, window_bounds = array<i64: 98, 128>}]} {
    %c0 = arith.constant 0 : index
    %c0_0 = arith.constant 0 : index
    %0 = vector.load %arg1[%c0, %c0_0] : memref<98x363xbf16, #tpu.memory_space<vmem>>, vector<98x363xbf16>
    %c0_1 = arith.constant 0 : index
    %c0_2 = arith.constant 0 : index
    %1 = vector.load %arg2[%c0_1, %c0_2] : memref<363x128xbf16, #tpu.memory_space<vmem>>, vector<363x128xbf16>
    %cst = arith.constant dense<0.000000e+00> : vector<98x128xf32>
    %2 = tpu.matmul %0, %1, %cst {dimension_numbers = #tpu.dot_dimension_numbers<[1], [0], [0], [1], [0, 0, 1, 1], [], []>} : vector<98x363xbf16>, vector<363x128xbf16>, vector<98x128xf32> -> vector<98x128xf32>
    %c0_3 = arith.constant 0 : index
    %c0_4 = arith.constant 0 : index
    %3 = vector.load %arg3[%c0_3, %c0_4] : memref<1x128xf32, #tpu.memory_space<vmem>>, vector<1x128xf32>
    %4 = vector.broadcast %3 : vector<1x128xf32> to vector<98x128xf32>
    %5 = arith.mulf %2, %4 : vector<98x128xf32>
    %c0_5 = arith.constant 0 : index
    %c0_6 = arith.constant 0 : index
    %6 = vector.load %arg4[%c0_5, %c0_6] : memref<1x128xf32, #tpu.memory_space<vmem>>, vector<1x128xf32>
    %7 = vector.broadcast %6 : vector<1x128xf32> to vector<98x128xf32>
    %8 = arith.addf %5, %7 : vector<98x128xf32>
    %cst_7 = arith.constant 0.000000e+00 : f32
    %9 = vector.broadcast %cst_7 : f32 to vector<98x128xf32>
    %10 = arith.maximumf %8, %9 : vector<98x128xf32>
    %11 = arith.truncf %10 : vector<98x128xf32> to vector<98x128xbf16>
    %c0_8 = arith.constant 0 : index
    %c0_9 = arith.constant 0 : index
    %12 = vector.load %arg5[%c0_8, %c0_9] : memref<98x128xbf16, #tpu.memory_space<vmem>>, vector<98x128xbf16>
    tpu.vector_store %arg5[%c0_8, %c0_9], %11 {strides = array<i32>} : memref<98x128xbf16, #tpu.memory_space<vmem>>, vector<98x128xbf16>,
    return
  }
  func.func @transform_0(%arg0: i32) -> (i32, i32) {
    %c0_i32 = arith.constant 0 : i32
    %c0_i32_0 = arith.constant 0 : i32
    return %arg0, %c0_i32 : i32, i32
  }
  func.func @transform_1(%arg0: i32) -> (i32, i32) {
    %c0_i32 = arith.constant 0 : i32
    %c0_i32_0 = arith.constant 0 : i32
    %c0_i32_1 = arith.constant 0 : i32
    return %c0_i32, %c0_i32_0 : i32, i32
  }
  func.func @transform_2(%arg0: i32) -> (i32, i32) {
    %c0_i32 = arith.constant 0 : i32
    %c0_i32_0 = arith.constant 0 : i32
    %c0_i32_1 = arith.constant 0 : i32
    return %c0_i32, %c0_i32_0 : i32, i32
  }
  func.func @transform_3(%arg0: i32) -> (i32, i32) {
    %c0_i32 = arith.constant 0 : i32
    %c0_i32_0 = arith.constant 0 : i32
    %c0_i32_1 = arith.constant 0 : i32
    return %c0_i32, %c0_i32_0 : i32, i32
  }
  func.func @transform_4(%arg0: i32) -> (i32, i32) {
    %c0_i32 = arith.constant 0 : i32
    %c0_i32_0 = arith.constant 0 : i32
    return %arg0, %c0_i32 : i32, i32
  }
}

module attributes {stable_mosaic.version = 11 : i64} {
  func.func @_matmul_bn_relu_kernel(%arg0: i32, %arg1: memref<18x3200xbf16, #tpu.memory_space<vmem>>, %arg2: memref<3200x256xbf16, #tpu.memory_space<vmem>>, %arg3: memref<1x256xf32, #tpu.memory_space<vmem>>, %arg4: memref<1x256xf32, #tpu.memory_space<vmem>>, %arg5: memref<18x256xbf16, #tpu.memory_space<vmem>>) attributes {dimension_semantics = [#tpu.dimension_semantics<arbitrary>], iteration_bounds = array<i64: 1>, scalar_prefetch = 0 : i64, scratch_operands = 0 : i64, tpu.core_type = #tpu.core_type<tc>, window_params = [{transform_indices = @transform_0, window_bounds = array<i64: 18, 3200>}, {pipeline_mode = #tpu.pipeline_mode<synchronous>, transform_indices = @transform_1, window_bounds = array<i64: 3200, 256>}, {pipeline_mode = #tpu.pipeline_mode<synchronous>, transform_indices = @transform_2, window_bounds = array<i64: 1, 256>}, {pipeline_mode = #tpu.pipeline_mode<synchronous>, transform_indices = @transform_3, window_bounds = array<i64: 1, 256>}, {transform_indices = @transform_4, window_bounds = array<i64: 18, 256>}]} {
    %c0 = arith.constant 0 : index
    %c0_0 = arith.constant 0 : index
    %0 = vector.load %arg1[%c0, %c0_0] : memref<18x3200xbf16, #tpu.memory_space<vmem>>, vector<18x3200xbf16>
    %c0_1 = arith.constant 0 : index
    %c0_2 = arith.constant 0 : index
    %1 = vector.load %arg2[%c0_1, %c0_2] : memref<3200x256xbf16, #tpu.memory_space<vmem>>, vector<3200x256xbf16>
    %cst = arith.constant dense<0.000000e+00> : vector<18x256xf32>
    %2 = tpu.matmul %0, %1, %cst {dimension_numbers = #tpu.dot_dimension_numbers<[1], [0], [0], [1], [0, 0, 1, 1], [], []>} : vector<18x3200xbf16>, vector<3200x256xbf16>, vector<18x256xf32> -> vector<18x256xf32>
    %c0_3 = arith.constant 0 : index
    %c0_4 = arith.constant 0 : index
    %3 = vector.load %arg3[%c0_3, %c0_4] : memref<1x256xf32, #tpu.memory_space<vmem>>, vector<1x256xf32>
    %4 = vector.broadcast %3 : vector<1x256xf32> to vector<18x256xf32>
    %5 = arith.mulf %2, %4 : vector<18x256xf32>
    %c0_5 = arith.constant 0 : index
    %c0_6 = arith.constant 0 : index
    %6 = vector.load %arg4[%c0_5, %c0_6] : memref<1x256xf32, #tpu.memory_space<vmem>>, vector<1x256xf32>
    %7 = vector.broadcast %6 : vector<1x256xf32> to vector<18x256xf32>
    %8 = arith.addf %5, %7 : vector<18x256xf32>
    %cst_7 = arith.constant 0.000000e+00 : f32
    %9 = vector.broadcast %cst_7 : f32 to vector<18x256xf32>
    %10 = arith.maximumf %8, %9 : vector<18x256xf32>
    %11 = arith.truncf %10 : vector<18x256xf32> to vector<18x256xbf16>
    %c0_8 = arith.constant 0 : index
    %c0_9 = arith.constant 0 : index
    %12 = vector.load %arg5[%c0_8, %c0_9] : memref<18x256xbf16, #tpu.memory_space<vmem>>, vector<18x256xbf16>
    tpu.vector_store %arg5[%c0_8, %c0_9], %11 {strides = array<i32>} : memref<18x256xbf16, #tpu.memory_space<vmem>>, vector<18x256xbf16>,
    return
  }
  func.func @transform_0(%arg0: i32) -> (i32, i32) {
    %c0_i32 = arith.constant 0 : i32
    %c0_i32_0 = arith.constant 0 : i32
    return %arg0, %c0_i32 : i32, i32
  }
  func.func @transform_1(%arg0: i32) -> (i32, i32) {
    %c0_i32 = arith.constant 0 : i32
    %c0_i32_0 = arith.constant 0 : i32
    %c0_i32_1 = arith.constant 0 : i32
    return %c0_i32, %c0_i32_0 : i32, i32
  }
  func.func @transform_2(%arg0: i32) -> (i32, i32) {
    %c0_i32 = arith.constant 0 : i32
    %c0_i32_0 = arith.constant 0 : i32
    %c0_i32_1 = arith.constant 0 : i32
    return %c0_i32, %c0_i32_0 : i32, i32
  }
  func.func @transform_3(%arg0: i32) -> (i32, i32) {
    %c0_i32 = arith.constant 0 : i32
    %c0_i32_0 = arith.constant 0 : i32
    %c0_i32_1 = arith.constant 0 : i32
    return %c0_i32, %c0_i32_0 : i32, i32
  }
  func.func @transform_4(%arg0: i32) -> (i32, i32) {
    %c0_i32 = arith.constant 0 : i32
    %c0_i32_0 = arith.constant 0 : i32
    return %arg0, %c0_i32 : i32, i32
  }
}

module attributes {stable_mosaic.version = 11 : i64} {
  func.func @_head_kernel(%arg0: i32, %arg1: memref<2x256xbf16, #tpu.memory_space<vmem>>, %arg2: memref<256x384xbf16, #tpu.memory_space<vmem>>, %arg3: memref<1x384xf32, #tpu.memory_space<vmem>>, %arg4: memref<384x384xbf16, #tpu.memory_space<vmem>>, %arg5: memref<1x384xf32, #tpu.memory_space<vmem>>, %arg6: memref<384x256xbf16, #tpu.memory_space<vmem>>, %arg7: memref<1x256xf32, #tpu.memory_space<vmem>>, %arg8: memref<256x256xbf16, #tpu.memory_space<vmem>>, %arg9: memref<1x256xf32, #tpu.memory_space<vmem>>, %arg10: memref<256x256xbf16, #tpu.memory_space<vmem>>, %arg11: memref<1x256xf32, #tpu.memory_space<vmem>>, %arg12: memref<256x128xbf16, #tpu.memory_space<vmem>>, %arg13: memref<1x128xf32, #tpu.memory_space<vmem>>, %arg14: memref<2x128xf32, #tpu.memory_space<vmem>>) attributes {dimension_semantics = [#tpu.dimension_semantics<arbitrary>], iteration_bounds = array<i64: 1>, scalar_prefetch = 0 : i64, scratch_operands = 0 : i64, tpu.core_type = #tpu.core_type<tc>, window_params = [{pipeline_mode = #tpu.pipeline_mode<synchronous>, transform_indices = @transform_0, window_bounds = array<i64: 2, 256>}, {pipeline_mode = #tpu.pipeline_mode<synchronous>, transform_indices = @transform_1, window_bounds = array<i64: 256, 384>}, {pipeline_mode = #tpu.pipeline_mode<synchronous>, transform_indices = @transform_2, window_bounds = array<i64: 1, 384>}, {pipeline_mode = #tpu.pipeline_mode<synchronous>, transform_indices = @transform_3, window_bounds = array<i64: 384, 384>}, {pipeline_mode = #tpu.pipeline_mode<synchronous>, transform_indices = @transform_4, window_bounds = array<i64: 1, 384>}, {pipeline_mode = #tpu.pipeline_mode<synchronous>, transform_indices = @transform_5, window_bounds = array<i64: 384, 256>}, {pipeline_mode = #tpu.pipeline_mode<synchronous>, transform_indices = @transform_6, window_bounds = array<i64: 1, 256>}, {pipeline_mode = #tpu.pipeline_mode<synchronous>, transform_indices = @transform_7, window_bounds = array<i64: 256, 256>}, {pipeline_mode = #tpu.pipeline_mode<synchronous>, transform_indices = @transform_8, window_bounds = array<i64: 1, 256>}, {pipeline_mode = #tpu.pipeline_mode<synchronous>, transform_indices = @transform_9, window_bounds = array<i64: 256, 256>}, {pipeline_mode = #tpu.pipeline_mode<synchronous>, transform_indices = @transform_10, window_bounds = array<i64: 1, 256>}, {pipeline_mode = #tpu.pipeline_mode<synchronous>, transform_indices = @transform_11, window_bounds = array<i64: 256, 128>}, {pipeline_mode = #tpu.pipeline_mode<synchronous>, transform_indices = @transform_12, window_bounds = array<i64: 1, 128>}, {pipeline_mode = #tpu.pipeline_mode<synchronous>, transform_indices = @transform_13, window_bounds = array<i64: 2, 128>}]} {
    %c0 = arith.constant 0 : index
    %c0_0 = arith.constant 0 : index
    %0 = vector.load %arg1[%c0, %c0_0] : memref<2x256xbf16, #tpu.memory_space<vmem>>, vector<2x256xbf16>
    %c0_1 = arith.constant 0 : index
    %c0_2 = arith.constant 0 : index
    %1 = vector.load %arg2[%c0_1, %c0_2] : memref<256x384xbf16, #tpu.memory_space<vmem>>, vector<256x384xbf16>
    %cst = arith.constant dense<0.000000e+00> : vector<2x384xf32>
    %2 = tpu.matmul %0, %1, %cst {dimension_numbers = #tpu.dot_dimension_numbers<[1], [0], [0], [1], [0, 0, 1, 1], [], []>} : vector<2x256xbf16>, vector<256x384xbf16>, vector<2x384xf32> -> vector<2x384xf32>
    %c0_3 = arith.constant 0 : index
    %c0_4 = arith.constant 0 : index
    %3 = vector.load %arg3[%c0_3, %c0_4] : memref<1x384xf32, #tpu.memory_space<vmem>>, vector<1x384xf32>
    %4 = vector.broadcast %3 : vector<1x384xf32> to vector<2x384xf32>
    %5 = arith.addf %2, %4 : vector<2x384xf32>
    %cst_5 = arith.constant 0.000000e+00 : f32
    %6 = vector.broadcast %cst_5 : f32 to vector<2x384xf32>
    %7 = arith.maximumf %5, %6 : vector<2x384xf32>
    %8 = arith.truncf %7 : vector<2x384xf32> to vector<2x384xbf16>
    %c0_6 = arith.constant 0 : index
    %c0_7 = arith.constant 0 : index
    %9 = vector.load %arg4[%c0_6, %c0_7] : memref<384x384xbf16, #tpu.memory_space<vmem>>, vector<384x384xbf16>
    %cst_8 = arith.constant dense<0.000000e+00> : vector<2x384xf32>
    %10 = tpu.matmul %8, %9, %cst_8 {dimension_numbers = #tpu.dot_dimension_numbers<[1], [0], [0], [1], [0, 0, 1, 1], [], []>} : vector<2x384xbf16>, vector<384x384xbf16>, vector<2x384xf32> -> vector<2x384xf32>
    %c0_9 = arith.constant 0 : index
    %c0_10 = arith.constant 0 : index
    %11 = vector.load %arg5[%c0_9, %c0_10] : memref<1x384xf32, #tpu.memory_space<vmem>>, vector<1x384xf32>
    %12 = vector.broadcast %11 : vector<1x384xf32> to vector<2x384xf32>
    %13 = arith.addf %10, %12 : vector<2x384xf32>
    %cst_11 = arith.constant 0.000000e+00 : f32
    %14 = vector.broadcast %cst_11 : f32 to vector<2x384xf32>
    %15 = arith.maximumf %13, %14 : vector<2x384xf32>
    %16 = arith.truncf %15 : vector<2x384xf32> to vector<2x384xbf16>
    %c0_12 = arith.constant 0 : index
    %c0_13 = arith.constant 0 : index
    %17 = vector.load %arg6[%c0_12, %c0_13] : memref<384x256xbf16, #tpu.memory_space<vmem>>, vector<384x256xbf16>
    %cst_14 = arith.constant dense<0.000000e+00> : vector<2x256xf32>
    %18 = tpu.matmul %16, %17, %cst_14 {dimension_numbers = #tpu.dot_dimension_numbers<[1], [0], [0], [1], [0, 0, 1, 1], [], []>} : vector<2x384xbf16>, vector<384x256xbf16>, vector<2x256xf32> -> vector<2x256xf32>
    %c0_15 = arith.constant 0 : index
    %c0_16 = arith.constant 0 : index
    %19 = vector.load %arg7[%c0_15, %c0_16] : memref<1x256xf32, #tpu.memory_space<vmem>>, vector<1x256xf32>
    %20 = vector.broadcast %19 : vector<1x256xf32> to vector<2x256xf32>
    %21 = arith.addf %18, %20 : vector<2x256xf32>
    %cst_17 = arith.constant 0.000000e+00 : f32
    %22 = vector.broadcast %cst_17 : f32 to vector<2x256xf32>
    %23 = arith.maximumf %21, %22 : vector<2x256xf32>
    %24 = arith.truncf %23 : vector<2x256xf32> to vector<2x256xbf16>
    %c0_18 = arith.constant 0 : index
    %c0_19 = arith.constant 0 : index
    %25 = vector.load %arg8[%c0_18, %c0_19] : memref<256x256xbf16, #tpu.memory_space<vmem>>, vector<256x256xbf16>
    %cst_20 = arith.constant dense<0.000000e+00> : vector<2x256xf32>
    %26 = tpu.matmul %24, %25, %cst_20 {dimension_numbers = #tpu.dot_dimension_numbers<[1], [0], [0], [1], [0, 0, 1, 1], [], []>} : vector<2x256xbf16>, vector<256x256xbf16>, vector<2x256xf32> -> vector<2x256xf32>
    %c0_21 = arith.constant 0 : index
    %c0_22 = arith.constant 0 : index
    %27 = vector.load %arg9[%c0_21, %c0_22] : memref<1x256xf32, #tpu.memory_space<vmem>>, vector<1x256xf32>
    %28 = vector.broadcast %27 : vector<1x256xf32> to vector<2x256xf32>
    %29 = arith.addf %26, %28 : vector<2x256xf32>
    %cst_23 = arith.constant 0.000000e+00 : f32
    %30 = vector.broadcast %cst_23 : f32 to vector<2x256xf32>
    %31 = arith.maximumf %29, %30 : vector<2x256xf32>
    %32 = arith.truncf %31 : vector<2x256xf32> to vector<2x256xbf16>
    %c0_24 = arith.constant 0 : index
    %c0_25 = arith.constant 0 : index
    %33 = vector.load %arg10[%c0_24, %c0_25] : memref<256x256xbf16, #tpu.memory_space<vmem>>, vector<256x256xbf16>
    %cst_26 = arith.constant dense<0.000000e+00> : vector<2x256xf32>
    %34 = tpu.matmul %32, %33, %cst_26 {dimension_numbers = #tpu.dot_dimension_numbers<[1], [0], [0], [1], [0, 0, 1, 1], [], []>} : vector<2x256xbf16>, vector<256x256xbf16>, vector<2x256xf32> -> vector<2x256xf32>
    %c0_27 = arith.constant 0 : index
    %c0_28 = arith.constant 0 : index
    %35 = vector.load %arg11[%c0_27, %c0_28] : memref<1x256xf32, #tpu.memory_space<vmem>>, vector<1x256xf32>
    %36 = vector.broadcast %35 : vector<1x256xf32> to vector<2x256xf32>
    %37 = arith.addf %34, %36 : vector<2x256xf32>
    %cst_29 = arith.constant 0.000000e+00 : f32
    %38 = vector.broadcast %cst_29 : f32 to vector<2x256xf32>
    %39 = arith.maximumf %37, %38 : vector<2x256xf32>
    %40 = arith.truncf %39 : vector<2x256xf32> to vector<2x256xbf16>
    %c0_30 = arith.constant 0 : index
    %c0_31 = arith.constant 0 : index
    %41 = vector.load %arg12[%c0_30, %c0_31] : memref<256x128xbf16, #tpu.memory_space<vmem>>, vector<256x128xbf16>
    %cst_32 = arith.constant dense<0.000000e+00> : vector<2x128xf32>
    %42 = tpu.matmul %40, %41, %cst_32 {dimension_numbers = #tpu.dot_dimension_numbers<[1], [0], [0], [1], [0, 0, 1, 1], [], []>} : vector<2x256xbf16>, vector<256x128xbf16>, vector<2x128xf32> -> vector<2x128xf32>
    %c0_33 = arith.constant 0 : index
    %c0_34 = arith.constant 0 : index
    %43 = vector.load %arg13[%c0_33, %c0_34] : memref<1x128xf32, #tpu.memory_space<vmem>>, vector<1x128xf32>
    %44 = vector.broadcast %43 : vector<1x128xf32> to vector<2x128xf32>
    %45 = arith.addf %42, %44 : vector<2x128xf32>
    %c0_35 = arith.constant 0 : index
    %c0_36 = arith.constant 0 : index
    %46 = vector.load %arg14[%c0_35, %c0_36] : memref<2x128xf32, #tpu.memory_space<vmem>>, vector<2x128xf32>
    tpu.vector_store %arg14[%c0_35, %c0_36], %45 {strides = array<i32>} : memref<2x128xf32, #tpu.memory_space<vmem>>, vector<2x128xf32>,
    return
  }
  func.func @transform_0(%arg0: i32) -> (i32, i32) {
    %c0_i32 = arith.constant 0 : i32
    %c0_i32_0 = arith.constant 0 : i32
    %c0_i32_1 = arith.constant 0 : i32
    return %c0_i32, %c0_i32_0 : i32, i32
  }
  func.func @transform_1(%arg0: i32) -> (i32, i32) {
    %c0_i32 = arith.constant 0 : i32
    %c0_i32_0 = arith.constant 0 : i32
    %c0_i32_1 = arith.constant 0 : i32
    return %c0_i32, %c0_i32_0 : i32, i32
  }
  func.func @transform_2(%arg0: i32) -> (i32, i32) {
    %c0_i32 = arith.constant 0 : i32
    %c0_i32_0 = arith.constant 0 : i32
    %c0_i32_1 = arith.constant 0 : i32
    return %c0_i32, %c0_i32_0 : i32, i32
  }
  func.func @transform_3(%arg0: i32) -> (i32, i32) {
    %c0_i32 = arith.constant 0 : i32
    %c0_i32_0 = arith.constant 0 : i32
    %c0_i32_1 = arith.constant 0 : i32
    return %c0_i32, %c0_i32_0 : i32, i32
  }
  func.func @transform_4(%arg0: i32) -> (i32, i32) {
    %c0_i32 = arith.constant 0 : i32
    %c0_i32_0 = arith.constant 0 : i32
    %c0_i32_1 = arith.constant 0 : i32
    return %c0_i32, %c0_i32_0 : i32, i32
  }
  func.func @transform_5(%arg0: i32) -> (i32, i32) {
    %c0_i32 = arith.constant 0 : i32
    %c0_i32_0 = arith.constant 0 : i32
    %c0_i32_1 = arith.constant 0 : i32
    return %c0_i32, %c0_i32_0 : i32, i32
  }
  func.func @transform_6(%arg0: i32) -> (i32, i32) {
    %c0_i32 = arith.constant 0 : i32
    %c0_i32_0 = arith.constant 0 : i32
    %c0_i32_1 = arith.constant 0 : i32
    return %c0_i32, %c0_i32_0 : i32, i32
  }
  func.func @transform_7(%arg0: i32) -> (i32, i32) {
    %c0_i32 = arith.constant 0 : i32
    %c0_i32_0 = arith.constant 0 : i32
    %c0_i32_1 = arith.constant 0 : i32
    return %c0_i32, %c0_i32_0 : i32, i32
  }
  func.func @transform_8(%arg0: i32) -> (i32, i32) {
    %c0_i32 = arith.constant 0 : i32
    %c0_i32_0 = arith.constant 0 : i32
    %c0_i32_1 = arith.constant 0 : i32
    return %c0_i32, %c0_i32_0 : i32, i32
  }
  func.func @transform_9(%arg0: i32) -> (i32, i32) {
    %c0_i32 = arith.constant 0 : i32
    %c0_i32_0 = arith.constant 0 : i32
    %c0_i32_1 = arith.constant 0 : i32
    return %c0_i32, %c0_i32_0 : i32, i32
  }
  func.func @transform_10(%arg0: i32) -> (i32, i32) {
    %c0_i32 = arith.constant 0 : i32
    %c0_i32_0 = arith.constant 0 : i32
    %c0_i32_1 = arith.constant 0 : i32
    return %c0_i32, %c0_i32_0 : i32, i32
  }
  func.func @transform_11(%arg0: i32) -> (i32, i32) {
    %c0_i32 = arith.constant 0 : i32
    %c0_i32_0 = arith.constant 0 : i32
    %c0_i32_1 = arith.constant 0 : i32
    return %c0_i32, %c0_i32_0 : i32, i32
  }
  func.func @transform_12(%arg0: i32) -> (i32, i32) {
    %c0_i32 = arith.constant 0 : i32
    %c0_i32_0 = arith.constant 0 : i32
    %c0_i32_1 = arith.constant 0 : i32
    return %c0_i32, %c0_i32_0 : i32, i32
  }
  func.func @transform_13(%arg0: i32) -> (i32, i32) {
    %c0_i32 = arith.constant 0 : i32
    %c0_i32_0 = arith.constant 0 : i32
    %c0_i32_1 = arith.constant 0 : i32
    return %c0_i32, %c0_i32_0 : i32, i32
  }
}

</mosaic_0001>

<llo_original>
// kernel: alexnet_forward.3
$region0: #{alexnet_forward.3}
  #allocation0 [shape = 'u32[]', space=smem, size = 0x4, offset = 0x4, fixed_abs, tag = 'smem constant byte address 0x4 - core index']
  #allocation1 [shape = 'u32[72,128]{1,0:T(1,128)}', space=vmem, size = 0x9000, scoped, tag = 'internal scratch']
  %s0 = inlined_call_operand.vmem [shape: bf16[98,363], index: 0, kind: input, shape index: {}]
  %s1 = inlined_call_operand.vmem [shape: bf16[363,128], index: 1, kind: input, shape index: {}]
  %s2 = inlined_call_operand.vmem [shape: f32[1,128], index: 2, kind: input, shape index: {}]
  %s3 = inlined_call_operand.vmem [shape: f32[1,128], index: 3, kind: input, shape index: {}]
  %s4 = inlined_call_operand.vmem [shape: bf16[98,128], index: 4, kind: output, shape index: {}]
  %s5 = sld [smem:[#allocation0]]
  $region26: #{alexnet_forward.3} parent=0
    _
  %s7 = ssub.s32 1, %s5
  %s8 = scalar_select 0, %s7, %s5
  // Predicated region
  $region2: #{alexnet_forward.3} parent=0 // pred_check
    _
  $region3: #{alexnet_forward.3} parent=0 // pred_check_branch
    %10 = sbr.rel (0) target = $region5
  $region4: #{alexnet_forward.3} parent=0 // pred_region
    _
  $region5: #{alexnet_forward.3} parent=0 // pred_fallthru
    _
  // Predicated region
  $region6: #{alexnet_forward.3} parent=0 // pred_check
    _
  $region7: #{alexnet_forward.3} parent=0 // pred_check_branch
    %12 = sbr.rel (0) target = $region9
  $region8: #{alexnet_forward.3} parent=0 // pred_region
    _
  $region9: #{alexnet_forward.3} parent=0 // pred_fallthru
    _
  // Predicated region
  $region10: #{alexnet_forward.3} parent=0 // pred_check
    _
  $region11: #{alexnet_forward.3} parent=0 // pred_check_branch
    %14 = sbr.rel (0) target = $region13
  $region12: #{alexnet_forward.3} parent=0 // pred_region
    _
  $region13: #{alexnet_forward.3} parent=0 // pred_fallthru
    _
  // Predicated region
  $region14: #{alexnet_forward.3} parent=0 // pred_check
    _
  $region15: #{alexnet_forward.3} parent=0 // pred_check_branch
    %16 = sbr.rel (0) target = $region17
  $region16: #{alexnet_forward.3} parent=0 // pred_region
    _
  $region17: #{alexnet_forward.3} parent=0 // pred_fallthru
    _
  %v18 = vld [vmem:[%s0] sm:$0xff]
  %v19 = vld [vmem:[%s0 + $0x8] sm:$0xf]
  %v20 = vld [vmem:[%s0 + $0xc] sm:$0xff]
  %v21 = vld [vmem:[%s0 + $0x14] sm:$0xf]
  %v22 = vld [vmem:[%s0 + $0x18] sm:$0xff]
  %v23 = vld [vmem:[%s0 + $0x20] sm:$0xf]
  %v24 = vld [vmem:[%s0 + $0x24] sm:$0xff]
  %v25 = vld [vmem:[%s0 + $0x2c] sm:$0xf]
  %v26 = vld [vmem:[%s0 + $0x30] sm:$0xff]
  %v27 = vld [vmem:[%s0 + $0x38] sm:$0xf]
  %v28 = vld [vmem:[%s0 + $0x3c] sm:$0xff]
  %v29 = vld [vmem:[%s0 + $0x44] sm:$0xf]
  %v30 = vld [vmem:[%s0 + $0x48] sm:$0xff]
  %v31 = vld [vmem:[%s0 + $0x50] sm:$0xf]
  %v32 = vld [vmem:[%s0 + $0x54] sm:$0xff]
  %v33 = vld [vmem:[%s0 + $0x5c] sm:$0xf]
  %v34 = vld [vmem:[%s0 + $0x60] sm:$0xff]
  %v35 = vld [vmem:[%s0 + $0x68] sm:$0xf]
  %v36 = vld [vmem:[%s0 + $0x6c] sm:$0xff]
  %v37 = vld [vmem:[%s0 + $0x74] sm:$0xf]
  %v38 = vld [vmem:[%s0 + $0x78] sm:$0xff]
  %v39 = vld [vmem:[%s0 + $0x80] sm:$0xf]
  %v40 = vld [vmem:[%s0 + $0x84] sm:$0xff]
  %v41 = vld [vmem:[%s0 + $0x8c] sm:$0xf]
  %v42 = vld [vmem:[%s0 + $0x90] sm:$0x11]
  %v43 = vld [vmem:[%s0 + $0x98] sm:$0x1]
  %v44 = vld [vmem:[%s1] sm:$0xf]
  %v45 = vld [vmem:[%s1 + $0x4] sm:$0xf]
  %v46 = vld [vmem:[%s1 + $0x8] sm:$0xf]
  %v47 = vld [vmem:[%s1 + $0xc] sm:$0xf]
  %v48 = vld [vmem:[%s1 + $0x10] sm:$0xf]
  %v49 = vld [vmem:[%s1 + $0x14] sm:$0xf]
  %v50 = vld [vmem:[%s1 + $0x18] sm:$0xf]
  %v51 = vld [vmem:[%s1 + $0x1c] sm:$0xf]
  %v52 = vld [vmem:[%s1 + $0x20] sm:$0xf]
  %v53 = vld [vmem:[%s1 + $0x24] sm:$0xf]
  %v54 = vld [vmem:[%s1 + $0x28] sm:$0xf]
  %v55 = vld [vmem:[%s1 + $0x2c] sm:$0xf]
  %v56 = vld [vmem:[%s1 + $0x30] sm:$0xf]
  %v57 = vld [vmem:[%s1 + $0x34] sm:$0xf]
  %v58 = vld [vmem:[%s1 + $0x38] sm:$0xf]
  %v59 = vld [vmem:[%s1 + $0x3c] sm:$0xf]
  %v60 = vld [vmem:[%s1 + $0x40] sm:$0xf]
  %v61 = vld [vmem:[%s1 + $0x44] sm:$0xf]
  %v62 = vld [vmem:[%s1 + $0x48] sm:$0xf]
  %v63 = vld [vmem:[%s1 + $0x4c] sm:$0xf]
  %v64 = vld [vmem:[%s1 + $0x50] sm:$0xf]
  %v65 = vld [vmem:[%s1 + $0x54] sm:$0xf]
  %v66 = vld [vmem:[%s1 + $0x58] sm:$0xf]
  %v67 = vld [vmem:[%s1 + $0x5c] sm:$0xf]
  %v68 = vld [vmem:[%s1 + $0x60] sm:$0xf]
  %v69 = vld [vmem:[%s1 + $0x64] sm:$0xf]
  %v70 = vld [vmem:[%s1 + $0x68] sm:$0xf]
  %v71 = vld [vmem:[%s1 + $0x6c] sm:$0xf]
  %v72 = vld [vmem:[%s1 + $0x70] sm:$0xf]
  %v73 = vld [vmem:[%s1 + $0x74] sm:$0xf]
  %v74 = vld [vmem:[%s1 + $0x78] sm:$0xf]
  %v75 = vld [vmem:[%s1 + $0x7c] sm:$0xf]
  %v76 = vld [vmem:[%s1 + $0x80] sm:$0xf]
  %v77 = vld [vmem:[%s1 + $0x84] sm:$0xf]
  %v78 = vld [vmem:[%s1 + $0x88] sm:$0xf]
  %v79 = vld [vmem:[%s1 + $0x8c] sm:$0xf]
  %v80 = vld [vmem:[%s1 + $0x90] sm:$0xf]
  %v81 = vld [vmem:[%s1 + $0x94] sm:$0xf]
  %v82 = vld [vmem:[%s1 + $0x98] sm:$0xf]
  %v83 = vld [vmem:[%s1 + $0x9c] sm:$0xf]
  %v84 = vld [vmem:[%s1 + $0xa0] sm:$0xf]
  %v85 = vld [vmem:[%s1 + $0xa4] sm:$0xf]
  %v86 = vld [vmem:[%s1 + $0xa8] sm:$0xf]
  %v87 = vld [vmem:[%s1 + $0xac] sm:$0xf]
  %v88 = vld [vmem:[%s1 + $0xb0] sm:$0xf]
  %v89 = vld [vmem:[%s1 + $0xb4] sm:$0x3]
  %v116 = vunpack.c.l.b16 %v18
  %v117 = vunpack.c.h.b16 %v18
  %v118 = vunpack.c.l.b16 %v19
  %v119 = vunpack.c.l.b16 %v20
  %v120 = vunpack.c.h.b16 %v20
  %v121 = vunpack.c.l.b16 %v21
  %v122 = vunpack.c.l.b16 %v22
  %v123 = vunpack.c.h.b16 %v22
  %v124 = vunpack.c.l.b16 %v23
  %v125 = vunpack.c.l.b16 %v24
  %v126 = vunpack.c.h.b16 %v24
  %v127 = vunpack.c.l.b16 %v25
  %v128 = vunpack.c.l.b16 %v26
  %v129 = vunpack.c.h.b16 %v26
  %v130 = vunpack.c.l.b16 %v27
  %v131 = vunpack.c.l.b16 %v28
  %v132 = vunpack.c.h.b16 %v28
  %v133 = vunpack.c.l.b16 %v29
  %v134 = vunpack.c.l.b16 %v30
  %v135 = vunpack.c.h.b16 %v30
  %v136 = vunpack.c.l.b16 %v31
  %v137 = vunpack.c.l.b16 %v32
  %v138 = vunpack.c.h.b16 %v32
  %v139 = vunpack.c.l.b16 %v33
  %v140 = vunpack.c.l.b16 %v34
  %v141 = vunpack.c.h.b16 %v34
  %v142 = vunpack.c.l.b16 %v35
  %v143 = vunpack.c.l.b16 %v36
  %v144 = vunpack.c.h.b16 %v36
  %v145 = vunpack.c.l.b16 %v37
  %v146 = vunpack.c.l.b16 %v38
  %v147 = vunpack.c.h.b16 %v38
  %v148 = vunpack.c.l.b16 %v39
  %v149 = vunpack.c.l.b16 %v40
  %v150 = vunpack.c.h.b16 %v40
  %v151 = vunpack.c.l.b16 %v41
  %v152 = vunpack.c.l.b16 %v42
  %v153 = vunpack.c.h.b16 %v42
  %v154 = vunpack.c.l.b16 %v43
  %v155 = vpack.c.b16 %v119, %v116
  %v156 = vpack.c.b16 %v120, %v117
  %v157 = vpack.c.b16 %v121, %v118
  %v158 = vpack.c.b16 %v125, %v122
  %v159 = vpack.c.b16 %v126, %v123
  %v160 = vpack.c.b16 %v127, %v124
  %v161 = vpack.c.b16 %v131, %v128
  %v162 = vpack.c.b16 %v132, %v129
  %v163 = vpack.c.b16 %v133, %v130
  %v164 = vpack.c.b16 %v137, %v134
  %v165 = vpack.c.b16 %v138, %v135
  %v166 = vpack.c.b16 %v139, %v136
  %v167 = vpack.c.b16 %v143, %v140
  %v168 = vpack.c.b16 %v144, %v141
  %v169 = vpack.c.b16 %v145, %v142
  %v170 = vpack.c.b16 %v149, %v146
  %v171 = vpack.c.b16 %v150, %v147
  %v172 = vpack.c.b16 %v151, %v148
  %v173 = vpack.c.b16 %v152, %v152
  %v174 = vpack.c.b16 %v153, %v153
  %v175 = vpack.c.b16 %v154, %v154
  %v236 = vunpack.c.l.b16 %v44
  %v237 = vunpack.c.l.b16 %v45
  %v238 = vunpack.c.l.b16 %v46
  %v239 = vunpack.c.l.b16 %v47
  %v240 = vunpack.c.l.b16 %v48
  %v241 = vunpack.c.l.b16 %v49
  %v242 = vunpack.c.l.b16 %v50
  %v243 = vunpack.c.l.b16 %v51
  %v244 = vunpack.c.l.b16 %v52
  %v245 = vunpack.c.l.b16 %v53
  %v246 = vunpack.c.l.b16 %v54
  %v247 = vunpack.c.l.b16 %v55
  %v248 = vunpack.c.l.b16 %v56
  %v249 = vunpack.c.l.b16 %v57
  %v250 = vunpack.c.l.b16 %v58
  %v251 = vunpack.c.l.b16 %v59
  %v252 = vunpack.c.l.b16 %v60
  %v253 = vunpack.c.l.b16 %v61
  %v254 = vunpack.c.l.b16 %v62
  %v255 = vunpack.c.l.b16 %v63
  %v256 = vunpack.c.l.b16 %v64
  %v257 = vunpack.c.l.b16 %v65
  %v258 = vunpack.c.l.b16 %v66
  %v259 = vunpack.c.l.b16 %v67
  %v260 = vunpack.c.l.b16 %v68
  %v261 = vunpack.c.l.b16 %v69
  %v262 = vunpack.c.l.b16 %v70
  %v263 = vunpack.c.l.b16 %v71
  %v264 = vunpack.c.l.b16 %v72
  %v265 = vunpack.c.l.b16 %v73
  %v266 = vunpack.c.l.b16 %v74
  %v267 = vunpack.c.l.b16 %v75
  %v268 = vunpack.c.l.b16 %v76
  %v269 = vunpack.c.l.b16 %v77
  %v270 = vunpack.c.l.b16 %v78
  %v271 = vunpack.c.l.b16 %v79
  %v272 = vunpack.c.l.b16 %v80
  %v273 = vunpack.c.l.b16 %v81
  %v274 = vunpack.c.l.b16 %v82
  %v275 = vunpack.c.l.b16 %v83
  %v276 = vunpack.c.l.b16 %v84
  %v277 = vunpack.c.l.b16 %v85
  %v278 = vunpack.c.l.b16 %v86
  %v279 = vunpack.c.l.b16 %v87
  %v280 = vunpack.c.l.b16 %v88
  %v281 = vunpack.c.l.b16 %v89
  %v282 = vpack.c.b16 %v237, %v236
  %v283 = vpack.c.b16 %v239, %v238
  %v284 = vpack.c.b16 %v241, %v240
  %v285 = vpack.c.b16 %v243, %v242
  %v286 = vpack.c.b16 %v245, %v244
  %v287 = vpack.c.b16 %v247, %v246
  %v288 = vpack.c.b16 %v249, %v248
  %v289 = vpack.c.b16 %v251, %v250
  %v290 = vpack.c.b16 %v253, %v252
  %v291 = vpack.c.b16 %v255, %v254
  %v292 = vpack.c.b16 %v257, %v256
  %v293 = vpack.c.b16 %v259, %v258
  %v294 = vpack.c.b16 %v261, %v260
  %v295 = vpack.c.b16 %v263, %v262
  %v296 = vpack.c.b16 %v265, %v264
  %v297 = vpack.c.b16 %v267, %v266
  %v298 = vpack.c.b16 %v269, %v268
  %v299 = vpack.c.b16 %v271, %v270
  %v300 = vpack.c.b16 %v273, %v272
  %v301 = vpack.c.b16 %v275, %v274
  %v302 = vpack.c.b16 %v277, %v276
  %v303 = vpack.c.b16 %v279, %v278
  %v304 = vpack.c.b16 %v281, %v280
  %vm327 = vcmask 875520
  %v329 = vsel %vm327, %v157, 0
  %v332 = vsel %vm327, %v160, 0
  %v335 = vsel %vm327, %v163, 0
  %v338 = vsel %vm327, %v166, 0
  %v341 = vsel %vm327, %v169, 0
  %v344 = vsel %vm327, %v172, 0
  %v347 = vsel %vm327, %v175, 0
  %vm349 = vcmask 1044480
  %vm350 = vcmask 1045504
  %v351 = vsel %vm349, 4294967295, 65535
  %v352 = vsel %vm350, %v351, 0
  %v354 = vand.u32 %v304, %v352
  %356 = vmatpush.bf16.msra.mxu0 %v289
  %357 = vmatpush.bf16.msra.mxu0 %v288
  %358 = vmatpush.bf16.msra.mxu0 %v287
  %359 = vmatpush.bf16.msra.mxu0 %v286
  %360 = vmatpush.bf16.msra.mxu0 %v285
  %361 = vmatpush.bf16.msra.mxu0 %v284
  %362 = vmatpush.bf16.msra.mxu0 %v283
  %363 = vmatpush.bf16.msra.mxu0 %v282
  %364 = vmatmul.bf16.gmra.mxu0 %v155
  %v365 = vpop.f32.mrf.mxu0
  %v366 = vadd.f32 0.0, %v365
  %v367 = vpop.f32.mrf.mxu0
  %v368 = vadd.f32 0.0, %v367
  %369 = vmatmul.bf16.gmra.mxu0 %v158
  %v370 = vpop.f32.mrf.mxu0
  %v371 = vadd.f32 0.0, %v370
  %v372 = vpop.f32.mrf.mxu0
  %v373 = vadd.f32 0.0, %v372
  %374 = vmatmul.bf16.gmra.mxu0 %v161
  %v375 = vpop.f32.mrf.mxu0
  %v376 = vadd.f32 0.0, %v375
  %v377 = vpop.f32.mrf.mxu0
  %v378 = vadd.f32 0.0, %v377
  %379 = vmatmul.bf16.gmra.mxu0 %v164
  %v380 = vpop.f32.mrf.mxu0
  %v381 = vadd.f32 0.0, %v380
  %v382 = vpop.f32.mrf.mxu0
  %v383 = vadd.f32 0.0, %v382
  %384 = vmatmul.bf16.gmra.mxu0 %v167
  %v385 = vpop.f32.mrf.mxu0
  %v386 = vadd.f32 0.0, %v385
  %v387 = vpop.f32.mrf.mxu0
  %v388 = vadd.f32 0.0, %v387
  %389 = vmatmul.bf16.gmra.mxu0 %v170
  %v390 = vpop.f32.mrf.mxu0
  %v391 = vadd.f32 0.0, %v390
  %v392 = vpop.f32.mrf.mxu0
  %v393 = vadd.f32 0.0, %v392
  %394 = vmatmul.bf16.gmra.mxu0 %v173
  %v395 = vpop.f32.mrf.mxu0
  %v396 = vadd.f32 0.0, %v395
  %v397 = vpop.f32.mrf.mxu0
  %398 = vdwg.mxu0
  %399 = vmatpush.bf16.msra.mxu0 %v297
  %400 = vmatpush.bf16.msra.mxu0 %v296
  %401 = vmatpush.bf16.msra.mxu0 %v295
  %402 = vmatpush.bf16.msra.mxu0 %v294
  %403 = vmatpush.bf16.msra.mxu0 %v293
  %404 = vmatpush.bf16.msra.mxu0 %v292
  %405 = vmatpush.bf16.msra.mxu0 %v291
  %406 = vmatpush.bf16.msra.mxu0 %v290
  %407 = vmatmul.bf16.gmra.mxu0 %v156
  %v408 = vpop.f32.mrf.mxu0
  %v409 = vadd.f32 %v366, %v408
  %v410 = vpop.f32.mrf.mxu0
  %v411 = vadd.f32 %v368, %v410
  %412 = vmatmul.bf16.gmra.mxu0 %v159
  %v413 = vpop.f32.mrf.mxu0
  %v414 = vadd.f32 %v371, %v413
  %v415 = vpop.f32.mrf.mxu0
  %v416 = vadd.f32 %v373, %v415
  %417 = vmatmul.bf16.gmra.mxu0 %v162
  %v418 = vpop.f32.mrf.mxu0
  %v419 = vadd.f32 %v376, %v418
  %v420 = vpop.f32.mrf.mxu0
  %v421 = vadd.f32 %v378, %v420
  %422 = vmatmul.bf16.gmra.mxu0 %v165
  %v423 = vpop.f32.mrf.mxu0
  %v424 = vadd.f32 %v381, %v423
  %v425 = vpop.f32.mrf.mxu0
  %v426 = vadd.f32 %v383, %v425
  %427 = vmatmul.bf16.gmra.mxu0 %v168
  %v428 = vpop.f32.mrf.mxu0
  %v429 = vadd.f32 %v386, %v428
  %v430 = vpop.f32.mrf.mxu0
  %v431 = vadd.f32 %v388, %v430
  %432 = vmatmul.bf16.gmra.mxu0 %v171
  %v433 = vpop.f32.mrf.mxu0
  %v434 = vadd.f32 %v391, %v433
  %v435 = vpop.f32.mrf.mxu0
  %v436 = vadd.f32 %v393, %v435
  %437 = vmatmul.bf16.gmra.mxu0 %v174
  %v438 = vpop.f32.mrf.mxu0
  %v439 = vadd.f32 %v396, %v438
  %v440 = vpop.f32.mrf.mxu0
  %441 = vdwg.mxu0
  %442 = vmatpush.bf16.msra.mxu0 0
  %443 = vmatpush.bf16.msra.mxu0 %v354
  %444 = vmatpush.bf16.msra.mxu0 %v303
  %445 = vmatpush.bf16.msra.mxu0 %v302
  %446 = vmatpush.bf16.msra.mxu0 %v301
  %447 = vmatpush.bf16.msra.mxu0 %v300
  %448 = vmatpush.bf16.msra.mxu0 %v299
  %449 = vmatpush.bf16.msra.mxu0 %v298
  %450 = vmatmul.bf16.gmra.mxu0 %v329
  %v451 = vpop.f32.mrf.mxu0
  %v452 = vadd.f32 %v409, %v451
  %v453 = vpop.f32.mrf.mxu0
  %v454 = vadd.f32 %v411, %v453
  %455 = vmatmul.bf16.gmra.mxu0 %v332
  %v456 = vpop.f32.mrf.mxu0
  %v457 = vadd.f32 %v414, %v456
  %v458 = vpop.f32.mrf.mxu0
  %v459 = vadd.f32 %v416, %v458
  %460 = vmatmul.bf16.gmra.mxu0 %v335
  %v461 = vpop.f32.mrf.mxu0
  %v462 = vadd.f32 %v419, %v461
  %v463 = vpop.f32.mrf.mxu0
  %v464 = vadd.f32 %v421, %v463
  %465 = vmatmul.bf16.gmra.mxu0 %v338
  %v466 = vpop.f32.mrf.mxu0
  %v467 = vadd.f32 %v424, %v466
  %v468 = vpop.f32.mrf.mxu0
  %v469 = vadd.f32 %v426, %v468
  %470 = vmatmul.bf16.gmra.mxu0 %v341
  %v471 = vpop.f32.mrf.mxu0
  %v472 = vadd.f32 %v429, %v471
  %v473 = vpop.f32.mrf.mxu0
  %v474 = vadd.f32 %v431, %v473
  %475 = vmatmul.bf16.gmra.mxu0 %v344
  %v476 = vpop.f32.mrf.mxu0
  %v477 = vadd.f32 %v434, %v476
  %v478 = vpop.f32.mrf.mxu0
  %v479 = vadd.f32 %v436, %v478
  %480 = vmatmul.bf16.gmra.mxu0 %v347
  %v481 = vpop.f32.mrf.mxu0
  %v482 = vadd.f32 %v439, %v481
  %v483 = vpop.f32.mrf.mxu0
  %484 = vdwg.mxu0
  %v485 = vld [vmem:[%s2] sm:$0x1]
  %v487 = vperm.slane %v485, 0
  %v489 = vmul.f32 %v452, %v487
  %v490 = vmul.f32 %v454, %v487
  %v491 = vmul.f32 %v457, %v487
  %v492 = vmul.f32 %v459, %v487
  %v493 = vmul.f32 %v462, %v487
  %v494 = vmul.f32 %v464, %v487
  %v495 = vmul.f32 %v467, %v487
  %v496 = vmul.f32 %v469, %v487
  %v497 = vmul.f32 %v472, %v487
  %v498 = vmul.f32 %v474, %v487
  %v499 = vmul.f32 %v477, %v487
  %v500 = vmul.f32 %v479, %v487
  %v501 = vmul.f32 %v482, %v487
  %v502 = vld [vmem:[%s3] sm:$0x1]
  %v504 = vperm.slane %v502, 0
  %v506 = vadd.f32 %v489, %v504
  %v507 = vadd.f32 %v490, %v504
  %v508 = vadd.f32 %v491, %v504
  %v509 = vadd.f32 %v492, %v504
  %v510 = vadd.f32 %v493, %v504
  %v511 = vadd.f32 %v494, %v504
  %v512 = vadd.f32 %v495, %v504
  %v513 = vadd.f32 %v496, %v504
  %v514 = vadd.f32 %v497, %v504
  %v515 = vadd.f32 %v498, %v504
  %v516 = vadd.f32 %v499, %v504
  %v517 = vadd.f32 %v500, %v504
  %v518 = vadd.f32 %v501, %v504
  %v519 = vmax.f32 %v506, 0.0
  %v520 = vmax.f32 %v507, 0.0
  %v521 = vmax.f32 %v508, 0.0
  %v522 = vmax.f32 %v509, 0.0
  %v523 = vmax.f32 %v510, 0.0
  %v524 = vmax.f32 %v511, 0.0
  %v525 = vmax.f32 %v512, 0.0
  %v526 = vmax.f32 %v513, 0.0
  %v527 = vmax.f32 %v514, 0.0
  %v528 = vmax.f32 %v515, 0.0
  %v529 = vmax.f32 %v516, 0.0
  %v530 = vmax.f32 %v517, 0.0
  %v531 = vmax.f32 %v518, 0.0
  %v532 = vpack.c.bf16 %v519, %v519
  %v533 = vpack.c.bf16 %v520, %v520
  %v534 = vpack.c.bf16 %v521, %v521
  %v535 = vpack.c.bf16 %v522, %v522
  %v536 = vpack.c.bf16 %v523, %v523
  %v537 = vpack.c.bf16 %v524, %v524
  %v538 = vpack.c.bf16 %v525, %v525
  %v539 = vpack.c.bf16 %v526, %v526
  %v540 = vpack.c.bf16 %v527, %v527
  %v541 = vpack.c.bf16 %v528, %v528
  %v542 = vpack.c.bf16 %v529, %v529
  %v543 = vpack.c.bf16 %v530, %v530
  %v544 = vpack.c.bf16 %v531, %v531
  %545 = vst [vmem:[%s4] sm:$0xf] %v532
  %546 = vst [vmem:[%s4 + $0x4] sm:$0xf] %v533
  %547 = vst [vmem:[%s4 + $0x8] sm:$0xf] %v534
  %548 = vst [vmem:[%s4 + $0xc] sm:$0xf] %v535
  %549 = vst [vmem:[%s4 + $0x10] sm:$0xf] %v536
  %550 = vst [vmem:[%s4 + $0x14] sm:$0xf] %v537
  %551 = vst [vmem:[%s4 + $0x18] sm:$0xf] %v538
  %552 = vst [vmem:[%s4 + $0x1c] sm:$0xf] %v539
  %553 = vst [vmem:[%s4 + $0x20] sm:$0xf] %v540
  %554 = vst [vmem:[%s4 + $0x24] sm:$0xf] %v541
  %555 = vst [vmem:[%s4 + $0x28] sm:$0xf] %v542
  %556 = vst [vmem:[%s4 + $0x2c] sm:$0xf] %v543
  %557 = vst [vmem:[%s4 + $0x30] sm:$0x1] %v544
  // Predicated region
  $region18: #{alexnet_forward.3} parent=0 // pred_check
    _
  $region19: #{alexnet_forward.3} parent=0 // pred_check_branch
    %559 = sbr.rel (0) target = $region21
  $region20: #{alexnet_forward.3} parent=0 // pred_region
    _
  $region21: #{alexnet_forward.3} parent=0 // pred_fallthru
    _
  // Predicated region
  $region22: #{alexnet_forward.3} parent=0 // pred_check
    _
  $region23: #{alexnet_forward.3} parent=0 // pred_check_branch
    %561 = sbr.rel (0) target = $region25
  $region24: #{alexnet_forward.3} parent=0 // pred_region
    _
  $region25: #{alexnet_forward.3} parent=0 // pred_fallthru
    _

// kernel: alexnet_forward.5
$region0: #{alexnet_forward.5}
  #allocation0 [shape = 'u32[]', space=smem, size = 0x4, offset = 0x4, fixed_abs, tag = 'smem constant byte address 0x4 - core index']
  #allocation1 [shape = 'u32[72,128]{1,0:T(1,128)}', space=vmem, size = 0x9000, scoped, tag = 'internal scratch']
  %s0 = inlined_call_operand.vmem [shape: bf16[2,256], index: 0, kind: input, shape index: {}]
  %s1 = inlined_call_operand.vmem [shape: bf16[256,384], index: 1, kind: input, shape index: {}]
  %s2 = inlined_call_operand.vmem [shape: f32[1,384], index: 2, kind: input, shape index: {}]
  %s3 = inlined_call_operand.vmem [shape: bf16[384,384], index: 3, kind: input, shape index: {}]
  %s4 = inlined_call_operand.vmem [shape: f32[1,384], index: 4, kind: input, shape index: {}]
  %s5 = inlined_call_operand.vmem [shape: bf16[384,256], index: 5, kind: input, shape index: {}]
  %s6 = inlined_call_operand.vmem [shape: f32[1,256], index: 6, kind: input, shape index: {}]
  %s7 = inlined_call_operand.vmem [shape: bf16[256,256], index: 7, kind: input, shape index: {}]
  %s8 = inlined_call_operand.vmem [shape: f32[1,256], index: 8, kind: input, shape index: {}]
  %s9 = inlined_call_operand.vmem [shape: bf16[256,256], index: 9, kind: input, shape index: {}]
  %s10 = inlined_call_operand.vmem [shape: f32[1,256], index: 10, kind: input, shape index: {}]
  %s11 = inlined_call_operand.vmem [shape: bf16[256,128], index: 11, kind: input, shape index: {}]
  %s12 = inlined_call_operand.vmem [shape: f32[1,128], index: 12, kind: input, shape index: {}]
  %s13 = inlined_call_operand.hbm [shape: f32[2,128], index: 13, kind: output, shape index: {}]
  %s14 = sld [smem:[#allocation0]]
  $region62: #{alexnet_forward.5} parent=0
    _
  %s16 = ssub.s32 1, %s14
  %s17 = scalar_select 0, %s16, %s14
  $region1: #{alexnet_forward.5} parent=0
    #allocation2 [shape = 'u8[1024]{0}', space=vmem, size = 0x400, scoped, tag = 'output window, operand 0, single buffered']
    #allocation3 [shape = 's32[1]{0}', space=sflag, size = 0x4, scoped, tag = 'scoped memory for alexnet_forward.5']
    %18 = vsyncpa [#allocation3], 0
    // Predicated region
    $region2: #{alexnet_forward.5} parent=1 // pred_check
      _
    $region3: #{alexnet_forward.5} parent=1 // pred_check_branch
      %20 = sbr.rel (0) target = $region5
    $region4: #{alexnet_forward.5} parent=1 // pred_region
      _
    $region5: #{alexnet_forward.5} parent=1 // pred_fallthru
      _
    // Predicated region
    $region6: #{alexnet_forward.5} parent=1 // pred_check
      _
    $region7: #{alexnet_forward.5} parent=1 // pred_check_branch
      %22 = sbr.rel (0) target = $region9
    $region8: #{alexnet_forward.5} parent=1 // pred_region
      _
    $region9: #{alexnet_forward.5} parent=1 // pred_fallthru
      _
    // Predicated region
    $region10: #{alexnet_forward.5} parent=1 // pred_check
      _
    $region11: #{alexnet_forward.5} parent=1 // pred_check_branch
      %24 = sbr.rel (0) target = $region13
    $region12: #{alexnet_forward.5} parent=1 // pred_region
      _
    $region13: #{alexnet_forward.5} parent=1 // pred_fallthru
      _
    // Predicated region
    $region14: #{alexnet_forward.5} parent=1 // pred_check
      _
    $region15: #{alexnet_forward.5} parent=1 // pred_check_branch
      %26 = sbr.rel (0) target = $region17
    $region16: #{alexnet_forward.5} parent=1 // pred_region
      _
    $region17: #{alexnet_forward.5} parent=1 // pred_fallthru
      _
    // Predicated region
    $region18: #{alexnet_forward.5} parent=1 // pred_check
      _
    $region19: #{alexnet_forward.5} parent=1 // pred_check_branch
      %28 = sbr.rel (0) target = $region21
    $region20: #{alexnet_forward.5} parent=1 // pred_region
      _
    $region21: #{alexnet_forward.5} parent=1 // pred_fallthru
      _
    // Predicated region
    $region22: #{alexnet_forward.5} parent=1 // pred_check
      _
    $region23: #{alexnet_forward.5} parent=1 // pred_check_branch
      %30 = sbr.rel (0) target = $region25
    $region24: #{alexnet_forward.5} parent=1 // pred_region
      _
    $region25: #{alexnet_forward.5} parent=1 // pred_fallthru
      _
    // Predicated region
    $region26: #{alexnet_forward.5} parent=1 // pred_check
      _
    $region27: #{alexnet_forward.5} parent=1 // pred_check_branch
      %32 = sbr.rel (0) target = $region29
    $region28: #{alexnet_forward.5} parent=1 // pred_region
      _
    $region29: #{alexnet_forward.5} parent=1 // pred_fallthru
      _
    // Predicated region
    $region30: #{alexnet_forward.5} parent=1 // pred_check
      _
    $region31: #{alexnet_forward.5} parent=1 // pred_check_branch
      %34 = sbr.rel (0) target = $region33
    $region32: #{alexnet_forward.5} parent=1 // pred_region
      _
    $region33: #{alexnet_forward.5} parent=1 // pred_fallthru
      _
    // Predicated region
    $region34: #{alexnet_forward.5} parent=1 // pred_check
      _
    $region35: #{alexnet_forward.5} parent=1 // pred_check_branch
      %36 = sbr.rel (0) target = $region37
    $region36: #{alexnet_forward.5} parent=1 // pred_region
      _
    $region37: #{alexnet_forward.5} parent=1 // pred_fallthru
      _
    // Predicated region
    $region38: #{alexnet_forward.5} parent=1 // pred_check
      _
    $region39: #{alexnet_forward.5} parent=1 // pred_check_branch
      %38 = sbr.rel (0) target = $region41
    $region40: #{alexnet_forward.5} parent=1 // pred_region
      _
    $region41: #{alexnet_forward.5} parent=1 // pred_fallthru
      _
    // Predicated region
    $region42: #{alexnet_forward.5} parent=1 // pred_check
      _
    $region43: #{alexnet_forward.5} parent=1 // pred_check_branch
      %40 = sbr.rel (0) target = $region45
    $region44: #{alexnet_forward.5} parent=1 // pred_region
      _
    $region45: #{alexnet_forward.5} parent=1 // pred_fallthru
      _
    // Predicated region
    $region46: #{alexnet_forward.5} parent=1 // pred_check
      _
    $region47: #{alexnet_forward.5} parent=1 // pred_check_branch
      %42 = sbr.rel (0) target = $region49
    $region48: #{alexnet_forward.5} parent=1 // pred_region
      _
    $region49: #{alexnet_forward.5} parent=1 // pred_fallthru
      _
    // Predicated region
    $region50: #{alexnet_forward.5} parent=1 // pred_check
      _
    $region51: #{alexnet_forward.5} parent=1 // pred_check_branch
      %44 = sbr.rel (0) target = $region53
    $region52: #{alexnet_forward.5} parent=1 // pred_region
      _
    $region53: #{alexnet_forward.5} parent=1 // pred_fallthru
      _
    %v45 = vld [vmem:[%s0] sm:$0x3]
    %v46 = vld [vmem:[%s1] sm:$0xff]
    %v47 = vld [vmem:[%s1 + $0x8] sm:$0xf]
    %v48 = vld [vmem:[%s1 + $0xc] sm:$0xff]
    %v49 = vld [vmem:[%s1 + $0x14] sm:$0xf]
    %v50 = vld [vmem:[%s1 + $0x18] sm:$0xff]
    %v51 = vld [vmem:[%s1 + $0x20] sm:$0xf]
    %v52 = vld [vmem:[%s1 + $0x24] sm:$0xff]
    %v53 = vld [vmem:[%s1 + $0x2c] sm:$0xf]
    %v54 = vld [vmem:[%s1 + $0x30] sm:$0xff]
    %v55 = vld [vmem:[%s1 + $0x38] sm:$0xf]
    %v56 = vld [vmem:[%s1 + $0x3c] sm:$0xff]
    %v57 = vld [vmem:[%s1 + $0x44] sm:$0xf]
    %v58 = vld [vmem:[%s1 + $0x48] sm:$0xff]
    %v59 = vld [vmem:[%s1 + $0x50] sm:$0xf]
    %v60 = vld [vmem:[%s1 + $0x54] sm:$0xff]
    %v61 = vld [vmem:[%s1 + $0x5c] sm:$0xf]
    %v62 = vld [vmem:[%s1 + $0x60] sm:$0xff]
    %v63 = vld [vmem:[%s1 + $0x68] sm:$0xf]
    %v64 = vld [vmem:[%s1 + $0x6c] sm:$0xff]
    %v65 = vld [vmem:[%s1 + $0x74] sm:$0xf]
    %v66 = vld [vmem:[%s1 + $0x78] sm:$0xff]
    %v67 = vld [vmem:[%s1 + $0x80] sm:$0xf]
    %v68 = vld [vmem:[%s1 + $0x84] sm:$0xff]
    %v69 = vld [vmem:[%s1 + $0x8c] sm:$0xf]
    %v70 = vld [vmem:[%s1 + $0x90] sm:$0xff]
    %v71 = vld [vmem:[%s1 + $0x98] sm:$0xf]
    %v72 = vld [vmem:[%s1 + $0x9c] sm:$0xff]
    %v73 = vld [vmem:[%s1 + $0xa4] sm:$0xf]
    %v74 = vld [vmem:[%s1 + $0xa8] sm:$0xff]
    %v75 = vld [vmem:[%s1 + $0xb0] sm:$0xf]
    %v76 = vld [vmem:[%s1 + $0xb4] sm:$0xff]
    %v77 = vld [vmem:[%s1 + $0xbc] sm:$0xf]
    %v78 = vld [vmem:[%s1 + $0xc0] sm:$0xff]
    %v79 = vld [vmem:[%s1 + $0xc8] sm:$0xf]
    %v80 = vld [vmem:[%s1 + $0xcc] sm:$0xff]
    %v81 = vld [vmem:[%s1 + $0xd4] sm:$0xf]
    %v82 = vld [vmem:[%s1 + $0xd8] sm:$0xff]
    %v83 = vld [vmem:[%s1 + $0xe0] sm:$0xf]
    %v84 = vld [vmem:[%s1 + $0xe4] sm:$0xff]
    %v85 = vld [vmem:[%s1 + $0xec] sm:$0xf]
    %v86 = vld [vmem:[%s1 + $0xf0] sm:$0xff]
    %v87 = vld [vmem:[%s1 + $0xf8] sm:$0xf]
    %v88 = vld [vmem:[%s1 + $0xfc] sm:$0xff]
    %v89 = vld [vmem:[%s1 + $0x104] sm:$0xf]
    %v90 = vld [vmem:[%s1 + $0x108] sm:$0xff]
    %v91 = vld [vmem:[%s1 + $0x110] sm:$0xf]
    %v92 = vld [vmem:[%s1 + $0x114] sm:$0xff]
    %v93 = vld [vmem:[%s1 + $0x11c] sm:$0xf]
    %v94 = vld [vmem:[%s1 + $0x120] sm:$0xff]
    %v95 = vld [vmem:[%s1 + $0x128] sm:$0xf]
    %v96 = vld [vmem:[%s1 + $0x12c] sm:$0xff]
    %v97 = vld [vmem:[%s1 + $0x134] sm:$0xf]
    %v98 = vld [vmem:[%s1 + $0x138] sm:$0xff]
    %v99 = vld [vmem:[%s1 + $0x140] sm:$0xf]
    %v100 = vld [vmem:[%s1 + $0x144] sm:$0xff]
    %v101 = vld [vmem:[%s1 + $0x14c] sm:$0xf]
    %v102 = vld [vmem:[%s1 + $0x150] sm:$0xff]
    %v103 = vld [vmem:[%s1 + $0x158] sm:$0xf]
    %v104 = vld [vmem:[%s1 + $0x15c] sm:$0xff]
    %v105 = vld [vmem:[%s1 + $0x164] sm:$0xf]
    %v106 = vld [vmem:[%s1 + $0x168] sm:$0xff]
    %v107 = vld [vmem:[%s1 + $0x170] sm:$0xf]
    %v108 = vld [vmem:[%s1 + $0x174] sm:$0xff]
    %v109 = vld [vmem:[%s1 + $0x17c] sm:$0xf]
    %v110 = vld [vmem:[%s2] sm:$0x7]
    %v112 = vperm.slane %v110, 0
    %v113 = vperm.slane %v110, 1
    %v114 = vperm.slane %v110, 2
    %119 = vst [vmem:[#allocation1] ss:$9 sm:$0xff] %v45
    %v120 = vld [vmem:[#allocation1] sm:$0xff]
    %v121 = vld [vmem:[#allocation1 + $0x9] sm:$0xff]
    %v188 = vunpack.c.l.b16 %v46
    %v189 = vunpack.c.h.b16 %v46
    %v190 = vunpack.c.l.b16 %v47
    %v191 = vunpack.c.l.b16 %v48
    %v192 = vunpack.c.h.b16 %v48
    %v193 = vunpack.c.l.b16 %v49
    %v194 = vunpack.c.l.b16 %v50
    %v195 = vunpack.c.h.b16 %v50
    %v196 = vunpack.c.l.b16 %v51
    %v197 = vunpack.c.l.b16 %v52
    %v198 = vunpack.c.h.b16 %v52
    %v199 = vunpack.c.l.b16 %v53
    %v200 = vunpack.c.l.b16 %v54
    %v201 = vunpack.c.h.b16 %v54
    %v202 = vunpack.c.l.b16 %v55
    %v203 = vunpack.c.l.b16 %v56
    %v204 = vunpack.c.h.b16 %v56
    %v205 = vunpack.c.l.b16 %v57
    %v206 = vunpack.c.l.b16 %v58
    %v207 = vunpack.c.h.b16 %v58
    %v208 = vunpack.c.l.b16 %v59
    %v209 = vunpack.c.l.b16 %v60
    %v210 = vunpack.c.h.b16 %v60
    %v211 = vunpack.c.l.b16 %v61
    %v212 = vunpack.c.l.b16 %v62
    %v213 = vunpack.c.h.b16 %v62
    %v214 = vunpack.c.l.b16 %v63
    %v215 = vunpack.c.l.b16 %v64
    %v216 = vunpack.c.h.b16 %v64
    %v217 = vunpack.c.l.b16 %v65
    %v218 = vunpack.c.l.b16 %v66
    %v219 = vunpack.c.h.b16 %v66
    %v220 = vunpack.c.l.b16 %v67
    %v221 = vunpack.c.l.b16 %v68
    %v222 = vunpack.c.h.b16 %v68
    %v223 = vunpack.c.l.b16 %v69
    %v224 = vunpack.c.l.b16 %v70
    %v225 = vunpack.c.h.b16 %v70
    %v226 = vunpack.c.l.b16 %v71
    %v227 = vunpack.c.l.b16 %v72
    %v228 = vunpack.c.h.b16 %v72
    %v229 = vunpack.c.l.b16 %v73
    %v230 = vunpack.c.l.b16 %v74
    %v231 = vunpack.c.h.b16 %v74
    %v232 = vunpack.c.l.b16 %v75
    %v233 = vunpack.c.l.b16 %v76
    %v234 = vunpack.c.h.b16 %v76
    %v235 = vunpack.c.l.b16 %v77
    %v236 = vunpack.c.l.b16 %v78
    %v237 = vunpack.c.h.b16 %v78
    %v238 = vunpack.c.l.b16 %v79
    %v239 = vunpack.c.l.b16 %v80
    %v240 = vunpack.c.h.b16 %v80
    %v241 = vunpack.c.l.b16 %v81
    %v242 = vunpack.c.l.b16 %v82
    %v243 = vunpack.c.h.b16 %v82
    %v244 = vunpack.c.l.b16 %v83
    %v245 = vunpack.c.l.b16 %v84
    %v246 = vunpack.c.h.b16 %v84
    %v247 = vunpack.c.l.b16 %v85
    %v248 = vunpack.c.l.b16 %v86
    %v249 = vunpack.c.h.b16 %v86
    %v250 = vunpack.c.l.b16 %v87
    %v251 = vunpack.c.l.b16 %v88
    %v252 = vunpack.c.h.b16 %v88
    %v253 = vunpack.c.l.b16 %v89
    %v254 = vunpack.c.l.b16 %v90
    %v255 = vunpack.c.h.b16 %v90
    %v256 = vunpack.c.l.b16 %v91
    %v257 = vunpack.c.l.b16 %v92
    %v258 = vunpack.c.h.b16 %v92
    %v259 = vunpack.c.l.b16 %v93
    %v260 = vunpack.c.l.b16 %v94
    %v261 = vunpack.c.h.b16 %v94
    %v262 = vunpack.c.l.b16 %v95
    %v263 = vunpack.c.l.b16 %v96
    %v264 = vunpack.c.h.b16 %v96
    %v265 = vunpack.c.l.b16 %v97
    %v266 = vunpack.c.l.b16 %v98
    %v267 = vunpack.c.h.b16 %v98
    %v268 = vunpack.c.l.b16 %v99
    %v269 = vunpack.c.l.b16 %v100
    %v270 = vunpack.c.h.b16 %v100
    %v271 = vunpack.c.l.b16 %v101
    %v272 = vunpack.c.l.b16 %v102
    %v273 = vunpack.c.h.b16 %v102
    %v274 = vunpack.c.l.b16 %v103
    %v275 = vunpack.c.l.b16 %v104
    %v276 = vunpack.c.h.b16 %v104
    %v277 = vunpack.c.l.b16 %v105
    %v278 = vunpack.c.l.b16 %v106
    %v279 = vunpack.c.h.b16 %v106
    %v280 = vunpack.c.l.b16 %v107
    %v281 = vunpack.c.l.b16 %v108
    %v282 = vunpack.c.h.b16 %v108
    %v283 = vunpack.c.l.b16 %v109
    %v284 = vpack.c.b16 %v191, %v188
    %v285 = vpack.c.b16 %v192, %v189
    %v286 = vpack.c.b16 %v193, %v190
    %v287 = vpack.c.b16 %v197, %v194
    %v288 = vpack.c.b16 %v198, %v195
    %v289 = vpack.c.b16 %v199, %v196
    %v290 = vpack.c.b16 %v203, %v200
    %v291 = vpack.c.b16 %v204, %v201
    %v292 = vpack.c.b16 %v205, %v202
    %v293 = vpack.c.b16 %v209, %v206
    %v294 = vpack.c.b16 %v210, %v207
    %v295 = vpack.c.b16 %v211, %v208
    %v296 = vpack.c.b16 %v215, %v212
    %v297 = vpack.c.b16 %v216, %v213
    %v298 = vpack.c.b16 %v217, %v214
    %v299 = vpack.c.b16 %v221, %v218
    %v300 = vpack.c.b16 %v222, %v219
    %v301 = vpack.c.b16 %v223, %v220
    %v302 = vpack.c.b16 %v227, %v224
    %v303 = vpack.c.b16 %v228, %v225
    %v304 = vpack.c.b16 %v229, %v226
    %v305 = vpack.c.b16 %v233, %v230
    %v306 = vpack.c.b16 %v234, %v231
    %v307 = vpack.c.b16 %v235, %v232
    %v308 = vpack.c.b16 %v239, %v236
    %v309 = vpack.c.b16 %v240, %v237
    %v310 = vpack.c.b16 %v241, %v238
    %v311 = vpack.c.b16 %v245, %v242
    %v312 = vpack.c.b16 %v246, %v243
    %v313 = vpack.c.b16 %v247, %v244
    %v314 = vpack.c.b16 %v251, %v248
    %v315 = vpack.c.b16 %v252, %v249
    %v316 = vpack.c.b16 %v253, %v250
    %v317 = vpack.c.b16 %v257, %v254
    %v318 = vpack.c.b16 %v258, %v255
    %v319 = vpack.c.b16 %v259, %v256
    %v320 = vpack.c.b16 %v263, %v260
    %v321 = vpack.c.b16 %v264, %v261
    %v322 = vpack.c.b16 %v265, %v262
    %v323 = vpack.c.b16 %v269, %v266
    %v324 = vpack.c.b16 %v270, %v267
    %v325 = vpack.c.b16 %v271, %v268
    %v326 = vpack.c.b16 %v275, %v272
    %v327 = vpack.c.b16 %v276, %v273
    %v328 = vpack.c.b16 %v277, %v274
    %v329 = vpack.c.b16 %v281, %v278
    %v330 = vpack.c.b16 %v282, %v279
    %v331 = vpack.c.b16 %v283, %v280
    %380 = vmatpush.bf16.msra.mxu0 %v305
    %381 = vmatpush.bf16.msra.mxu0 %v302
    %382 = vmatpush.bf16.msra.mxu0 %v299
    %383 = vmatpush.bf16.msra.mxu0 %v296
    %384 = vmatpush.bf16.msra.mxu0 %v293
    %385 = vmatpush.bf16.msra.mxu0 %v290
    %386 = vmatpush.bf16.msra.mxu0 %v287
    %387 = vmatpush.bf16.msra.mxu0 %v284
    %388 = vmatmul.bf16.gmra.mxu0 %v120
    %v389 = vpop.f32.mrf.mxu0
    %v390 = vadd.f32 %v112, %v389
    %v391 = vpop.f32.mrf.mxu0
    %392 = vdwg.mxu0
    %393 = vmatpush.bf16.msra.mxu0 %v329
    %394 = vmatpush.bf16.msra.mxu0 %v326
    %395 = vmatpush.bf16.msra.mxu0 %v323
    %396 = vmatpush.bf16.msra.mxu0 %v320
    %397 = vmatpush.bf16.msra.mxu0 %v317
    %398 = vmatpush.bf16.msra.mxu0 %v314
    %399 = vmatpush.bf16.msra.mxu0 %v311
    %400 = vmatpush.bf16.msra.mxu0 %v308
    %401 = vmatmul.bf16.gmra.mxu0 %v121
    %v402 = vpop.f32.mrf.mxu0
    %v403 = vadd.f32 %v390, %v402
    %v404 = vpop.f32.mrf.mxu0
    %405 = vdwg.mxu0
    %406 = vmatpush.bf16.msra.mxu0 %v306
    %407 = vmatpush.bf16.msra.mxu0 %v303
    %408 = vmatpush.bf16.msra.mxu0 %v300
    %409 = vmatpush.bf16.msra.mxu0 %v297
    %410 = vmatpush.bf16.msra.mxu0 %v294
    %411 = vmatpush.bf16.msra.mxu0 %v291
    %412 = vmatpush.bf16.msra.mxu0 %v288
    %413 = vmatpush.bf16.msra.mxu0 %v285
    %414 = vmatmul.bf16.gmra.mxu0 %v120
    %v415 = vpop.f32.mrf.mxu0
    %v416 = vadd.f32 %v113, %v415
    %v417 = vpop.f32.mrf.mxu0
    %418 = vdwg.mxu0
    %419 = vmatpush.bf16.msra.mxu0 %v330
    %420 = vmatpush.bf16.msra.mxu0 %v327
    %421 = vmatpush.bf16.msra.mxu0 %v324
    %422 = vmatpush.bf16.msra.mxu0 %v321
    %423 = vmatpush.bf16.msra.mxu0 %v318
    %424 = vmatpush.bf16.msra.mxu0 %v315
    %425 = vmatpush.bf16.msra.mxu0 %v312
    %426 = vmatpush.bf16.msra.mxu0 %v309
    %427 = vmatmul.bf16.gmra.mxu0 %v121
    %v428 = vpop.f32.mrf.mxu0
    %v429 = vadd.f32 %v416, %v428
    %v430 = vpop.f32.mrf.mxu0
    %431 = vdwg.mxu0
    %432 = vmatpush.bf16.msra.mxu0 %v307
    %433 = vmatpush.bf16.msra.mxu0 %v304
    %434 = vmatpush.bf16.msra.mxu0 %v301
    %435 = vmatpush.bf16.msra.mxu0 %v298
    %436 = vmatpush.bf16.msra.mxu0 %v295
    %437 = vmatpush.bf16.msra.mxu0 %v292
    %438 = vmatpush.bf16.msra.mxu0 %v289
    %439 = vmatpush.bf16.msra.mxu0 %v286
    %440 = vmatmul.bf16.gmra.mxu0 %v120
    %v441 = vpop.f32.mrf.mxu0
    %v442 = vadd.f32 %v114, %v441
    %v443 = vpop.f32.mrf.mxu0
    %444 = vdwg.mxu0
    %445 = vmatpush.bf16.msra.mxu0 %v331
    %446 = vmatpush.bf16.msra.mxu0 %v328
    %447 = vmatpush.bf16.msra.mxu0 %v325
    %448 = vmatpush.bf16.msra.mxu0 %v322
    %449 = vmatpush.bf16.msra.mxu0 %v319
    %450 = vmatpush.bf16.msra.mxu0 %v316
    %451 = vmatpush.bf16.msra.mxu0 %v313
    %452 = vmatpush.bf16.msra.mxu0 %v310
    %453 = vmatmul.bf16.gmra.mxu0 %v121
    %v454 = vpop.f32.mrf.mxu0
    %v455 = vadd.f32 %v442, %v454
    %v456 = vpop.f32.mrf.mxu0
    %457 = vdwg.mxu0
    %v458 = vmax.f32 %v403, 0.0
    %v459 = vmax.f32 %v429, 0.0
    %v460 = vmax.f32 %v455, 0.0
    %v461 = vpack.c.bf16 %v458, %v458
    %v462 = vpack.c.bf16 %v459, %v459
    %v463 = vpack.c.bf16 %v460, %v460
    %v464 = vld [vmem:[%s3] sm:$0xff]
    %v465 = vld [vmem:[%s3 + $0x8] sm:$0xf]
    %v466 = vld [vmem:[%s3 + $0xc] sm:$0xff]
    %v467 = vld [vmem:[%s3 + $0x14] sm:$0xf]
    %v468 = vld [vmem:[%s3 + $0x18] sm:$0xff]
    %v469 = vld [vmem:[%s3 + $0x20] sm:$0xf]
    %v470 = vld [vmem:[%s3 + $0x24] sm:$0xff]
    %v471 = vld [vmem:[%s3 + $0x2c] sm:$0xf]
    %v472 = vld [vmem:[%s3 + $0x30] sm:$0xff]
    %v473 = vld [vmem:[%s3 + $0x38] sm:$0xf]
    %v474 = vld [vmem:[%s3 + $0x3c] sm:$0xff]
    %v475 = vld [vmem:[%s3 + $0x44] sm:$0xf]
    %v476 = vld [vmem:[%s3 + $0x48] sm:$0xff]
    %v477 = vld [vmem:[%s3 + $0x50] sm:$0xf]
    %v478 = vld [vmem:[%s3 + $0x54] sm:$0xff]
    %v479 = vld [vmem:[%s3 + $0x5c] sm:$0xf]
    %v480 = vld [vmem:[%s3 + $0x60] sm:$0xff]
    %v481 = vld [vmem:[%s3 + $0x68] sm:$0xf]
    %v482 = vld [vmem:[%s3 + $0x6c] sm:$0xff]
    %v483 = vld [vmem:[%s3 + $0x74] sm:$0xf]
    %v484 = vld [vmem:[%s3 + $0x78] sm:$0xff]
    %v485 = vld [vmem:[%s3 + $0x80] sm:$0xf]
    %v486 = vld [vmem:[%s3 + $0x84] sm:$0xff]
    %v487 = vld [vmem:[%s3 + $0x8c] sm:$0xf]
    %v488 = vld [vmem:[%s3 + $0x90] sm:$0xff]
    %v489 = vld [vmem:[%s3 + $0x98] sm:$0xf]
    %v490 = vld [vmem:[%s3 + $0x9c] sm:$0xff]
    %v491 = vld [vmem:[%s3 + $0xa4] sm:$0xf]
    %v492 = vld [vmem:[%s3 + $0xa8] sm:$0xff]
    %v493 = vld [vmem:[%s3 + $0xb0] sm:$0xf]
    %v494 = vld [vmem:[%s3 + $0xb4] sm:$0xff]
    %v495 = vld [vmem:[%s3 + $0xbc] sm:$0xf]
    %v496 = vld [vmem:[%s3 + $0xc0] sm:$0xff]
    %v497 = vld [vmem:[%s3 + $0xc8] sm:$0xf]
    %v498 = vld [vmem:[%s3 + $0xcc] sm:$0xff]
    %v499 = vld [vmem:[%s3 + $0xd4] sm:$0xf]
    %v500 = vld [vmem:[%s3 + $0xd8] sm:$0xff]
    %v501 = vld [vmem:[%s3 + $0xe0] sm:$0xf]
    %v502 = vld [vmem:[%s3 + $0xe4] sm:$0xff]
    %v503 = vld [vmem:[%s3 + $0xec] sm:$0xf]
    %v504 = vld [vmem:[%s3 + $0xf0] sm:$0xff]
    %v505 = vld [vmem:[%s3 + $0xf8] sm:$0xf]
    %v506 = vld [vmem:[%s3 + $0xfc] sm:$0xff]
    %v507 = vld [vmem:[%s3 + $0x104] sm:$0xf]
    %v508 = vld [vmem:[%s3 + $0x108] sm:$0xff]
    %v509 = vld [vmem:[%s3 + $0x110] sm:$0xf]
    %v510 = vld [vmem:[%s3 + $0x114] sm:$0xff]
    %v511 = vld [vmem:[%s3 + $0x11c] sm:$0xf]
    %v512 = vld [vmem:[%s3 + $0x120] sm:$0xff]
    %v513 = vld [vmem:[%s3 + $0x128] sm:$0xf]
    %v514 = vld [vmem:[%s3 + $0x12c] sm:$0xff]
    %v515 = vld [vmem:[%s3 + $0x134] sm:$0xf]
    %v516 = vld [vmem:[%s3 + $0x138] sm:$0xff]
    %v517 = vld [vmem:[%s3 + $0x140] sm:$0xf]
    %v518 = vld [vmem:[%s3 + $0x144] sm:$0xff]
    %v519 = vld [vmem:[%s3 + $0x14c] sm:$0xf]
    %v520 = vld [vmem:[%s3 + $0x150] sm:$0xff]
    %v521 = vld [vmem:[%s3 + $0x158] sm:$0xf]
    %v522 = vld [vmem:[%s3 + $0x15c] sm:$0xff]
    %v523 = vld [vmem:[%s3 + $0x164] sm:$0xf]
    %v524 = vld [vmem:[%s3 + $0x168] sm:$0xff]
    %v525 = vld [vmem:[%s3 + $0x170] sm:$0xf]
    %v526 = vld [vmem:[%s3 + $0x174] sm:$0xff]
    %v527 = vld [vmem:[%s3 + $0x17c] sm:$0xf]
    %v528 = vld [vmem:[%s3 + $0x180] sm:$0xff]
    %v529 = vld [vmem:[%s3 + $0x188] sm:$0xf]
    %v530 = vld [vmem:[%s3 + $0x18c] sm:$0xff]
    %v531 = vld [vmem:[%s3 + $0x194] sm:$0xf]
    %v532 = vld [vmem:[%s3 + $0x198] sm:$0xff]
    %v533 = vld [vmem:[%s3 + $0x1a0] sm:$0xf]
    %v534 = vld [vmem:[%s3 + $0x1a4] sm:$0xff]
    %v535 = vld [vmem:[%s3 + $0x1ac] sm:$0xf]
    %v536 = vld [vmem:[%s3 + $0x1b0] sm:$0xff]
    %v537 = vld [vmem:[%s3 + $0x1b8] sm:$0xf]
    %v538 = vld [vmem:[%s3 + $0x1bc] sm:$0xff]
    %v539 = vld [vmem:[%s3 + $0x1c4] sm:$0xf]
    %v540 = vld [vmem:[%s3 + $0x1c8] sm:$0xff]
    %v541 = vld [vmem:[%s3 + $0x1d0] sm:$0xf]
    %v542 = vld [vmem:[%s3 + $0x1d4] sm:$0xff]
    %v543 = vld [vmem:[%s3 + $0x1dc] sm:$0xf]
    %v544 = vld [vmem:[%s3 + $0x1e0] sm:$0xff]
    %v545 = vld [vmem:[%s3 + $0x1e8] sm:$0xf]
    %v546 = vld [vmem:[%s3 + $0x1ec] sm:$0xff]
    %v547 = vld [vmem:[%s3 + $0x1f4] sm:$0xf]
    %v548 = vld [vmem:[%s3 + $0x1f8] sm:$0xff]
    %v549 = vld [vmem:[%s3 + $0x200] sm:$0xf]
    %v550 = vld [vmem:[%s3 + $0x204] sm:$0xff]
    %v551 = vld [vmem:[%s3 + $0x20c] sm:$0xf]
    %v552 = vld [vmem:[%s3 + $0x210] sm:$0xff]
    %v553 = vld [vmem:[%s3 + $0x218] sm:$0xf]
    %v554 = vld [vmem:[%s3 + $0x21c] sm:$0xff]
    %v555 = vld [vmem:[%s3 + $0x224] sm:$0xf]
    %v556 = vld [vmem:[%s3 + $0x228] sm:$0xff]
    %v557 = vld [vmem:[%s3 + $0x230] sm:$0xf]
    %v558 = vld [vmem:[%s3 + $0x234] sm:$0xff]
    %v559 = vld [vmem:[%s3 + $0x23c] sm:$0xf]
    %v560 = vld [vmem:[%s4] sm:$0x7]
    %v562 = vperm.slane %v560, 0
    %v563 = vperm.slane %v560, 1
    %v564 = vperm.slane %v560, 2
    %v664 = vunpack.c.l.b16 %v464
    %v665 = vunpack.c.h.b16 %v464
    %v666 = vunpack.c.l.b16 %v465
    %v667 = vunpack.c.l.b16 %v466
    %v668 = vunpack.c.h.b16 %v466
    %v669 = vunpack.c.l.b16 %v467
    %v670 = vunpack.c.l.b16 %v468
    %v671 = vunpack.c.h.b16 %v468
    %v672 = vunpack.c.l.b16 %v469
    %v673 = vunpack.c.l.b16 %v470
    %v674 = vunpack.c.h.b16 %v470
    %v675 = vunpack.c.l.b16 %v471
    %v676 = vunpack.c.l.b16 %v472
    %v677 = vunpack.c.h.b16 %v472
    %v678 = vunpack.c.l.b16 %v473
    %v679 = vunpack.c.l.b16 %v474
    %v680 = vunpack.c.h.b16 %v474
    %v681 = vunpack.c.l.b16 %v475
    %v682 = vunpack.c.l.b16 %v476
    %v683 = vunpack.c.h.b16 %v476
    %v684 = vunpack.c.l.b16 %v477
    %v685 = vunpack.c.l.b16 %v478
    %v686 = vunpack.c.h.b16 %v478
    %v687 = vunpack.c.l.b16 %v479
    %v688 = vunpack.c.l.b16 %v480
    %v689 = vunpack.c.h.b16 %v480
    %v690 = vunpack.c.l.b16 %v481
    %v691 = vunpack.c.l.b16 %v482
    %v692 = vunpack.c.h.b16 %v482
    %v693 = vunpack.c.l.b16 %v483
    %v694 = vunpack.c.l.b16 %v484
    %v695 = vunpack.c.h.b16 %v484
    %v696 = vunpack.c.l.b16 %v485
    %v697 = vunpack.c.l.b16 %v486
    %v698 = vunpack.c.h.b16 %v486
    %v699 = vunpack.c.l.b16 %v487
    %v700 = vunpack.c.l.b16 %v488
    %v701 = vunpack.c.h.b16 %v488
    %v702 = vunpack.c.l.b16 %v489
    %v703 = vunpack.c.l.b16 %v490
    %v704 = vunpack.c.h.b16 %v490
    %v705 = vunpack.c.l.b16 %v491
    %v706 = vunpack.c.l.b16 %v492
    %v707 = vunpack.c.h.b16 %v492
    %v708 = vunpack.c.l.b16 %v493
    %v709 = vunpack.c.l.b16 %v494
    %v710 = vunpack.c.h.b16 %v494
    %v711 = vunpack.c.l.b16 %v495
    %v712 = vunpack.c.l.b16 %v496
    %v713 = vunpack.c.h.b16 %v496
    %v714 = vunpack.c.l.b16 %v497
    %v715 = vunpack.c.l.b16 %v498
    %v716 = vunpack.c.h.b16 %v498
    %v717 = vunpack.c.l.b16 %v499
    %v718 = vunpack.c.l.b16 %v500
    %v719 = vunpack.c.h.b16 %v500
    %v720 = vunpack.c.l.b16 %v501
    %v721 = vunpack.c.l.b16 %v502
    %v722 = vunpack.c.h.b16 %v502
    %v723 = vunpack.c.l.b16 %v503
    %v724 = vunpack.c.l.b16 %v504
    %v725 = vunpack.c.h.b16 %v504
    %v726 = vunpack.c.l.b16 %v505
    %v727 = vunpack.c.l.b16 %v506
    %v728 = vunpack.c.h.b16 %v506
    %v729 = vunpack.c.l.b16 %v507
    %v730 = vunpack.c.l.b16 %v508
    %v731 = vunpack.c.h.b16 %v508
    %v732 = vunpack.c.l.b16 %v509
    %v733 = vunpack.c.l.b16 %v510
    %v734 = vunpack.c.h.b16 %v510
    %v735 = vunpack.c.l.b16 %v511
    %v736 = vunpack.c.l.b16 %v512
    %v737 = vunpack.c.h.b16 %v512
    %v738 = vunpack.c.l.b16 %v513
    %v739 = vunpack.c.l.b16 %v514
    %v740 = vunpack.c.h.b16 %v514
    %v741 = vunpack.c.l.b16 %v515
    %v742 = vunpack.c.l.b16 %v516
    %v743 = vunpack.c.h.b16 %v516
    %v744 = vunpack.c.l.b16 %v517
    %v745 = vunpack.c.l.b16 %v518
    %v746 = vunpack.c.h.b16 %v518
    %v747 = vunpack.c.l.b16 %v519
    %v748 = vunpack.c.l.b16 %v520
    %v749 = vunpack.c.h.b16 %v520
    %v750 = vunpack.c.l.b16 %v521
    %v751 = vunpack.c.l.b16 %v522
    %v752 = vunpack.c.h.b16 %v522
    %v753 = vunpack.c.l.b16 %v523
    %v754 = vunpack.c.l.b16 %v524
    %v755 = vunpack.c.h.b16 %v524
    %v756 = vunpack.c.l.b16 %v525
    %v757 = vunpack.c.l.b16 %v526
    %v758 = vunpack.c.h.b16 %v526
    %v759 = vunpack.c.l.b16 %v527
    %v760 = vunpack.c.l.b16 %v528
    %v761 = vunpack.c.h.b16 %v528
    %v762 = vunpack.c.l.b16 %v529
    %v763 = vunpack.c.l.b16 %v530
    %v764 = vunpack.c.h.b16 %v530
    %v765 = vunpack.c.l.b16 %v531
    %v766 = vunpack.c.l.b16 %v532
    %v767 = vunpack.c.h.b16 %v532
    %v768 = vunpack.c.l.b16 %v533
    %v769 = vunpack.c.l.b16 %v534
    %v770 = vunpack.c.h.b16 %v534
    %v771 = vunpack.c.l.b16 %v535
    %v772 = vunpack.c.l.b16 %v536
    %v773 = vunpack.c.h.b16 %v536
    %v774 = vunpack.c.l.b16 %v537
    %v775 = vunpack.c.l.b16 %v538
    %v776 = vunpack.c.h.b16 %v538
    %v777 = vunpack.c.l.b16 %v539
    %v778 = vunpack.c.l.b16 %v540
    %v779 = vunpack.c.h.b16 %v540
    %v780 = vunpack.c.l.b16 %v541
    %v781 = vunpack.c.l.b16 %v542
    %v782 = vunpack.c.h.b16 %v542
    %v783 = vunpack.c.l.b16 %v543
    %v784 = vunpack.c.l.b16 %v544
    %v785 = vunpack.c.h.b16 %v544
    %v786 = vunpack.c.l.b16 %v545
    %v787 = vunpack.c.l.b16 %v546
    %v788 = vunpack.c.h.b16 %v546
    %v789 = vunpack.c.l.b16 %v547
    %v790 = vunpack.c.l.b16 %v548
    %v791 = vunpack.c.h.b16 %v548
    %v792 = vunpack.c.l.b16 %v549
    %v793 = vunpack.c.l.b16 %v550
    %v794 = vunpack.c.h.b16 %v550
    %v795 = vunpack.c.l.b16 %v551
    %v796 = vunpack.c.l.b16 %v552
    %v797 = vunpack.c.h.b16 %v552
    %v798 = vunpack.c.l.b16 %v553
    %v799 = vunpack.c.l.b16 %v554
    %v800 = vunpack.c.h.b16 %v554
    %v801 = vunpack.c.l.b16 %v555
    %v802 = vunpack.c.l.b16 %v556
    %v803 = vunpack.c.h.b16 %v556
    %v804 = vunpack.c.l.b16 %v557
    %v805 = vunpack.c.l.b16 %v558
    %v806 = vunpack.c.h.b16 %v558
    %v807 = vunpack.c.l.b16 %v559
    %v808 = vpack.c.b16 %v667, %v664
    %v809 = vpack.c.b16 %v668, %v665
    %v810 = vpack.c.b16 %v669, %v666
    %v811 = vpack.c.b16 %v673, %v670
    %v812 = vpack.c.b16 %v674, %v671
    %v813 = vpack.c.b16 %v675, %v672
    %v814 = vpack.c.b16 %v679, %v676
    %v815 = vpack.c.b16 %v680, %v677
    %v816 = vpack.c.b16 %v681, %v678
    %v817 = vpack.c.b16 %v685, %v682
    %v818 = vpack.c.b16 %v686, %v683
    %v819 = vpack.c.b16 %v687, %v684
    %v820 = vpack.c.b16 %v691, %v688
    %v821 = vpack.c.b16 %v692, %v689
    %v822 = vpack.c.b16 %v693, %v690
    %v823 = vpack.c.b16 %v697, %v694
    %v824 = vpack.c.b16 %v698, %v695
    %v825 = vpack.c.b16 %v699, %v696
    %v826 = vpack.c.b16 %v703, %v700
    %v827 = vpack.c.b16 %v704, %v701
    %v828 = vpack.c.b16 %v705, %v702
    %v829 = vpack.c.b16 %v709, %v706
    %v830 = vpack.c.b16 %v710, %v707
    %v831 = vpack.c.b16 %v711, %v708
    %v832 = vpack.c.b16 %v715, %v712
    %v833 = vpack.c.b16 %v716, %v713
    %v834 = vpack.c.b16 %v717, %v714
    %v835 = vpack.c.b16 %v721, %v718
    %v836 = vpack.c.b16 %v722, %v719
    %v837 = vpack.c.b16 %v723, %v720
    %v838 = vpack.c.b16 %v727, %v724
    %v839 = vpack.c.b16 %v728, %v725
    %v840 = vpack.c.b16 %v729, %v726
    %v841 = vpack.c.b16 %v733, %v730
    %v842 = vpack.c.b16 %v734, %v731
    %v843 = vpack.c.b16 %v735, %v732
    %v844 = vpack.c.b16 %v739, %v736
    %v845 = vpack.c.b16 %v740, %v737
    %v846 = vpack.c.b16 %v741, %v738
    %v847 = vpack.c.b16 %v745, %v742
    %v848 = vpack.c.b16 %v746, %v743
    %v849 = vpack.c.b16 %v747, %v744
    %v850 = vpack.c.b16 %v751, %v748
    %v851 = vpack.c.b16 %v752, %v749
    %v852 = vpack.c.b16 %v753, %v750
    %v853 = vpack.c.b16 %v757, %v754
    %v854 = vpack.c.b16 %v758, %v755
    %v855 = vpack.c.b16 %v759, %v756
    %v856 = vpack.c.b16 %v763, %v760
    %v857 = vpack.c.b16 %v764, %v761
    %v858 = vpack.c.b16 %v765, %v762
    %v859 = vpack.c.b16 %v769, %v766
    %v860 = vpack.c.b16 %v770, %v767
    %v861 = vpack.c.b16 %v771, %v768
    %v862 = vpack.c.b16 %v775, %v772
    %v863 = vpack.c.b16 %v776, %v773
    %v864 = vpack.c.b16 %v777, %v774
    %v865 = vpack.c.b16 %v781, %v778
    %v866 = vpack.c.b16 %v782, %v779
    %v867 = vpack.c.b16 %v783, %v780
    %v868 = vpack.c.b16 %v787, %v784
    %v869 = vpack.c.b16 %v788, %v785
    %v870 = vpack.c.b16 %v789, %v786
    %v871 = vpack.c.b16 %v793, %v790
    %v872 = vpack.c.b16 %v794, %v791
    %v873 = vpack.c.b16 %v795, %v792
    %v874 = vpack.c.b16 %v799, %v796
    %v875 = vpack.c.b16 %v800, %v797
    %v876 = vpack.c.b16 %v801, %v798
    %v877 = vpack.c.b16 %v805, %v802
    %v878 = vpack.c.b16 %v806, %v803
    %v879 = vpack.c.b16 %v807, %v804
    %952 = vmatpush.bf16.msra.mxu0 %v829
    %953 = vmatpush.bf16.msra.mxu0 %v826
    %954 = vmatpush.bf16.msra.mxu0 %v823
    %955 = vmatpush.bf16.msra.mxu0 %v820
    %956 = vmatpush.bf16.msra.mxu0 %v817
    %957 = vmatpush.bf16.msra.mxu0 %v814
    %958 = vmatpush.bf16.msra.mxu0 %v811
    %959 = vmatpush.bf16.msra.mxu0 %v808
    %960 = vmatmul.bf16.gmra.mxu0 %v461
    %v961 = vpop.f32.mrf.mxu0
    %v962 = vadd.f32 %v562, %v961
    %v963 = vpop.f32.mrf.mxu0
    %964 = vdwg.mxu0
    %965 = vmatpush.bf16.msra.mxu0 %v853
    %966 = vmatpush.bf16.msra.mxu0 %v850
    %967 = vmatpush.bf16.msra.mxu0 %v847
    %968 = vmatpush.bf16.msra.mxu0 %v844
    %969 = vmatpush.bf16.msra.mxu0 %v841
    %970 = vmatpush.bf16.msra.mxu0 %v838
    %971 = vmatpush.bf16.msra.mxu0 %v835
    %972 = vmatpush.bf16.msra.mxu0 %v832
    %973 = vmatmul.bf16.gmra.mxu0 %v462
    %v974 = vpop.f32.mrf.mxu0
    %v975 = vadd.f32 %v962, %v974
    %v976 = vpop.f32.mrf.mxu0
    %977 = vdwg.mxu0
    %978 = vmatpush.bf16.msra.mxu0 %v877
    %979 = vmatpush.bf16.msra.mxu0 %v874
    %980 = vmatpush.bf16.msra.mxu0 %v871
    %981 = vmatpush.bf16.msra.mxu0 %v868
    %982 = vmatpush.bf16.msra.mxu0 %v865
    %983 = vmatpush.bf16.msra.mxu0 %v862
    %984 = vmatpush.bf16.msra.mxu0 %v859
    %985 = vmatpush.bf16.msra.mxu0 %v856
    %986 = vmatmul.bf16.gmra.mxu0 %v463
    %v987 = vpop.f32.mrf.mxu0
    %v988 = vadd.f32 %v975, %v987
    %v989 = vpop.f32.mrf.mxu0
    %990 = vdwg.mxu0
    %991 = vmatpush.bf16.msra.mxu0 %v830
    %992 = vmatpush.bf16.msra.mxu0 %v827
    %993 = vmatpush.bf16.msra.mxu0 %v824
    %994 = vmatpush.bf16.msra.mxu0 %v821
    %995 = vmatpush.bf16.msra.mxu0 %v818
    %996 = vmatpush.bf16.msra.mxu0 %v815
    %997 = vmatpush.bf16.msra.mxu0 %v812
    %998 = vmatpush.bf16.msra.mxu0 %v809
    %999 = vmatmul.bf16.gmra.mxu0 %v461
    %v1000 = vpop.f32.mrf.mxu0
    %v1001 = vadd.f32 %v563, %v1000
    %v1002 = vpop.f32.mrf.mxu0
    %1003 = vdwg.mxu0
    %1004 = vmatpush.bf16.msra.mxu0 %v854
    %1005 = vmatpush.bf16.msra.mxu0 %v851
    %1006 = vmatpush.bf16.msra.mxu0 %v848
    %1007 = vmatpush.bf16.msra.mxu0 %v845
    %1008 = vmatpush.bf16.msra.mxu0 %v842
    %1009 = vmatpush.bf16.msra.mxu0 %v839
    %1010 = vmatpush.bf16.msra.mxu0 %v836
    %1011 = vmatpush.bf16.msra.mxu0 %v833
    %1012 = vmatmul.bf16.gmra.mxu0 %v462
    %v1013 = vpop.f32.mrf.mxu0
    %v1014 = vadd.f32 %v1001, %v1013
    %v1015 = vpop.f32.mrf.mxu0
    %1016 = vdwg.mxu0
    %1017 = vmatpush.bf16.msra.mxu0 %v878
    %1018 = vmatpush.bf16.msra.mxu0 %v875
    %1019 = vmatpush.bf16.msra.mxu0 %v872
    %1020 = vmatpush.bf16.msra.mxu0 %v869
    %1021 = vmatpush.bf16.msra.mxu0 %v866
    %1022 = vmatpush.bf16.msra.mxu0 %v863
    %1023 = vmatpush.bf16.msra.mxu0 %v860
    %1024 = vmatpush.bf16.msra.mxu0 %v857
    %1025 = vmatmul.bf16.gmra.mxu0 %v463
    %v1026 = vpop.f32.mrf.mxu0
    %v1027 = vadd.f32 %v1014, %v1026
    %v1028 = vpop.f32.mrf.mxu0
    %1029 = vdwg.mxu0
    %1030 = vmatpush.bf16.msra.mxu0 %v831
    %1031 = vmatpush.bf16.msra.mxu0 %v828
    %1032 = vmatpush.bf16.msra.mxu0 %v825
    %1033 = vmatpush.bf16.msra.mxu0 %v822
    %1034 = vmatpush.bf16.msra.mxu0 %v819
    %1035 = vmatpush.bf16.msra.mxu0 %v816
    %1036 = vmatpush.bf16.msra.mxu0 %v813
    %1037 = vmatpush.bf16.msra.mxu0 %v810
    %1038 = vmatmul.bf16.gmra.mxu0 %v461
    %v1039 = vpop.f32.mrf.mxu0
    %v1040 = vadd.f32 %v564, %v1039
    %v1041 = vpop.f32.mrf.mxu0
    %1042 = vdwg.mxu0
    %1043 = vmatpush.bf16.msra.mxu0 %v855
    %1044 = vmatpush.bf16.msra.mxu0 %v852
    %1045 = vmatpush.bf16.msra.mxu0 %v849
    %1046 = vmatpush.bf16.msra.mxu0 %v846
    %1047 = vmatpush.bf16.msra.mxu0 %v843
    %1048 = vmatpush.bf16.msra.mxu0 %v840
    %1049 = vmatpush.bf16.msra.mxu0 %v837
    %1050 = vmatpush.bf16.msra.mxu0 %v834
    %1051 = vmatmul.bf16.gmra.mxu0 %v462
    %v1052 = vpop.f32.mrf.mxu0
    %v1053 = vadd.f32 %v1040, %v1052
    %v1054 = vpop.f32.mrf.mxu0
    %1055 = vdwg.mxu0
    %1056 = vmatpush.bf16.msra.mxu0 %v879
    %1057 = vmatpush.bf16.msra.mxu0 %v876
    %1058 = vmatpush.bf16.msra.mxu0 %v873
    %1059 = vmatpush.bf16.msra.mxu0 %v870
    %1060 = vmatpush.bf16.msra.mxu0 %v867
    %1061 = vmatpush.bf16.msra.mxu0 %v864
    %1062 = vmatpush.bf16.msra.mxu0 %v861
    %1063 = vmatpush.bf16.msra.mxu0 %v858
    %1064 = vmatmul.bf16.gmra.mxu0 %v463
    %v1065 = vpop.f32.mrf.mxu0
    %v1066 = vadd.f32 %v1053, %v1065
    %v1067 = vpop.f32.mrf.mxu0
    %1068 = vdwg.mxu0
    %v1069 = vmax.f32 %v988, 0.0
    %v1070 = vmax.f32 %v1027, 0.0
    %v1071 = vmax.f32 %v1066, 0.0
    %v1072 = vpack.c.bf16 %v1069, %v1069
    %v1073 = vpack.c.bf16 %v1070, %v1070
    %v1074 = vpack.c.bf16 %v1071, %v1071
    %v1075 = vld [vmem:[%s5] sm:$0xff]
    %v1076 = vld [vmem:[%s5 + $0x8] sm:$0xff]
    %v1077 = vld [vmem:[%s5 + $0x10] sm:$0xff]
    %v1078 = vld [vmem:[%s5 + $0x18] sm:$0xff]
    %v1079 = vld [vmem:[%s5 + $0x20] sm:$0xff]
    %v1080 = vld [vmem:[%s5 + $0x28] sm:$0xff]
    %v1081 = vld [vmem:[%s5 + $0x30] sm:$0xff]
    %v1082 = vld [vmem:[%s5 + $0x38] sm:$0xff]
    %v1083 = vld [vmem:[%s5 + $0x40] sm:$0xff]
    %v1084 = vld [vmem:[%s5 + $0x48] sm:$0xff]
    %v1085 = vld [vmem:[%s5 + $0x50] sm:$0xff]
    %v1086 = vld [vmem:[%s5 + $0x58] sm:$0xff]
    %v1087 = vld [vmem:[%s5 + $0x60] sm:$0xff]
    %v1088 = vld [vmem:[%s5 + $0x68] sm:$0xff]
    %v1089 = vld [vmem:[%s5 + $0x70] sm:$0xff]
    %v1090 = vld [vmem:[%s5 + $0x78] sm:$0xff]
    %v1091 = vld [vmem:[%s5 + $0x80] sm:$0xff]
    %v1092 = vld [vmem:[%s5 + $0x88] sm:$0xff]
    %v1093 = vld [vmem:[%s5 + $0x90] sm:$0xff]
    %v1094 = vld [vmem:[%s5 + $0x98] sm:$0xff]
    %v1095 = vld [vmem:[%s5 + $0xa0] sm:$0xff]
    %v1096 = vld [vmem:[%s5 + $0xa8] sm:$0xff]
    %v1097 = vld [vmem:[%s5 + $0xb0] sm:$0xff]
    %v1098 = vld [vmem:[%s5 + $0xb8] sm:$0xff]
    %v1099 = vld [vmem:[%s5 + $0xc0] sm:$0xff]
    %v1100 = vld [vmem:[%s5 + $0xc8] sm:$0xff]
    %v1101 = vld [vmem:[%s5 + $0xd0] sm:$0xff]
    %v1102 = vld [vmem:[%s5 + $0xd8] sm:$0xff]
    %v1103 = vld [vmem:[%s5 + $0xe0] sm:$0xff]
    %v1104 = vld [vmem:[%s5 + $0xe8] sm:$0xff]
    %v1105 = vld [vmem:[%s5 + $0xf0] sm:$0xff]
    %v1106 = vld [vmem:[%s5 + $0xf8] sm:$0xff]
    %v1107 = vld [vmem:[%s5 + $0x100] sm:$0xff]
    %v1108 = vld [vmem:[%s5 + $0x108] sm:$0xff]
    %v1109 = vld [vmem:[%s5 + $0x110] sm:$0xff]
    %v1110 = vld [vmem:[%s5 + $0x118] sm:$0xff]
    %v1111 = vld [vmem:[%s5 + $0x120] sm:$0xff]
    %v1112 = vld [vmem:[%s5 + $0x128] sm:$0xff]
    %v1113 = vld [vmem:[%s5 + $0x130] sm:$0xff]
    %v1114 = vld [vmem:[%s5 + $0x138] sm:$0xff]
    %v1115 = vld [vmem:[%s5 + $0x140] sm:$0xff]
    %v1116 = vld [vmem:[%s5 + $0x148] sm:$0xff]
    %v1117 = vld [vmem:[%s5 + $0x150] sm:$0xff]
    %v1118 = vld [vmem:[%s5 + $0x158] sm:$0xff]
    %v1119 = vld [vmem:[%s5 + $0x160] sm:$0xff]
    %v1120 = vld [vmem:[%s5 + $0x168] sm:$0xff]
    %v1121 = vld [vmem:[%s5 + $0x170] sm:$0xff]
    %v1122 = vld [vmem:[%s5 + $0x178] sm:$0xff]
    %v1123 = vld [vmem:[%s6] sm:$0x3]
    %v1125 = vperm.slane %v1123, 0
    %v1126 = vperm.slane %v1123, 1
    %v1177 = vunpack.c.l.b16 %v1075
    %v1178 = vunpack.c.h.b16 %v1075
    %v1179 = vunpack.c.l.b16 %v1076
    %v1180 = vunpack.c.h.b16 %v1076
    %v1181 = vunpack.c.l.b16 %v1077
    %v1182 = vunpack.c.h.b16 %v1077
    %v1183 = vunpack.c.l.b16 %v1078
    %v1184 = vunpack.c.h.b16 %v1078
    %v1185 = vunpack.c.l.b16 %v1079
    %v1186 = vunpack.c.h.b16 %v1079
    %v1187 = vunpack.c.l.b16 %v1080
    %v1188 = vunpack.c.h.b16 %v1080
    %v1189 = vunpack.c.l.b16 %v1081
    %v1190 = vunpack.c.h.b16 %v1081
    %v1191 = vunpack.c.l.b16 %v1082
    %v1192 = vunpack.c.h.b16 %v1082
    %v1193 = vunpack.c.l.b16 %v1083
    %v1194 = vunpack.c.h.b16 %v1083
    %v1195 = vunpack.c.l.b16 %v1084
    %v1196 = vunpack.c.h.b16 %v1084
    %v1197 = vunpack.c.l.b16 %v1085
    %v1198 = vunpack.c.h.b16 %v1085
    %v1199 = vunpack.c.l.b16 %v1086
    %v1200 = vunpack.c.h.b16 %v1086
    %v1201 = vunpack.c.l.b16 %v1087
    %v1202 = vunpack.c.h.b16 %v1087
    %v1203 = vunpack.c.l.b16 %v1088
    %v1204 = vunpack.c.h.b16 %v1088
    %v1205 = vunpack.c.l.b16 %v1089
    %v1206 = vunpack.c.h.b16 %v1089
    %v1207 = vunpack.c.l.b16 %v1090
    %v1208 = vunpack.c.h.b16 %v1090
    %v1209 = vunpack.c.l.b16 %v1091
    %v1210 = vunpack.c.h.b16 %v1091
    %v1211 = vunpack.c.l.b16 %v1092
    %v1212 = vunpack.c.h.b16 %v1092
    %v1213 = vunpack.c.l.b16 %v1093
    %v1214 = vunpack.c.h.b16 %v1093
    %v1215 = vunpack.c.l.b16 %v1094
    %v1216 = vunpack.c.h.b16 %v1094
    %v1217 = vunpack.c.l.b16 %v1095
    %v1218 = vunpack.c.h.b16 %v1095
    %v1219 = vunpack.c.l.b16 %v1096
    %v1220 = vunpack.c.h.b16 %v1096
    %v1221 = vunpack.c.l.b16 %v1097
    %v1222 = vunpack.c.h.b16 %v1097
    %v1223 = vunpack.c.l.b16 %v1098
    %v1224 = vunpack.c.h.b16 %v1098
    %v1225 = vunpack.c.l.b16 %v1099
    %v1226 = vunpack.c.h.b16 %v1099
    %v1227 = vunpack.c.l.b16 %v1100
    %v1228 = vunpack.c.h.b16 %v1100
    %v1229 = vunpack.c.l.b16 %v1101
    %v1230 = vunpack.c.h.b16 %v1101
    %v1231 = vunpack.c.l.b16 %v1102
    %v1232 = vunpack.c.h.b16 %v1102
    %v1233 = vunpack.c.l.b16 %v1103
    %v1234 = vunpack.c.h.b16 %v1103
    %v1235 = vunpack.c.l.b16 %v1104
    %v1236 = vunpack.c.h.b16 %v1104
    %v1237 = vunpack.c.l.b16 %v1105
    %v1238 = vunpack.c.h.b16 %v1105
    %v1239 = vunpack.c.l.b16 %v1106
    %v1240 = vunpack.c.h.b16 %v1106
    %v1241 = vunpack.c.l.b16 %v1107
    %v1242 = vunpack.c.h.b16 %v1107
    %v1243 = vunpack.c.l.b16 %v1108
    %v1244 = vunpack.c.h.b16 %v1108
    %v1245 = vunpack.c.l.b16 %v1109
    %v1246 = vunpack.c.h.b16 %v1109
    %v1247 = vunpack.c.l.b16 %v1110
    %v1248 = vunpack.c.h.b16 %v1110
    %v1249 = vunpack.c.l.b16 %v1111
    %v1250 = vunpack.c.h.b16 %v1111
    %v1251 = vunpack.c.l.b16 %v1112
    %v1252 = vunpack.c.h.b16 %v1112
    %v1253 = vunpack.c.l.b16 %v1113
    %v1254 = vunpack.c.h.b16 %v1113
    %v1255 = vunpack.c.l.b16 %v1114
    %v1256 = vunpack.c.h.b16 %v1114
    %v1257 = vunpack.c.l.b16 %v1115
    %v1258 = vunpack.c.h.b16 %v1115
    %v1259 = vunpack.c.l.b16 %v1116
    %v1260 = vunpack.c.h.b16 %v1116
    %v1261 = vunpack.c.l.b16 %v1117
    %v1262 = vunpack.c.h.b16 %v1117
    %v1263 = vunpack.c.l.b16 %v1118
    %v1264 = vunpack.c.h.b16 %v1118
    %v1265 = vunpack.c.l.b16 %v1119
    %v1266 = vunpack.c.h.b16 %v1119
    %v1267 = vunpack.c.l.b16 %v1120
    %v1268 = vunpack.c.h.b16 %v1120
    %v1269 = vunpack.c.l.b16 %v1121
    %v1270 = vunpack.c.h.b16 %v1121
    %v1271 = vunpack.c.l.b16 %v1122
    %v1272 = vunpack.c.h.b16 %v1122
    %v1273 = vpack.c.b16 %v1179, %v1177
    %v1274 = vpack.c.b16 %v1180, %v1178
    %v1275 = vpack.c.b16 %v1183, %v1181
    %v1276 = vpack.c.b16 %v1184, %v1182
    %v1277 = vpack.c.b16 %v1187, %v1185
    %v1278 = vpack.c.b16 %v1188, %v1186
    %v1279 = vpack.c.b16 %v1191, %v1189
    %v1280 = vpack.c.b16 %v1192, %v1190
    %v1281 = vpack.c.b16 %v1195, %v1193
    %v1282 = vpack.c.b16 %v1196, %v1194
    %v1283 = vpack.c.b16 %v1199, %v1197
    %v1284 = vpack.c.b16 %v1200, %v1198
    %v1285 = vpack.c.b16 %v1203, %v1201
    %v1286 = vpack.c.b16 %v1204, %v1202
    %v1287 = vpack.c.b16 %v1207, %v1205
    %v1288 = vpack.c.b16 %v1208, %v1206
    %v1289 = vpack.c.b16 %v1211, %v1209
    %v1290 = vpack.c.b16 %v1212, %v1210
    %v1291 = vpack.c.b16 %v1215, %v1213
    %v1292 = vpack.c.b16 %v1216, %v1214
    %v1293 = vpack.c.b16 %v1219, %v1217
    %v1294 = vpack.c.b16 %v1220, %v1218
    %v1295 = vpack.c.b16 %v1223, %v1221
    %v1296 = vpack.c.b16 %v1224, %v1222
    %v1297 = vpack.c.b16 %v1227, %v1225
    %v1298 = vpack.c.b16 %v1228, %v1226
    %v1299 = vpack.c.b16 %v1231, %v1229
    %v1300 = vpack.c.b16 %v1232, %v1230
    %v1301 = vpack.c.b16 %v1235, %v1233
    %v1302 = vpack.c.b16 %v1236, %v1234
    %v1303 = vpack.c.b16 %v1239, %v1237
    %v1304 = vpack.c.b16 %v1240, %v1238
    %v1305 = vpack.c.b16 %v1243, %v1241
    %v1306 = vpack.c.b16 %v1244, %v1242
    %v1307 = vpack.c.b16 %v1247, %v1245
    %v1308 = vpack.c.b16 %v1248, %v1246
    %v1309 = vpack.c.b16 %v1251, %v1249
    %v1310 = vpack.c.b16 %v1252, %v1250
    %v1311 = vpack.c.b16 %v1255, %v1253
    %v1312 = vpack.c.b16 %v1256, %v1254
    %v1313 = vpack.c.b16 %v1259, %v1257
    %v1314 = vpack.c.b16 %v1260, %v1258
    %v1315 = vpack.c.b16 %v1263, %v1261
    %v1316 = vpack.c.b16 %v1264, %v1262
    %v1317 = vpack.c.b16 %v1267, %v1265
    %v1318 = vpack.c.b16 %v1268, %v1266
    %v1319 = vpack.c.b16 %v1271, %v1269
    %v1320 = vpack.c.b16 %v1272, %v1270
    %1369 = vmatpush.bf16.msra.mxu0 %v1287
    %1370 = vmatpush.bf16.msra.mxu0 %v1285
    %1371 = vmatpush.bf16.msra.mxu0 %v1283
    %1372 = vmatpush.bf16.msra.mxu0 %v1281
    %1373 = vmatpush.bf16.msra.mxu0 %v1279
    %1374 = vmatpush.bf16.msra.mxu0 %v1277
    %1375 = vmatpush.bf16.msra.mxu0 %v1275
    %1376 = vmatpush.bf16.msra.mxu0 %v1273
    %1377 = vmatmul.bf16.gmra.mxu0 %v1072
    %v1378 = vpop.f32.mrf.mxu0
    %v1379 = vadd.f32 %v1125, %v1378
    %v1380 = vpop.f32.mrf.mxu0
    %1381 = vdwg.mxu0
    %1382 = vmatpush.bf16.msra.mxu0 %v1303
    %1383 = vmatpush.bf16.msra.mxu0 %v1301
    %1384 = vmatpush.bf16.msra.mxu0 %v1299
    %1385 = vmatpush.bf16.msra.mxu0 %v1297
    %1386 = vmatpush.bf16.msra.mxu0 %v1295
    %1387 = vmatpush.bf16.msra.mxu0 %v1293
    %1388 = vmatpush.bf16.msra.mxu0 %v1291
    %1389 = vmatpush.bf16.msra.mxu0 %v1289
    %1390 = vmatmul.bf16.gmra.mxu0 %v1073
    %v1391 = vpop.f32.mrf.mxu0
    %v1392 = vadd.f32 %v1379, %v1391
    %v1393 = vpop.f32.mrf.mxu0
    %1394 = vdwg.mxu0
    %1395 = vmatpush.bf16.msra.mxu0 %v1319
    %1396 = vmatpush.bf16.msra.mxu0 %v1317
    %1397 = vmatpush.bf16.msra.mxu0 %v1315
    %1398 = vmatpush.bf16.msra.mxu0 %v1313
    %1399 = vmatpush.bf16.msra.mxu0 %v1311
    %1400 = vmatpush.bf16.msra.mxu0 %v1309
    %1401 = vmatpush.bf16.msra.mxu0 %v1307
    %1402 = vmatpush.bf16.msra.mxu0 %v1305
    %1403 = vmatmul.bf16.gmra.mxu0 %v1074
    %v1404 = vpop.f32.mrf.mxu0
    %v1405 = vadd.f32 %v1392, %v1404
    %v1406 = vpop.f32.mrf.mxu0
    %1407 = vdwg.mxu0
    %1408 = vmatpush.bf16.msra.mxu0 %v1288
    %1409 = vmatpush.bf16.msra.mxu0 %v1286
    %1410 = vmatpush.bf16.msra.mxu0 %v1284
    %1411 = vmatpush.bf16.msra.mxu0 %v1282
    %1412 = vmatpush.bf16.msra.mxu0 %v1280
    %1413 = vmatpush.bf16.msra.mxu0 %v1278
    %1414 = vmatpush.bf16.msra.mxu0 %v1276
    %1415 = vmatpush.bf16.msra.mxu0 %v1274
    %1416 = vmatmul.bf16.gmra.mxu0 %v1072
    %v1417 = vpop.f32.mrf.mxu0
    %v1418 = vadd.f32 %v1126, %v1417
    %v1419 = vpop.f32.mrf.mxu0
    %1420 = vdwg.mxu0
    %1421 = vmatpush.bf16.msra.mxu0 %v1304
    %1422 = vmatpush.bf16.msra.mxu0 %v1302
    %1423 = vmatpush.bf16.msra.mxu0 %v1300
    %1424 = vmatpush.bf16.msra.mxu0 %v1298
    %1425 = vmatpush.bf16.msra.mxu0 %v1296
    %1426 = vmatpush.bf16.msra.mxu0 %v1294
    %1427 = vmatpush.bf16.msra.mxu0 %v1292
    %1428 = vmatpush.bf16.msra.mxu0 %v1290
    %1429 = vmatmul.bf16.gmra.mxu0 %v1073
    %v1430 = vpop.f32.mrf.mxu0
    %v1431 = vadd.f32 %v1418, %v1430
    %v1432 = vpop.f32.mrf.mxu0
    %1433 = vdwg.mxu0
    %1434 = vmatpush.bf16.msra.mxu0 %v1320
    %1435 = vmatpush.bf16.msra.mxu0 %v1318
    %1436 = vmatpush.bf16.msra.mxu0 %v1316
    %1437 = vmatpush.bf16.msra.mxu0 %v1314
    %1438 = vmatpush.bf16.msra.mxu0 %v1312
    %1439 = vmatpush.bf16.msra.mxu0 %v1310
    %1440 = vmatpush.bf16.msra.mxu0 %v1308
    %1441 = vmatpush.bf16.msra.mxu0 %v1306
    %1442 = vmatmul.bf16.gmra.mxu0 %v1074
    %v1443 = vpop.f32.mrf.mxu0
    %v1444 = vadd.f32 %v1431, %v1443
    %v1445 = vpop.f32.mrf.mxu0
    %1446 = vdwg.mxu0
    %v1447 = vmax.f32 %v1405, 0.0
    %v1448 = vmax.f32 %v1444, 0.0
    %v1449 = vpack.c.bf16 %v1447, %v1447
    %v1450 = vpack.c.bf16 %v1448, %v1448
    %v1451 = vld [vmem:[%s7] sm:$0xff]
    %v1452 = vld [vmem:[%s7 + $0x8] sm:$0xff]
    %v1453 = vld [vmem:[%s7 + $0x10] sm:$0xff]
    %v1454 = vld [vmem:[%s7 + $0x18] sm:$0xff]
    %v1455 = vld [vmem:[%s7 + $0x20] sm:$0xff]
    %v1456 = vld [vmem:[%s7 + $0x28] sm:$0xff]
    %v1457 = vld [vmem:[%s7 + $0x30] sm:$0xff]
    %v1458 = vld [vmem:[%s7 + $0x38] sm:$0xff]
    %v1459 = vld [vmem:[%s7 + $0x40] sm:$0xff]
    %v1460 = vld [vmem:[%s7 + $0x48] sm:$0xff]
    %v1461 = vld [vmem:[%s7 + $0x50] sm:$0xff]
    %v1462 = vld [vmem:[%s7 + $0x58] sm:$0xff]
    %v1463 = vld [vmem:[%s7 + $0x60] sm:$0xff]
    %v1464 = vld [vmem:[%s7 + $0x68] sm:$0xff]
    %v1465 = vld [vmem:[%s7 + $0x70] sm:$0xff]
    %v1466 = vld [vmem:[%s7 + $0x78] sm:$0xff]
    %v1467 = vld [vmem:[%s7 + $0x80] sm:$0xff]
    %v1468 = vld [vmem:[%s7 + $0x88] sm:$0xff]
    %v1469 = vld [vmem:[%s7 + $0x90] sm:$0xff]
    %v1470 = vld [vmem:[%s7 + $0x98] sm:$0xff]
    %v1471 = vld [vmem:[%s7 + $0xa0] sm:$0xff]
    %v1472 = vld [vmem:[%s7 + $0xa8] sm:$0xff]
    %v1473 = vld [vmem:[%s7 + $0xb0] sm:$0xff]
    %v1474 = vld [vmem:[%s7 + $0xb8] sm:$0xff]
    %v1475 = vld [vmem:[%s7 + $0xc0] sm:$0xff]
    %v1476 = vld [vmem:[%s7 + $0xc8] sm:$0xff]
    %v1477 = vld [vmem:[%s7 + $0xd0] sm:$0xff]
    %v1478 = vld [vmem:[%s7 + $0xd8] sm:$0xff]
    %v1479 = vld [vmem:[%s7 + $0xe0] sm:$0xff]
    %v1480 = vld [vmem:[%s7 + $0xe8] sm:$0xff]
    %v1481 = vld [vmem:[%s7 + $0xf0] sm:$0xff]
    %v1482 = vld [vmem:[%s7 + $0xf8] sm:$0xff]
    %v1483 = vld [vmem:[%s8] sm:$0x3]
    %v1485 = vperm.slane %v1483, 0
    %v1486 = vperm.slane %v1483, 1
    %v1521 = vunpack.c.l.b16 %v1451
    %v1522 = vunpack.c.h.b16 %v1451
    %v1523 = vunpack.c.l.b16 %v1452
    %v1524 = vunpack.c.h.b16 %v1452
    %v1525 = vunpack.c.l.b16 %v1453
    %v1526 = vunpack.c.h.b16 %v1453
    %v1527 = vunpack.c.l.b16 %v1454
    %v1528 = vunpack.c.h.b16 %v1454
    %v1529 = vunpack.c.l.b16 %v1455
    %v1530 = vunpack.c.h.b16 %v1455
    %v1531 = vunpack.c.l.b16 %v1456
    %v1532 = vunpack.c.h.b16 %v1456
    %v1533 = vunpack.c.l.b16 %v1457
    %v1534 = vunpack.c.h.b16 %v1457
    %v1535 = vunpack.c.l.b16 %v1458
    %v1536 = vunpack.c.h.b16 %v1458
    %v1537 = vunpack.c.l.b16 %v1459
    %v1538 = vunpack.c.h.b16 %v1459
    %v1539 = vunpack.c.l.b16 %v1460
    %v1540 = vunpack.c.h.b16 %v1460
    %v1541 = vunpack.c.l.b16 %v1461
    %v1542 = vunpack.c.h.b16 %v1461
    %v1543 = vunpack.c.l.b16 %v1462
    %v1544 = vunpack.c.h.b16 %v1462
    %v1545 = vunpack.c.l.b16 %v1463
    %v1546 = vunpack.c.h.b16 %v1463
    %v1547 = vunpack.c.l.b16 %v1464
    %v1548 = vunpack.c.h.b16 %v1464
    %v1549 = vunpack.c.l.b16 %v1465
    %v1550 = vunpack.c.h.b16 %v1465
    %v1551 = vunpack.c.l.b16 %v1466
    %v1552 = vunpack.c.h.b16 %v1466
    %v1553 = vunpack.c.l.b16 %v1467
    %v1554 = vunpack.c.h.b16 %v1467
    %v1555 = vunpack.c.l.b16 %v1468
    %v1556 = vunpack.c.h.b16 %v1468
    %v1557 = vunpack.c.l.b16 %v1469
    %v1558 = vunpack.c.h.b16 %v1469
    %v1559 = vunpack.c.l.b16 %v1470
    %v1560 = vunpack.c.h.b16 %v1470
    %v1561 = vunpack.c.l.b16 %v1471
    %v1562 = vunpack.c.h.b16 %v1471
    %v1563 = vunpack.c.l.b16 %v1472
    %v1564 = vunpack.c.h.b16 %v1472
    %v1565 = vunpack.c.l.b16 %v1473
    %v1566 = vunpack.c.h.b16 %v1473
    %v1567 = vunpack.c.l.b16 %v1474
    %v1568 = vunpack.c.h.b16 %v1474
    %v1569 = vunpack.c.l.b16 %v1475
    %v1570 = vunpack.c.h.b16 %v1475
    %v1571 = vunpack.c.l.b16 %v1476
    %v1572 = vunpack.c.h.b16 %v1476
    %v1573 = vunpack.c.l.b16 %v1477
    %v1574 = vunpack.c.h.b16 %v1477
    %v1575 = vunpack.c.l.b16 %v1478
    %v1576 = vunpack.c.h.b16 %v1478
    %v1577 = vunpack.c.l.b16 %v1479
    %v1578 = vunpack.c.h.b16 %v1479
    %v1579 = vunpack.c.l.b16 %v1480
    %v1580 = vunpack.c.h.b16 %v1480
    %v1581 = vunpack.c.l.b16 %v1481
    %v1582 = vunpack.c.h.b16 %v1481
    %v1583 = vunpack.c.l.b16 %v1482
    %v1584 = vunpack.c.h.b16 %v1482
    %v1585 = vpack.c.b16 %v1523, %v1521
    %v1586 = vpack.c.b16 %v1524, %v1522
    %v1587 = vpack.c.b16 %v1527, %v1525
    %v1588 = vpack.c.b16 %v1528, %v1526
    %v1589 = vpack.c.b16 %v1531, %v1529
    %v1590 = vpack.c.b16 %v1532, %v1530
    %v1591 = vpack.c.b16 %v1535, %v1533
    %v1592 = vpack.c.b16 %v1536, %v1534
    %v1593 = vpack.c.b16 %v1539, %v1537
    %v1594 = vpack.c.b16 %v1540, %v1538
    %v1595 = vpack.c.b16 %v1543, %v1541
    %v1596 = vpack.c.b16 %v1544, %v1542
    %v1597 = vpack.c.b16 %v1547, %v1545
    %v1598 = vpack.c.b16 %v1548, %v1546
    %v1599 = vpack.c.b16 %v1551, %v1549
    %v1600 = vpack.c.b16 %v1552, %v1550
    %v1601 = vpack.c.b16 %v1555, %v1553
    %v1602 = vpack.c.b16 %v1556, %v1554
    %v1603 = vpack.c.b16 %v1559, %v1557
    %v1604 = vpack.c.b16 %v1560, %v1558
    %v1605 = vpack.c.b16 %v1563, %v1561
    %v1606 = vpack.c.b16 %v1564, %v1562
    %v1607 = vpack.c.b16 %v1567, %v1565
    %v1608 = vpack.c.b16 %v1568, %v1566
    %v1609 = vpack.c.b16 %v1571, %v1569
    %v1610 = vpack.c.b16 %v1572, %v1570
    %v1611 = vpack.c.b16 %v1575, %v1573
    %v1612 = vpack.c.b16 %v1576, %v1574
    %v1613 = vpack.c.b16 %v1579, %v1577
    %v1614 = vpack.c.b16 %v1580, %v1578
    %v1615 = vpack.c.b16 %v1583, %v1581
    %v1616 = vpack.c.b16 %v1584, %v1582
    %1649 = vmatpush.bf16.msra.mxu0 %v1599
    %1650 = vmatpush.bf16.msra.mxu0 %v1597
    %1651 = vmatpush.bf16.msra.mxu0 %v1595
    %1652 = vmatpush.bf16.msra.mxu0 %v1593
    %1653 = vmatpush.bf16.msra.mxu0 %v1591
    %1654 = vmatpush.bf16.msra.mxu0 %v1589
    %1655 = vmatpush.bf16.msra.mxu0 %v1587
    %1656 = vmatpush.bf16.msra.mxu0 %v1585
    %1657 = vmatmul.bf16.gmra.mxu0 %v1449
    %v1658 = vpop.f32.mrf.mxu0
    %v1659 = vadd.f32 %v1485, %v1658
    %v1660 = vpop.f32.mrf.mxu0
    %1661 = vdwg.mxu0
    %1662 = vmatpush.bf16.msra.mxu0 %v1615
    %1663 = vmatpush.bf16.msra.mxu0 %v1613
    %1664 = vmatpush.bf16.msra.mxu0 %v1611
    %1665 = vmatpush.bf16.msra.mxu0 %v1609
    %1666 = vmatpush.bf16.msra.mxu0 %v1607
    %1667 = vmatpush.bf16.msra.mxu0 %v1605
    %1668 = vmatpush.bf16.msra.mxu0 %v1603
    %1669 = vmatpush.bf16.msra.mxu0 %v1601
    %1670 = vmatmul.bf16.gmra.mxu0 %v1450
    %v1671 = vpop.f32.mrf.mxu0
    %v1672 = vadd.f32 %v1659, %v1671
    %v1673 = vpop.f32.mrf.mxu0
    %1674 = vdwg.mxu0
    %1675 = vmatpush.bf16.msra.mxu0 %v1600
    %1676 = vmatpush.bf16.msra.mxu0 %v1598
    %1677 = vmatpush.bf16.msra.mxu0 %v1596
    %1678 = vmatpush.bf16.msra.mxu0 %v1594
    %1679 = vmatpush.bf16.msra.mxu0 %v1592
    %1680 = vmatpush.bf16.msra.mxu0 %v1590
    %1681 = vmatpush.bf16.msra.mxu0 %v1588
    %1682 = vmatpush.bf16.msra.mxu0 %v1586
    %1683 = vmatmul.bf16.gmra.mxu0 %v1449
    %v1684 = vpop.f32.mrf.mxu0
    %v1685 = vadd.f32 %v1486, %v1684
    %v1686 = vpop.f32.mrf.mxu0
    %1687 = vdwg.mxu0
    %1688 = vmatpush.bf16.msra.mxu0 %v1616
    %1689 = vmatpush.bf16.msra.mxu0 %v1614
    %1690 = vmatpush.bf16.msra.mxu0 %v1612
    %1691 = vmatpush.bf16.msra.mxu0 %v1610
    %1692 = vmatpush.bf16.msra.mxu0 %v1608
    %1693 = vmatpush.bf16.msra.mxu0 %v1606
    %1694 = vmatpush.bf16.msra.mxu0 %v1604
    %1695 = vmatpush.bf16.msra.mxu0 %v1602
    %1696 = vmatmul.bf16.gmra.mxu0 %v1450
    %v1697 = vpop.f32.mrf.mxu0
    %v1698 = vadd.f32 %v1685, %v1697
    %v1699 = vpop.f32.mrf.mxu0
    %1700 = vdwg.mxu0
    %v1701 = vmax.f32 %v1672, 0.0
    %v1702 = vmax.f32 %v1698, 0.0
    %v1703 = vpack.c.bf16 %v1701, %v1701
    %v1704 = vpack.c.bf16 %v1702, %v1702
    %v1705 = vld [vmem:[%s9] sm:$0xff]
    %v1706 = vld [vmem:[%s9 + $0x8] sm:$0xff]
    %v1707 = vld [vmem:[%s9 + $0x10] sm:$0xff]
    %v1708 = vld [vmem:[%s9 + $0x18] sm:$0xff]
    %v1709 = vld [vmem:[%s9 + $0x20] sm:$0xff]
    %v1710 = vld [vmem:[%s9 + $0x28] sm:$0xff]
    %v1711 = vld [vmem:[%s9 + $0x30] sm:$0xff]
    %v1712 = vld [vmem:[%s9 + $0x38] sm:$0xff]
    %v1713 = vld [vmem:[%s9 + $0x40] sm:$0xff]
    %v1714 = vld [vmem:[%s9 + $0x48] sm:$0xff]
    %v1715 = vld [vmem:[%s9 + $0x50] sm:$0xff]
    %v1716 = vld [vmem:[%s9 + $0x58] sm:$0xff]
    %v1717 = vld [vmem:[%s9 + $0x60] sm:$0xff]
    %v1718 = vld [vmem:[%s9 + $0x68] sm:$0xff]
    %v1719 = vld [vmem:[%s9 + $0x70] sm:$0xff]
    %v1720 = vld [vmem:[%s9 + $0x78] sm:$0xff]
    %v1721 = vld [vmem:[%s9 + $0x80] sm:$0xff]
    %v1722 = vld [vmem:[%s9 + $0x88] sm:$0xff]
    %v1723 = vld [vmem:[%s9 + $0x90] sm:$0xff]
    %v1724 = vld [vmem:[%s9 + $0x98] sm:$0xff]
    %v1725 = vld [vmem:[%s9 + $0xa0] sm:$0xff]
    %v1726 = vld [vmem:[%s9 + $0xa8] sm:$0xff]
    %v1727 = vld [vmem:[%s9 + $0xb0] sm:$0xff]
    %v1728 = vld [vmem:[%s9 + $0xb8] sm:$0xff]
    %v1729 = vld [vmem:[%s9 + $0xc0] sm:$0xff]
    %v1730 = vld [vmem:[%s9 + $0xc8] sm:$0xff]
    %v1731 = vld [vmem:[%s9 + $0xd0] sm:$0xff]
    %v1732 = vld [vmem:[%s9 + $0xd8] sm:$0xff]
    %v1733 = vld [vmem:[%s9 + $0xe0] sm:$0xff]
    %v1734 = vld [vmem:[%s9 + $0xe8] sm:$0xff]
    %v1735 = vld [vmem:[%s9 + $0xf0] sm:$0xff]
    %v1736 = vld [vmem:[%s9 + $0xf8] sm:$0xff]
    %v1737 = vld [vmem:[%s10] sm:$0x3]
    %v1739 = vperm.slane %v1737, 0
    %v1740 = vperm.slane %v1737, 1
    %v1775 = vunpack.c.l.b16 %v1705
    %v1776 = vunpack.c.h.b16 %v1705
    %v1777 = vunpack.c.l.b16 %v1706
    %v1778 = vunpack.c.h.b16 %v1706
    %v1779 = vunpack.c.l.b16 %v1707
    %v1780 = vunpack.c.h.b16 %v1707
    %v1781 = vunpack.c.l.b16 %v1708
    %v1782 = vunpack.c.h.b16 %v1708
    %v1783 = vunpack.c.l.b16 %v1709
    %v1784 = vunpack.c.h.b16 %v1709
    %v1785 = vunpack.c.l.b16 %v1710
    %v1786 = vunpack.c.h.b16 %v1710
    %v1787 = vunpack.c.l.b16 %v1711
    %v1788 = vunpack.c.h.b16 %v1711
    %v1789 = vunpack.c.l.b16 %v1712
    %v1790 = vunpack.c.h.b16 %v1712
    %v1791 = vunpack.c.l.b16 %v1713
    %v1792 = vunpack.c.h.b16 %v1713
    %v1793 = vunpack.c.l.b16 %v1714
    %v1794 = vunpack.c.h.b16 %v1714
    %v1795 = vunpack.c.l.b16 %v1715
    %v1796 = vunpack.c.h.b16 %v1715
    %v1797 = vunpack.c.l.b16 %v1716
    %v1798 = vunpack.c.h.b16 %v1716
    %v1799 = vunpack.c.l.b16 %v1717
    %v1800 = vunpack.c.h.b16 %v1717
    %v1801 = vunpack.c.l.b16 %v1718
    %v1802 = vunpack.c.h.b16 %v1718
    %v1803 = vunpack.c.l.b16 %v1719
    %v1804 = vunpack.c.h.b16 %v1719
    %v1805 = vunpack.c.l.b16 %v1720
    %v1806 = vunpack.c.h.b16 %v1720
    %v1807 = vunpack.c.l.b16 %v1721
    %v1808 = vunpack.c.h.b16 %v1721
    %v1809 = vunpack.c.l.b16 %v1722
    %v1810 = vunpack.c.h.b16 %v1722
    %v1811 = vunpack.c.l.b16 %v1723
    %v1812 = vunpack.c.h.b16 %v1723
    %v1813 = vunpack.c.l.b16 %v1724
    %v1814 = vunpack.c.h.b16 %v1724
    %v1815 = vunpack.c.l.b16 %v1725
    %v1816 = vunpack.c.h.b16 %v1725
    %v1817 = vunpack.c.l.b16 %v1726
    %v1818 = vunpack.c.h.b16 %v1726
    %v1819 = vunpack.c.l.b16 %v1727
    %v1820 = vunpack.c.h.b16 %v1727
    %v1821 = vunpack.c.l.b16 %v1728
    %v1822 = vunpack.c.h.b16 %v1728
    %v1823 = vunpack.c.l.b16 %v1729
    %v1824 = vunpack.c.h.b16 %v1729
    %v1825 = vunpack.c.l.b16 %v1730
    %v1826 = vunpack.c.h.b16 %v1730
    %v1827 = vunpack.c.l.b16 %v1731
    %v1828 = vunpack.c.h.b16 %v1731
    %v1829 = vunpack.c.l.b16 %v1732
    %v1830 = vunpack.c.h.b16 %v1732
    %v1831 = vunpack.c.l.b16 %v1733
    %v1832 = vunpack.c.h.b16 %v1733
    %v1833 = vunpack.c.l.b16 %v1734
    %v1834 = vunpack.c.h.b16 %v1734
    %v1835 = vunpack.c.l.b16 %v1735
    %v1836 = vunpack.c.h.b16 %v1735
    %v1837 = vunpack.c.l.b16 %v1736
    %v1838 = vunpack.c.h.b16 %v1736
    %v1839 = vpack.c.b16 %v1777, %v1775
    %v1840 = vpack.c.b16 %v1778, %v1776
    %v1841 = vpack.c.b16 %v1781, %v1779
    %v1842 = vpack.c.b16 %v1782, %v1780
    %v1843 = vpack.c.b16 %v1785, %v1783
    %v1844 = vpack.c.b16 %v1786, %v1784
    %v1845 = vpack.c.b16 %v1789, %v1787
    %v1846 = vpack.c.b16 %v1790, %v1788
    %v1847 = vpack.c.b16 %v1793, %v1791
    %v1848 = vpack.c.b16 %v1794, %v1792
    %v1849 = vpack.c.b16 %v1797, %v1795
    %v1850 = vpack.c.b16 %v1798, %v1796
    %v1851 = vpack.c.b16 %v1801, %v1799
    %v1852 = vpack.c.b16 %v1802, %v1800
    %v1853 = vpack.c.b16 %v1805, %v1803
    %v1854 = vpack.c.b16 %v1806, %v1804
    %v1855 = vpack.c.b16 %v1809, %v1807
    %v1856 = vpack.c.b16 %v1810, %v1808
    %v1857 = vpack.c.b16 %v1813, %v1811
    %v1858 = vpack.c.b16 %v1814, %v1812
    %v1859 = vpack.c.b16 %v1817, %v1815
    %v1860 = vpack.c.b16 %v1818, %v1816
    %v1861 = vpack.c.b16 %v1821, %v1819
    %v1862 = vpack.c.b16 %v1822, %v1820
    %v1863 = vpack.c.b16 %v1825, %v1823
    %v1864 = vpack.c.b16 %v1826, %v1824
    %v1865 = vpack.c.b16 %v1829, %v1827
    %v1866 = vpack.c.b16 %v1830, %v1828
    %v1867 = vpack.c.b16 %v1833, %v1831
    %v1868 = vpack.c.b16 %v1834, %v1832
    %v1869 = vpack.c.b16 %v1837, %v1835
    %v1870 = vpack.c.b16 %v1838, %v1836
    %1903 = vmatpush.bf16.msra.mxu0 %v1853
    %1904 = vmatpush.bf16.msra.mxu0 %v1851
    %1905 = vmatpush.bf16.msra.mxu0 %v1849
    %1906 = vmatpush.bf16.msra.mxu0 %v1847
    %1907 = vmatpush.bf16.msra.mxu0 %v1845
    %1908 = vmatpush.bf16.msra.mxu0 %v1843
    %1909 = vmatpush.bf16.msra.mxu0 %v1841
    %1910 = vmatpush.bf16.msra.mxu0 %v1839
    %1911 = vmatmul.bf16.gmra.mxu0 %v1703
    %v1912 = vpop.f32.mrf.mxu0
    %v1913 = vadd.f32 %v1739, %v1912
    %v1914 = vpop.f32.mrf.mxu0
    %1915 = vdwg.mxu0
    %1916 = vmatpush.bf16.msra.mxu0 %v1869
    %1917 = vmatpush.bf16.msra.mxu0 %v1867
    %1918 = vmatpush.bf16.msra.mxu0 %v1865
    %1919 = vmatpush.bf16.msra.mxu0 %v1863
    %1920 = vmatpush.bf16.msra.mxu0 %v1861
    %1921 = vmatpush.bf16.msra.mxu0 %v1859
    %1922 = vmatpush.bf16.msra.mxu0 %v1857
    %1923 = vmatpush.bf16.msra.mxu0 %v1855
    %1924 = vmatmul.bf16.gmra.mxu0 %v1704
    %v1925 = vpop.f32.mrf.mxu0
    %v1926 = vadd.f32 %v1913, %v1925
    %v1927 = vpop.f32.mrf.mxu0
    %1928 = vdwg.mxu0
    %1929 = vmatpush.bf16.msra.mxu0 %v1854
    %1930 = vmatpush.bf16.msra.mxu0 %v1852
    %1931 = vmatpush.bf16.msra.mxu0 %v1850
    %1932 = vmatpush.bf16.msra.mxu0 %v1848
    %1933 = vmatpush.bf16.msra.mxu0 %v1846
    %1934 = vmatpush.bf16.msra.mxu0 %v1844
    %1935 = vmatpush.bf16.msra.mxu0 %v1842
    %1936 = vmatpush.bf16.msra.mxu0 %v1840
    %1937 = vmatmul.bf16.gmra.mxu0 %v1703
    %v1938 = vpop.f32.mrf.mxu0
    %v1939 = vadd.f32 %v1740, %v1938
    %v1940 = vpop.f32.mrf.mxu0
    %1941 = vdwg.mxu0
    %1942 = vmatpush.bf16.msra.mxu0 %v1870
    %1943 = vmatpush.bf16.msra.mxu0 %v1868
    %1944 = vmatpush.bf16.msra.mxu0 %v1866
    %1945 = vmatpush.bf16.msra.mxu0 %v1864
    %1946 = vmatpush.bf16.msra.mxu0 %v1862
    %1947 = vmatpush.bf16.msra.mxu0 %v1860
    %1948 = vmatpush.bf16.msra.mxu0 %v1858
    %1949 = vmatpush.bf16.msra.mxu0 %v1856
    %1950 = vmatmul.bf16.gmra.mxu0 %v1704
    %v1951 = vpop.f32.mrf.mxu0
    %v1952 = vadd.f32 %v1939, %v1951
    %v1953 = vpop.f32.mrf.mxu0
    %1954 = vdwg.mxu0
    %v1955 = vmax.f32 %v1926, 0.0
    %v1956 = vmax.f32 %v1952, 0.0
    %v1957 = vpack.c.bf16 %v1955, %v1955
    %v1958 = vpack.c.bf16 %v1956, %v1956
    %v1959 = vld [vmem:[%s11] sm:$0xf]
    %v1960 = vld [vmem:[%s11 + $0x4] sm:$0xf]
    %v1961 = vld [vmem:[%s11 + $0x8] sm:$0xf]
    %v1962 = vld [vmem:[%s11 + $0xc] sm:$0xf]
    %v1963 = vld [vmem:[%s11 + $0x10] sm:$0xf]
    %v1964 = vld [vmem:[%s11 + $0x14] sm:$0xf]
    %v1965 = vld [vmem:[%s11 + $0x18] sm:$0xf]
    %v1966 = vld [vmem:[%s11 + $0x1c] sm:$0xf]
    %v1967 = vld [vmem:[%s11 + $0x20] sm:$0xf]
    %v1968 = vld [vmem:[%s11 + $0x24] sm:$0xf]
    %v1969 = vld [vmem:[%s11 + $0x28] sm:$0xf]
    %v1970 = vld [vmem:[%s11 + $0x2c] sm:$0xf]
    %v1971 = vld [vmem:[%s11 + $0x30] sm:$0xf]
    %v1972 = vld [vmem:[%s11 + $0x34] sm:$0xf]
    %v1973 = vld [vmem:[%s11 + $0x38] sm:$0xf]
    %v1974 = vld [vmem:[%s11 + $0x3c] sm:$0xf]
    %v1975 = vld [vmem:[%s11 + $0x40] sm:$0xf]
    %v1976 = vld [vmem:[%s11 + $0x44] sm:$0xf]
    %v1977 = vld [vmem:[%s11 + $0x48] sm:$0xf]
    %v1978 = vld [vmem:[%s11 + $0x4c] sm:$0xf]
    %v1979 = vld [vmem:[%s11 + $0x50] sm:$0xf]
    %v1980 = vld [vmem:[%s11 + $0x54] sm:$0xf]
    %v1981 = vld [vmem:[%s11 + $0x58] sm:$0xf]
    %v1982 = vld [vmem:[%s11 + $0x5c] sm:$0xf]
    %v1983 = vld [vmem:[%s11 + $0x60] sm:$0xf]
    %v1984 = vld [vmem:[%s11 + $0x64] sm:$0xf]
    %v1985 = vld [vmem:[%s11 + $0x68] sm:$0xf]
    %v1986 = vld [vmem:[%s11 + $0x6c] sm:$0xf]
    %v1987 = vld [vmem:[%s11 + $0x70] sm:$0xf]
    %v1988 = vld [vmem:[%s11 + $0x74] sm:$0xf]
    %v1989 = vld [vmem:[%s11 + $0x78] sm:$0xf]
    %v1990 = vld [vmem:[%s11 + $0x7c] sm:$0xf]
    %v1991 = vld [vmem:[%s12] sm:$0x1]
    %v1993 = vperm.slane %v1991, 0
    %v2027 = vunpack.c.l.b16 %v1959
    %v2028 = vunpack.c.l.b16 %v1960
    %v2029 = vunpack.c.l.b16 %v1961
    %v2030 = vunpack.c.l.b16 %v1962
    %v2031 = vunpack.c.l.b16 %v1963
    %v2032 = vunpack.c.l.b16 %v1964
    %v2033 = vunpack.c.l.b16 %v1965
    %v2034 = vunpack.c.l.b16 %v1966
    %v2035 = vunpack.c.l.b16 %v1967
    %v2036 = vunpack.c.l.b16 %v1968
    %v2037 = vunpack.c.l.b16 %v1969
    %v2038 = vunpack.c.l.b16 %v1970
    %v2039 = vunpack.c.l.b16 %v1971
    %v2040 = vunpack.c.l.b16 %v1972
    %v2041 = vunpack.c.l.b16 %v1973
    %v2042 = vunpack.c.l.b16 %v1974
    %v2043 = vunpack.c.l.b16 %v1975
    %v2044 = vunpack.c.l.b16 %v1976
    %v2045 = vunpack.c.l.b16 %v1977
    %v2046 = vunpack.c.l.b16 %v1978
    %v2047 = vunpack.c.l.b16 %v1979
    %v2048 = vunpack.c.l.b16 %v1980
    %v2049 = vunpack.c.l.b16 %v1981
    %v2050 = vunpack.c.l.b16 %v1982
    %v2051 = vunpack.c.l.b16 %v1983
    %v2052 = vunpack.c.l.b16 %v1984
    %v2053 = vunpack.c.l.b16 %v1985
    %v2054 = vunpack.c.l.b16 %v1986
    %v2055 = vunpack.c.l.b16 %v1987
    %v2056 = vunpack.c.l.b16 %v1988
    %v2057 = vunpack.c.l.b16 %v1989
    %v2058 = vunpack.c.l.b16 %v1990
    %v2059 = vpack.c.b16 %v2028, %v2027
    %v2060 = vpack.c.b16 %v2030, %v2029
    %v2061 = vpack.c.b16 %v2032, %v2031
    %v2062 = vpack.c.b16 %v2034, %v2033
    %v2063 = vpack.c.b16 %v2036, %v2035
    %v2064 = vpack.c.b16 %v2038, %v2037
    %v2065 = vpack.c.b16 %v2040, %v2039
    %v2066 = vpack.c.b16 %v2042, %v2041
    %v2067 = vpack.c.b16 %v2044, %v2043
    %v2068 = vpack.c.b16 %v2046, %v2045
    %v2069 = vpack.c.b16 %v2048, %v2047
    %v2070 = vpack.c.b16 %v2050, %v2049
    %v2071 = vpack.c.b16 %v2052, %v2051
    %v2072 = vpack.c.b16 %v2054, %v2053
    %v2073 = vpack.c.b16 %v2056, %v2055
    %v2074 = vpack.c.b16 %v2058, %v2057
    %2091 = vmatpush.bf16.msra.mxu0 %v2066
    %2092 = vmatpush.bf16.msra.mxu0 %v2065
    %2093 = vmatpush.bf16.msra.mxu0 %v2064
    %2094 = vmatpush.bf16.msra.mxu0 %v2063
    %2095 = vmatpush.bf16.msra.mxu0 %v2062
    %2096 = vmatpush.bf16.msra.mxu0 %v2061
    %2097 = vmatpush.bf16.msra.mxu0 %v2060
    %2098 = vmatpush.bf16.msra.mxu0 %v2059
    %2099 = vmatmul.bf16.gmra.mxu0 %v1957
    %v2100 = vpop.f32.mrf.mxu0
    %v2101 = vadd.f32 %v1993, %v2100
    %v2102 = vpop.f32.mrf.mxu0
    %2103 = vdwg.mxu0
    %2104 = vmatpush.bf16.msra.mxu0 %v2074
    %2105 = vmatpush.bf16.msra.mxu0 %v2073
    %2106 = vmatpush.bf16.msra.mxu0 %v2072
    %2107 = vmatpush.bf16.msra.mxu0 %v2071
    %2108 = vmatpush.bf16.msra.mxu0 %v2070
    %2109 = vmatpush.bf16.msra.mxu0 %v2069
    %2110 = vmatpush.bf16.msra.mxu0 %v2068
    %2111 = vmatpush.bf16.msra.mxu0 %v2067
    %2112 = vmatmul.bf16.gmra.mxu0 %v1958
    %v2113 = vpop.f32.mrf.mxu0
    %v2114 = vadd.f32 %v2101, %v2113
    %v2115 = vpop.f32.mrf.mxu0
    %2116 = vdwg.mxu0
    %2117 = vst [vmem:[#allocation2] sm:$0x3] %v2114
    // Predicated region
    $region54: #{alexnet_forward.5} parent=1 // pred_check
      _
    $region55: #{alexnet_forward.5} parent=1 // pred_check_branch
      %2119 = sbr.rel (0) target = $region57
    $region56: #{alexnet_forward.5} parent=1 // pred_region
      %2121 = vsyncadd [#allocation3], 0
      %s2123 = sshll.u32 [#allocation2], 4
      %s2124 = int_to_ptr.vmem [resolvable:$true] %s2123
      %s2125 = sshll.u32 %s13, 4
      %s2126 = int_to_ptr.hbm [resolvable:$true] %s2125
      %2128 = dma.vmem_to_hbm [thread:$0]  %s2124, 32, %s2126, [#allocation3]
    $region57: #{alexnet_forward.5} parent=1 // pred_fallthru
      _
    // Predicated region
    $region58: #{alexnet_forward.5} parent=1 // pred_check
      _
    $region59: #{alexnet_forward.5} parent=1 // pred_check_branch
      %2130 = sbr.rel (0) target = $region61
    $region60: #{alexnet_forward.5} parent=1 // pred_region
      %2132 = dma.done [#allocation3], 32
    $region61: #{alexnet_forward.5} parent=1 // pred_fallthru
      _
    %2133 = vsyncpa [#allocation3], 1

// kernel: alexnet_forward.4
$region0: #{alexnet_forward.4}
  #allocation0 [shape = 'u32[]', space=smem, size = 0x4, offset = 0x4, fixed_abs, tag = 'smem constant byte address 0x4 - core index']
  #allocation1 [shape = 'u32[72,128]{1,0:T(1,128)}', space=vmem, size = 0x9000, scoped, tag = 'internal scratch']
  %s0 = inlined_call_operand.vmem [shape: bf16[18,3200], index: 0, kind: input, shape index: {}]
  %s1 = inlined_call_operand.vmem [shape: bf16[3200,256], index: 1, kind: input, shape index: {}]
  %s2 = inlined_call_operand.vmem [shape: f32[1,256], index: 2, kind: input, shape index: {}]
  %s3 = inlined_call_operand.vmem [shape: f32[1,256], index: 3, kind: input, shape index: {}]
  %s4 = inlined_call_operand.vmem [shape: bf16[18,256], index: 4, kind: output, shape index: {}]
  %s5 = sld [smem:[#allocation0]]
  $region26: #{alexnet_forward.4} parent=0
    _
  %s7 = ssub.s32 1, %s5
  %s8 = scalar_select 0, %s7, %s5
  // Predicated region
  $region2: #{alexnet_forward.4} parent=0 // pred_check
    _
  $region3: #{alexnet_forward.4} parent=0 // pred_check_branch
    %10 = sbr.rel (0) target = $region5
  $region4: #{alexnet_forward.4} parent=0 // pred_region
    _
  $region5: #{alexnet_forward.4} parent=0 // pred_fallthru
    _
  // Predicated region
  $region6: #{alexnet_forward.4} parent=0 // pred_check
    _
  $region7: #{alexnet_forward.4} parent=0 // pred_check_branch
    %12 = sbr.rel (0) target = $region9
  $region8: #{alexnet_forward.4} parent=0 // pred_region
    _
  $region9: #{alexnet_forward.4} parent=0 // pred_fallthru
    _
  // Predicated region
  $region10: #{alexnet_forward.4} parent=0 // pred_check
    _
  $region11: #{alexnet_forward.4} parent=0 // pred_check_branch
    %14 = sbr.rel (0) target = $region13
  $region12: #{alexnet_forward.4} parent=0 // pred_region
    _
  $region13: #{alexnet_forward.4} parent=0 // pred_fallthru
    _
  // Predicated region
  $region14: #{alexnet_forward.4} parent=0 // pred_check
    _
  $region15: #{alexnet_forward.4} parent=0 // pred_check_branch
    %16 = sbr.rel (0) target = $region17
  $region16: #{alexnet_forward.4} parent=0 // pred_region
    _
  $region17: #{alexnet_forward.4} parent=0 // pred_fallthru
    _
  %v17 = vld [vmem:[%s0] sm:$0xff]
  %v18 = vld [vmem:[%s0 + $0x8] sm:$0xff]
  %v19 = vld [vmem:[%s0 + $0x10] sm:$0xff]
  %v20 = vld [vmem:[%s0 + $0x18] sm:$0xff]
  %v21 = vld [vmem:[%s0 + $0x20] sm:$0xff]
  %v22 = vld [vmem:[%s0 + $0x28] sm:$0xff]
  %v23 = vld [vmem:[%s0 + $0x30] sm:$0xff]
  %v24 = vld [vmem:[%s0 + $0x38] sm:$0xff]
  %v25 = vld [vmem:[%s0 + $0x40] sm:$0xff]
  %v26 = vld [vmem:[%s0 + $0x48] sm:$0xff]
  %v27 = vld [vmem:[%s0 + $0x50] sm:$0xff]
  %v28 = vld [vmem:[%s0 + $0x58] sm:$0xff]
  %v29 = vld [vmem:[%s0 + $0x60] sm:$0xf]
  %v30 = vld [vmem:[%s0 + $0x64] sm:$0xff]
  %v31 = vld [vmem:[%s0 + $0x6c] sm:$0xff]
  %v32 = vld [vmem:[%s0 + $0x74] sm:$0xff]
  %v33 = vld [vmem:[%s0 + $0x7c] sm:$0xff]
  %v34 = vld [vmem:[%s0 + $0x84] sm:$0xff]
  %v35 = vld [vmem:[%s0 + $0x8c] sm:$0xff]
  %v36 = vld [vmem:[%s0 + $0x94] sm:$0xff]
  %v37 = vld [vmem:[%s0 + $0x9c] sm:$0xff]
  %v38 = vld [vmem:[%s0 + $0xa4] sm:$0xff]
  %v39 = vld [vmem:[%s0 + $0xac] sm:$0xff]
  %v40 = vld [vmem:[%s0 + $0xb4] sm:$0xff]
  %v41 = vld [vmem:[%s0 + $0xbc] sm:$0xff]
  %v42 = vld [vmem:[%s0 + $0xc4] sm:$0xf]
  %v43 = vld [vmem:[%s0 + $0xc8] sm:$0x11]
  %v44 = vld [vmem:[%s0 + $0xd0] sm:$0x11]
  %v45 = vld [vmem:[%s0 + $0xd8] sm:$0x11]
  %v46 = vld [vmem:[%s0 + $0xe0] sm:$0x11]
  %v47 = vld [vmem:[%s0 + $0xe8] sm:$0x11]
  %v48 = vld [vmem:[%s0 + $0xf0] sm:$0x11]
  %v49 = vld [vmem:[%s0 + $0xf8] sm:$0x11]
  %v50 = vld [vmem:[%s0 + $0x100] sm:$0x11]
  %v51 = vld [vmem:[%s0 + $0x108] sm:$0x11]
  %v52 = vld [vmem:[%s0 + $0x110] sm:$0x11]
  %v53 = vld [vmem:[%s0 + $0x118] sm:$0x11]
  %v54 = vld [vmem:[%s0 + $0x120] sm:$0x11]
  %v55 = vld [vmem:[%s0 + $0x128] sm:$0x1]
  %v56 = vld [vmem:[%s1] sm:$0xff]
  %v57 = vld [vmem:[%s1 + $0x8] sm:$0xff]
  %v58 = vld [vmem:[%s1 + $0x10] sm:$0xff]
  %v59 = vld [vmem:[%s1 + $0x18] sm:$0xff]
  %v60 = vld [vmem:[%s1 + $0x20] sm:$0xff]
  %v61 = vld [vmem:[%s1 + $0x28] sm:$0xff]
  %v62 = vld [vmem:[%s1 + $0x30] sm:$0xff]
  %v63 = vld [vmem:[%s1 + $0x38] sm:$0xff]
  %v64 = vld [vmem:[%s1 + $0x40] sm:$0xff]
  %v65 = vld [vmem:[%s1 + $0x48] sm:$0xff]
  %v66 = vld [vmem:[%s1 + $0x50] sm:$0xff]
  %v67 = vld [vmem:[%s1 + $0x58] sm:$0xff]
  %v68 = vld [vmem:[%s1 + $0x60] sm:$0xff]
  %v69 = vld [vmem:[%s1 + $0x68] sm:$0xff]
  %v70 = vld [vmem:[%s1 + $0x70] sm:$0xff]
  %v71 = vld [vmem:[%s1 + $0x78] sm:$0xff]
  %v72 = vld [vmem:[%s1 + $0x80] sm:$0xff]
  %v73 = vld [vmem:[%s1 + $0x88] sm:$0xff]
  %v74 = vld [vmem:[%s1 + $0x90] sm:$0xff]
  %v75 = vld [vmem:[%s1 + $0x98] sm:$0xff]
  %v76 = vld [vmem:[%s1 + $0xa0] sm:$0xff]
  %v77 = vld [vmem:[%s1 + $0xa8] sm:$0xff]
  %v78 = vld [vmem:[%s1 + $0xb0] sm:$0xff]
  %v79 = vld [vmem:[%s1 + $0xb8] sm:$0xff]
  %v80 = vld [vmem:[%s1 + $0xc0] sm:$0xff]
  %v81 = vld [vmem:[%s1 + $0xc8] sm:$0xff]
  %v82 = vld [vmem:[%s1 + $0xd0] sm:$0xff]
  %v83 = vld [vmem:[%s1 + $0xd8] sm:$0xff]
  %v84 = vld [vmem:[%s1 + $0xe0] sm:$0xff]
  %v85 = vld [vmem:[%s1 + $0xe8] sm:$0xff]
  %v86 = vld [vmem:[%s1 + $0xf0] sm:$0xff]
  %v87 = vld [vmem:[%s1 + $0xf8] sm:$0xff]
  %v88 = vld [vmem:[%s1 + $0x100] sm:$0xff]
  %v89 = vld [vmem:[%s1 + $0x108] sm:$0xff]
  %v90 = vld [vmem:[%s1 + $0x110] sm:$0xff]
  %v91 = vld [vmem:[%s1 + $0x118] sm:$0xff]
  %v92 = vld [vmem:[%s1 + $0x120] sm:$0xff]
  %v93 = vld [vmem:[%s1 + $0x128] sm:$0xff]
  %v94 = vld [vmem:[%s1 + $0x130] sm:$0xff]
  %v95 = vld [vmem:[%s1 + $0x138] sm:$0xff]
  %v96 = vld [vmem:[%s1 + $0x140] sm:$0xff]
  %v97 = vld [vmem:[%s1 + $0x148] sm:$0xff]
  %v98 = vld [vmem:[%s1 + $0x150] sm:$0xff]
  %v99 = vld [vmem:[%s1 + $0x158] sm:$0xff]
  %v100 = vld [vmem:[%s1 + $0x160] sm:$0xff]
  %v101 = vld [vmem:[%s1 + $0x168] sm:$0xff]
  %v102 = vld [vmem:[%s1 + $0x170] sm:$0xff]
  %v103 = vld [vmem:[%s1 + $0x178] sm:$0xff]
  %v104 = vld [vmem:[%s1 + $0x180] sm:$0xff]
  %v105 = vld [vmem:[%s1 + $0x188] sm:$0xff]
  %v106 = vld [vmem:[%s1 + $0x190] sm:$0xff]
  %v107 = vld [vmem:[%s1 + $0x198] sm:$0xff]
  %v108 = vld [vmem:[%s1 + $0x1a0] sm:$0xff]
  %v109 = vld [vmem:[%s1 + $0x1a8] sm:$0xff]
  %v110 = vld [vmem:[%s1 + $0x1b0] sm:$0xff]
  %v111 = vld [vmem:[%s1 + $0x1b8] sm:$0xff]
  %v112 = vld [vmem:[%s1 + $0x1c0] sm:$0xff]
  %v113 = vld [vmem:[%s1 + $0x1c8] sm:$0xff]
  %v114 = vld [vmem:[%s1 + $0x1d0] sm:$0xff]
  %v115 = vld [vmem:[%s1 + $0x1d8] sm:$0xff]
  %v116 = vld [vmem:[%s1 + $0x1e0] sm:$0xff]
  %v117 = vld [vmem:[%s1 + $0x1e8] sm:$0xff]
  %v118 = vld [vmem:[%s1 + $0x1f0] sm:$0xff]
  %v119 = vld [vmem:[%s1 + $0x1f8] sm:$0xff]
  %v120 = vld [vmem:[%s1 + $0x200] sm:$0xff]
  %v121 = vld [vmem:[%s1 + $0x208] sm:$0xff]
  %v122 = vld [vmem:[%s1 + $0x210] sm:$0xff]
  %v123 = vld [vmem:[%s1 + $0x218] sm:$0xff]
  %v124 = vld [vmem:[%s1 + $0x220] sm:$0xff]
  %v125 = vld [vmem:[%s1 + $0x228] sm:$0xff]
  %v126 = vld [vmem:[%s1 + $0x230] sm:$0xff]
  %v127 = vld [vmem:[%s1 + $0x238] sm:$0xff]
  %v128 = vld [vmem:[%s1 + $0x240] sm:$0xff]
  %v129 = vld [vmem:[%s1 + $0x248] sm:$0xff]
  %v130 = vld [vmem:[%s1 + $0x250] sm:$0xff]
  %v131 = vld [vmem:[%s1 + $0x258] sm:$0xff]
  %v132 = vld [vmem:[%s1 + $0x260] sm:$0xff]
  %v133 = vld [vmem:[%s1 + $0x268] sm:$0xff]
  %v134 = vld [vmem:[%s1 + $0x270] sm:$0xff]
  %v135 = vld [vmem:[%s1 + $0x278] sm:$0xff]
  %v136 = vld [vmem:[%s1 + $0x280] sm:$0xff]
  %v137 = vld [vmem:[%s1 + $0x288] sm:$0xff]
  %v138 = vld [vmem:[%s1 + $0x290] sm:$0xff]
  %v139 = vld [vmem:[%s1 + $0x298] sm:$0xff]
  %v140 = vld [vmem:[%s1 + $0x2a0] sm:$0xff]
  %v141 = vld [vmem:[%s1 + $0x2a8] sm:$0xff]
  %v142 = vld [vmem:[%s1 + $0x2b0] sm:$0xff]
  %v143 = vld [vmem:[%s1 + $0x2b8] sm:$0xff]
  %v144 = vld [vmem:[%s1 + $0x2c0] sm:$0xff]
  %v145 = vld [vmem:[%s1 + $0x2c8] sm:$0xff]
  %v146 = vld [vmem:[%s1 + $0x2d0] sm:$0xff]
  %v147 = vld [vmem:[%s1 + $0x2d8] sm:$0xff]
  %v148 = vld [vmem:[%s1 + $0x2e0] sm:$0xff]
  %v149 = vld [vmem:[%s1 + $0x2e8] sm:$0xff]
  %v150 = vld [vmem:[%s1 + $0x2f0] sm:$0xff]
  %v151 = vld [vmem:[%s1 + $0x2f8] sm:$0xff]
  %v152 = vld [vmem:[%s1 + $0x300] sm:$0xff]
  %v153 = vld [vmem:[%s1 + $0x308] sm:$0xff]
  %v154 = vld [vmem:[%s1 + $0x310] sm:$0xff]
  %v155 = vld [vmem:[%s1 + $0x318] sm:$0xff]
  %v156 = vld [vmem:[%s1 + $0x320] sm:$0xff]
  %v157 = vld [vmem:[%s1 + $0x328] sm:$0xff]
  %v158 = vld [vmem:[%s1 + $0x330] sm:$0xff]
  %v159 = vld [vmem:[%s1 + $0x338] sm:$0xff]
  %v160 = vld [vmem:[%s1 + $0x340] sm:$0xff]
  %v161 = vld [vmem:[%s1 + $0x348] sm:$0xff]
  %v162 = vld [vmem:[%s1 + $0x350] sm:$0xff]
  %v163 = vld [vmem:[%s1 + $0x358] sm:$0xff]
  %v164 = vld [vmem:[%s1 + $0x360] sm:$0xff]
  %v165 = vld [vmem:[%s1 + $0x368] sm:$0xff]
  %v166 = vld [vmem:[%s1 + $0x370] sm:$0xff]
  %v167 = vld [vmem:[%s1 + $0x378] sm:$0xff]
  %v168 = vld [vmem:[%s1 + $0x380] sm:$0xff]
  %v169 = vld [vmem:[%s1 + $0x388] sm:$0xff]
  %v170 = vld [vmem:[%s1 + $0x390] sm:$0xff]
  %v171 = vld [vmem:[%s1 + $0x398] sm:$0xff]
  %v172 = vld [vmem:[%s1 + $0x3a0] sm:$0xff]
  %v173 = vld [vmem:[%s1 + $0x3a8] sm:$0xff]
  %v174 = vld [vmem:[%s1 + $0x3b0] sm:$0xff]
  %v175 = vld [vmem:[%s1 + $0x3b8] sm:$0xff]
  %v176 = vld [vmem:[%s1 + $0x3c0] sm:$0xff]
  %v177 = vld [vmem:[%s1 + $0x3c8] sm:$0xff]
  %v178 = vld [vmem:[%s1 + $0x3d0] sm:$0xff]
  %v179 = vld [vmem:[%s1 + $0x3d8] sm:$0xff]
  %v180 = vld [vmem:[%s1 + $0x3e0] sm:$0xff]
  %v181 = vld [vmem:[%s1 + $0x3e8] sm:$0xff]
  %v182 = vld [vmem:[%s1 + $0x3f0] sm:$0xff]
  %v183 = vld [vmem:[%s1 + $0x3f8] sm:$0xff]
  %v184 = vld [vmem:[%s1 + $0x400] sm:$0xff]
  %v185 = vld [vmem:[%s1 + $0x408] sm:$0xff]
  %v186 = vld [vmem:[%s1 + $0x410] sm:$0xff]
  %v187 = vld [vmem:[%s1 + $0x418] sm:$0xff]
  %v188 = vld [vmem:[%s1 + $0x420] sm:$0xff]
  %v189 = vld [vmem:[%s1 + $0x428] sm:$0xff]
  %v190 = vld [vmem:[%s1 + $0x430] sm:$0xff]
  %v191 = vld [vmem:[%s1 + $0x438] sm:$0xff]
  %v192 = vld [vmem:[%s1 + $0x440] sm:$0xff]
  %v193 = vld [vmem:[%s1 + $0x448] sm:$0xff]
  %v194 = vld [vmem:[%s1 + $0x450] sm:$0xff]
  %v195 = vld [vmem:[%s1 + $0x458] sm:$0xff]
  %v196 = vld [vmem:[%s1 + $0x460] sm:$0xff]
  %v197 = vld [vmem:[%s1 + $0x468] sm:$0xff]
  %v198 = vld [vmem:[%s1 + $0x470] sm:$0xff]
  %v199 = vld [vmem:[%s1 + $0x478] sm:$0xff]
  %v200 = vld [vmem:[%s1 + $0x480] sm:$0xff]
  %v201 = vld [vmem:[%s1 + $0x488] sm:$0xff]
  %v202 = vld [vmem:[%s1 + $0x490] sm:$0xff]
  %v203 = vld [vmem:[%s1 + $0x498] sm:$0xff]
  %v204 = vld [vmem:[%s1 + $0x4a0] sm:$0xff]
  %v205 = vld [vmem:[%s1 + $0x4a8] sm:$0xff]
  %v206 = vld [vmem:[%s1 + $0x4b0] sm:$0xff]
  %v207 = vld [vmem:[%s1 + $0x4b8] sm:$0xff]
  %v208 = vld [vmem:[%s1 + $0x4c0] sm:$0xff]
  %v209 = vld [vmem:[%s1 + $0x4c8] sm:$0xff]
  %v210 = vld [vmem:[%s1 + $0x4d0] sm:$0xff]
  %v211 = vld [vmem:[%s1 + $0x4d8] sm:$0xff]
  %v212 = vld [vmem:[%s1 + $0x4e0] sm:$0xff]
  %v213 = vld [vmem:[%s1 + $0x4e8] sm:$0xff]
  %v214 = vld [vmem:[%s1 + $0x4f0] sm:$0xff]
  %v215 = vld [vmem:[%s1 + $0x4f8] sm:$0xff]
  %v216 = vld [vmem:[%s1 + $0x500] sm:$0xff]
  %v217 = vld [vmem:[%s1 + $0x508] sm:$0xff]
  %v218 = vld [vmem:[%s1 + $0x510] sm:$0xff]
  %v219 = vld [vmem:[%s1 + $0x518] sm:$0xff]
  %v220 = vld [vmem:[%s1 + $0x520] sm:$0xff]
  %v221 = vld [vmem:[%s1 + $0x528] sm:$0xff]
  %v222 = vld [vmem:[%s1 + $0x530] sm:$0xff]
  %v223 = vld [vmem:[%s1 + $0x538] sm:$0xff]
  %v224 = vld [vmem:[%s1 + $0x540] sm:$0xff]
  %v225 = vld [vmem:[%s1 + $0x548] sm:$0xff]
  %v226 = vld [vmem:[%s1 + $0x550] sm:$0xff]
  %v227 = vld [vmem:[%s1 + $0x558] sm:$0xff]
  %v228 = vld [vmem:[%s1 + $0x560] sm:$0xff]
  %v229 = vld [vmem:[%s1 + $0x568] sm:$0xff]
  %v230 = vld [vmem:[%s1 + $0x570] sm:$0xff]
  %v231 = vld [vmem:[%s1 + $0x578] sm:$0xff]
  %v232 = vld [vmem:[%s1 + $0x580] sm:$0xff]
  %v233 = vld [vmem:[%s1 + $0x588] sm:$0xff]
  %v234 = vld [vmem:[%s1 + $0x590] sm:$0xff]
  %v235 = vld [vmem:[%s1 + $0x598] sm:$0xff]
  %v236 = vld [vmem:[%s1 + $0x5a0] sm:$0xff]
  %v237 = vld [vmem:[%s1 + $0x5a8] sm:$0xff]
  %v238 = vld [vmem:[%s1 + $0x5b0] sm:$0xff]
  %v239 = vld [vmem:[%s1 + $0x5b8] sm:$0xff]
  %v240 = vld [vmem:[%s1 + $0x5c0] sm:$0xff]
  %v241 = vld [vmem:[%s1 + $0x5c8] sm:$0xff]
  %v242 = vld [vmem:[%s1 + $0x5d0] sm:$0xff]
  %v243 = vld [vmem:[%s1 + $0x5d8] sm:$0xff]
  %v244 = vld [vmem:[%s1 + $0x5e0] sm:$0xff]
  %v245 = vld [vmem:[%s1 + $0x5e8] sm:$0xff]
  %v246 = vld [vmem:[%s1 + $0x5f0] sm:$0xff]
  %v247 = vld [vmem:[%s1 + $0x5f8] sm:$0xff]
  %v248 = vld [vmem:[%s1 + $0x600] sm:$0xff]
  %v249 = vld [vmem:[%s1 + $0x608] sm:$0xff]
  %v250 = vld [vmem:[%s1 + $0x610] sm:$0xff]
  %v251 = vld [vmem:[%s1 + $0x618] sm:$0xff]
  %v252 = vld [vmem:[%s1 + $0x620] sm:$0xff]
  %v253 = vld [vmem:[%s1 + $0x628] sm:$0xff]
  %v254 = vld [vmem:[%s1 + $0x630] sm:$0xff]
  %v255 = vld [vmem:[%s1 + $0x638] sm:$0xff]
  %v256 = vld [vmem:[%s1 + $0x640] sm:$0xff]
  %v257 = vld [vmem:[%s1 + $0x648] sm:$0xff]
  %v258 = vld [vmem:[%s1 + $0x650] sm:$0xff]
  %v259 = vld [vmem:[%s1 + $0x658] sm:$0xff]
  %v260 = vld [vmem:[%s1 + $0x660] sm:$0xff]
  %v261 = vld [vmem:[%s1 + $0x668] sm:$0xff]
  %v262 = vld [vmem:[%s1 + $0x670] sm:$0xff]
  %v263 = vld [vmem:[%s1 + $0x678] sm:$0xff]
  %v264 = vld [vmem:[%s1 + $0x680] sm:$0xff]
  %v265 = vld [vmem:[%s1 + $0x688] sm:$0xff]
  %v266 = vld [vmem:[%s1 + $0x690] sm:$0xff]
  %v267 = vld [vmem:[%s1 + $0x698] sm:$0xff]
  %v268 = vld [vmem:[%s1 + $0x6a0] sm:$0xff]
  %v269 = vld [vmem:[%s1 + $0x6a8] sm:$0xff]
  %v270 = vld [vmem:[%s1 + $0x6b0] sm:$0xff]
  %v271 = vld [vmem:[%s1 + $0x6b8] sm:$0xff]
  %v272 = vld [vmem:[%s1 + $0x6c0] sm:$0xff]
  %v273 = vld [vmem:[%s1 + $0x6c8] sm:$0xff]
  %v274 = vld [vmem:[%s1 + $0x6d0] sm:$0xff]
  %v275 = vld [vmem:[%s1 + $0x6d8] sm:$0xff]
  %v276 = vld [vmem:[%s1 + $0x6e0] sm:$0xff]
  %v277 = vld [vmem:[%s1 + $0x6e8] sm:$0xff]
  %v278 = vld [vmem:[%s1 + $0x6f0] sm:$0xff]
  %v279 = vld [vmem:[%s1 + $0x6f8] sm:$0xff]
  %v280 = vld [vmem:[%s1 + $0x700] sm:$0xff]
  %v281 = vld [vmem:[%s1 + $0x708] sm:$0xff]
  %v282 = vld [vmem:[%s1 + $0x710] sm:$0xff]
  %v283 = vld [vmem:[%s1 + $0x718] sm:$0xff]
  %v284 = vld [vmem:[%s1 + $0x720] sm:$0xff]
  %v285 = vld [vmem:[%s1 + $0x728] sm:$0xff]
  %v286 = vld [vmem:[%s1 + $0x730] sm:$0xff]
  %v287 = vld [vmem:[%s1 + $0x738] sm:$0xff]
  %v288 = vld [vmem:[%s1 + $0x740] sm:$0xff]
  %v289 = vld [vmem:[%s1 + $0x748] sm:$0xff]
  %v290 = vld [vmem:[%s1 + $0x750] sm:$0xff]
  %v291 = vld [vmem:[%s1 + $0x758] sm:$0xff]
  %v292 = vld [vmem:[%s1 + $0x760] sm:$0xff]
  %v293 = vld [vmem:[%s1 + $0x768] sm:$0xff]
  %v294 = vld [vmem:[%s1 + $0x770] sm:$0xff]
  %v295 = vld [vmem:[%s1 + $0x778] sm:$0xff]
  %v296 = vld [vmem:[%s1 + $0x780] sm:$0xff]
  %v297 = vld [vmem:[%s1 + $0x788] sm:$0xff]
  %v298 = vld [vmem:[%s1 + $0x790] sm:$0xff]
  %v299 = vld [vmem:[%s1 + $0x798] sm:$0xff]
  %v300 = vld [vmem:[%s1 + $0x7a0] sm:$0xff]
  %v301 = vld [vmem:[%s1 + $0x7a8] sm:$0xff]
  %v302 = vld [vmem:[%s1 + $0x7b0] sm:$0xff]
  %v303 = vld [vmem:[%s1 + $0x7b8] sm:$0xff]
  %v304 = vld [vmem:[%s1 + $0x7c0] sm:$0xff]
  %v305 = vld [vmem:[%s1 + $0x7c8] sm:$0xff]
  %v306 = vld [vmem:[%s1 + $0x7d0] sm:$0xff]
  %v307 = vld [vmem:[%s1 + $0x7d8] sm:$0xff]
  %v308 = vld [vmem:[%s1 + $0x7e0] sm:$0xff]
  %v309 = vld [vmem:[%s1 + $0x7e8] sm:$0xff]
  %v310 = vld [vmem:[%s1 + $0x7f0] sm:$0xff]
  %v311 = vld [vmem:[%s1 + $0x7f8] sm:$0xff]
  %v312 = vld [vmem:[%s1 + $0x800] sm:$0xff]
  %v313 = vld [vmem:[%s1 + $0x808] sm:$0xff]
  %v314 = vld [vmem:[%s1 + $0x810] sm:$0xff]
  %v315 = vld [vmem:[%s1 + $0x818] sm:$0xff]
  %v316 = vld [vmem:[%s1 + $0x820] sm:$0xff]
  %v317 = vld [vmem:[%s1 + $0x828] sm:$0xff]
  %v318 = vld [vmem:[%s1 + $0x830] sm:$0xff]
  %v319 = vld [vmem:[%s1 + $0x838] sm:$0xff]
  %v320 = vld [vmem:[%s1 + $0x840] sm:$0xff]
  %v321 = vld [vmem:[%s1 + $0x848] sm:$0xff]
  %v322 = vld [vmem:[%s1 + $0x850] sm:$0xff]
  %v323 = vld [vmem:[%s1 + $0x858] sm:$0xff]
  %v324 = vld [vmem:[%s1 + $0x860] sm:$0xff]
  %v325 = vld [vmem:[%s1 + $0x868] sm:$0xff]
  %v326 = vld [vmem:[%s1 + $0x870] sm:$0xff]
  %v327 = vld [vmem:[%s1 + $0x878] sm:$0xff]
  %v328 = vld [vmem:[%s1 + $0x880] sm:$0xff]
  %v329 = vld [vmem:[%s1 + $0x888] sm:$0xff]
  %v330 = vld [vmem:[%s1 + $0x890] sm:$0xff]
  %v331 = vld [vmem:[%s1 + $0x898] sm:$0xff]
  %v332 = vld [vmem:[%s1 + $0x8a0] sm:$0xff]
  %v333 = vld [vmem:[%s1 + $0x8a8] sm:$0xff]
  %v334 = vld [vmem:[%s1 + $0x8b0] sm:$0xff]
  %v335 = vld [vmem:[%s1 + $0x8b8] sm:$0xff]
  %v336 = vld [vmem:[%s1 + $0x8c0] sm:$0xff]
  %v337 = vld [vmem:[%s1 + $0x8c8] sm:$0xff]
  %v338 = vld [vmem:[%s1 + $0x8d0] sm:$0xff]
  %v339 = vld [vmem:[%s1 + $0x8d8] sm:$0xff]
  %v340 = vld [vmem:[%s1 + $0x8e0] sm:$0xff]
  %v341 = vld [vmem:[%s1 + $0x8e8] sm:$0xff]
  %v342 = vld [vmem:[%s1 + $0x8f0] sm:$0xff]
  %v343 = vld [vmem:[%s1 + $0x8f8] sm:$0xff]
  %v344 = vld [vmem:[%s1 + $0x900] sm:$0xff]
  %v345 = vld [vmem:[%s1 + $0x908] sm:$0xff]
  %v346 = vld [vmem:[%s1 + $0x910] sm:$0xff]
  %v347 = vld [vmem:[%s1 + $0x918] sm:$0xff]
  %v348 = vld [vmem:[%s1 + $0x920] sm:$0xff]
  %v349 = vld [vmem:[%s1 + $0x928] sm:$0xff]
  %v350 = vld [vmem:[%s1 + $0x930] sm:$0xff]
  %v351 = vld [vmem:[%s1 + $0x938] sm:$0xff]
  %v352 = vld [vmem:[%s1 + $0x940] sm:$0xff]
  %v353 = vld [vmem:[%s1 + $0x948] sm:$0xff]
  %v354 = vld [vmem:[%s1 + $0x950] sm:$0xff]
  %v355 = vld [vmem:[%s1 + $0x958] sm:$0xff]
  %v356 = vld [vmem:[%s1 + $0x960] sm:$0xff]
  %v357 = vld [vmem:[%s1 + $0x968] sm:$0xff]
  %v358 = vld [vmem:[%s1 + $0x970] sm:$0xff]
  %v359 = vld [vmem:[%s1 + $0x978] sm:$0xff]
  %v360 = vld [vmem:[%s1 + $0x980] sm:$0xff]
  %v361 = vld [vmem:[%s1 + $0x988] sm:$0xff]
  %v362 = vld [vmem:[%s1 + $0x990] sm:$0xff]
  %v363 = vld [vmem:[%s1 + $0x998] sm:$0xff]
  %v364 = vld [vmem:[%s1 + $0x9a0] sm:$0xff]
  %v365 = vld [vmem:[%s1 + $0x9a8] sm:$0xff]
  %v366 = vld [vmem:[%s1 + $0x9b0] sm:$0xff]
  %v367 = vld [vmem:[%s1 + $0x9b8] sm:$0xff]
  %v368 = vld [vmem:[%s1 + $0x9c0] sm:$0xff]
  %v369 = vld [vmem:[%s1 + $0x9c8] sm:$0xff]
  %v370 = vld [vmem:[%s1 + $0x9d0] sm:$0xff]
  %v371 = vld [vmem:[%s1 + $0x9d8] sm:$0xff]
  %v372 = vld [vmem:[%s1 + $0x9e0] sm:$0xff]
  %v373 = vld [vmem:[%s1 + $0x9e8] sm:$0xff]
  %v374 = vld [vmem:[%s1 + $0x9f0] sm:$0xff]
  %v375 = vld [vmem:[%s1 + $0x9f8] sm:$0xff]
  %v376 = vld [vmem:[%s1 + $0xa00] sm:$0xff]
  %v377 = vld [vmem:[%s1 + $0xa08] sm:$0xff]
  %v378 = vld [vmem:[%s1 + $0xa10] sm:$0xff]
  %v379 = vld [vmem:[%s1 + $0xa18] sm:$0xff]
  %v380 = vld [vmem:[%s1 + $0xa20] sm:$0xff]
  %v381 = vld [vmem:[%s1 + $0xa28] sm:$0xff]
  %v382 = vld [vmem:[%s1 + $0xa30] sm:$0xff]
  %v383 = vld [vmem:[%s1 + $0xa38] sm:$0xff]
  %v384 = vld [vmem:[%s1 + $0xa40] sm:$0xff]
  %v385 = vld [vmem:[%s1 + $0xa48] sm:$0xff]
  %v386 = vld [vmem:[%s1 + $0xa50] sm:$0xff]
  %v387 = vld [vmem:[%s1 + $0xa58] sm:$0xff]
  %v388 = vld [vmem:[%s1 + $0xa60] sm:$0xff]
  %v389 = vld [vmem:[%s1 + $0xa68] sm:$0xff]
  %v390 = vld [vmem:[%s1 + $0xa70] sm:$0xff]
  %v391 = vld [vmem:[%s1 + $0xa78] sm:$0xff]
  %v392 = vld [vmem:[%s1 + $0xa80] sm:$0xff]
  %v393 = vld [vmem:[%s1 + $0xa88] sm:$0xff]
  %v394 = vld [vmem:[%s1 + $0xa90] sm:$0xff]
  %v395 = vld [vmem:[%s1 + $0xa98] sm:$0xff]
  %v396 = vld [vmem:[%s1 + $0xaa0] sm:$0xff]
  %v397 = vld [vmem:[%s1 + $0xaa8] sm:$0xff]
  %v398 = vld [vmem:[%s1 + $0xab0] sm:$0xff]
  %v399 = vld [vmem:[%s1 + $0xab8] sm:$0xff]
  %v400 = vld [vmem:[%s1 + $0xac0] sm:$0xff]
  %v401 = vld [vmem:[%s1 + $0xac8] sm:$0xff]
  %v402 = vld [vmem:[%s1 + $0xad0] sm:$0xff]
  %v403 = vld [vmem:[%s1 + $0xad8] sm:$0xff]
  %v404 = vld [vmem:[%s1 + $0xae0] sm:$0xff]
  %v405 = vld [vmem:[%s1 + $0xae8] sm:$0xff]
  %v406 = vld [vmem:[%s1 + $0xaf0] sm:$0xff]
  %v407 = vld [vmem:[%s1 + $0xaf8] sm:$0xff]
  %v408 = vld [vmem:[%s1 + $0xb00] sm:$0xff]
  %v409 = vld [vmem:[%s1 + $0xb08] sm:$0xff]
  %v410 = vld [vmem:[%s1 + $0xb10] sm:$0xff]
  %v411 = vld [vmem:[%s1 + $0xb18] sm:$0xff]
  %v412 = vld [vmem:[%s1 + $0xb20] sm:$0xff]
  %v413 = vld [vmem:[%s1 + $0xb28] sm:$0xff]
  %v414 = vld [vmem:[%s1 + $0xb30] sm:$0xff]
  %v415 = vld [vmem:[%s1 + $0xb38] sm:$0xff]
  %v416 = vld [vmem:[%s1 + $0xb40] sm:$0xff]
  %v417 = vld [vmem:[%s1 + $0xb48] sm:$0xff]
  %v418 = vld [vmem:[%s1 + $0xb50] sm:$0xff]
  %v419 = vld [vmem:[%s1 + $0xb58] sm:$0xff]
  %v420 = vld [vmem:[%s1 + $0xb60] sm:$0xff]
  %v421 = vld [vmem:[%s1 + $0xb68] sm:$0xff]
  %v422 = vld [vmem:[%s1 + $0xb70] sm:$0xff]
  %v423 = vld [vmem:[%s1 + $0xb78] sm:$0xff]
  %v424 = vld [vmem:[%s1 + $0xb80] sm:$0xff]
  %v425 = vld [vmem:[%s1 + $0xb88] sm:$0xff]
  %v426 = vld [vmem:[%s1 + $0xb90] sm:$0xff]
  %v427 = vld [vmem:[%s1 + $0xb98] sm:$0xff]
  %v428 = vld [vmem:[%s1 + $0xba0] sm:$0xff]
  %v429 = vld [vmem:[%s1 + $0xba8] sm:$0xff]
  %v430 = vld [vmem:[%s1 + $0xbb0] sm:$0xff]
  %v431 = vld [vmem:[%s1 + $0xbb8] sm:$0xff]
  %v432 = vld [vmem:[%s1 + $0xbc0] sm:$0xff]
  %v433 = vld [vmem:[%s1 + $0xbc8] sm:$0xff]
  %v434 = vld [vmem:[%s1 + $0xbd0] sm:$0xff]
  %v435 = vld [vmem:[%s1 + $0xbd8] sm:$0xff]
  %v436 = vld [vmem:[%s1 + $0xbe0] sm:$0xff]
  %v437 = vld [vmem:[%s1 + $0xbe8] sm:$0xff]
  %v438 = vld [vmem:[%s1 + $0xbf0] sm:$0xff]
  %v439 = vld [vmem:[%s1 + $0xbf8] sm:$0xff]
  %v440 = vld [vmem:[%s1 + $0xc00] sm:$0xff]
  %v441 = vld [vmem:[%s1 + $0xc08] sm:$0xff]
  %v442 = vld [vmem:[%s1 + $0xc10] sm:$0xff]
  %v443 = vld [vmem:[%s1 + $0xc18] sm:$0xff]
  %v444 = vld [vmem:[%s1 + $0xc20] sm:$0xff]
  %v445 = vld [vmem:[%s1 + $0xc28] sm:$0xff]
  %v446 = vld [vmem:[%s1 + $0xc30] sm:$0xff]
  %v447 = vld [vmem:[%s1 + $0xc38] sm:$0xff]
  %v448 = vld [vmem:[%s1 + $0xc40] sm:$0xff]
  %v449 = vld [vmem:[%s1 + $0xc48] sm:$0xff]
  %v450 = vld [vmem:[%s1 + $0xc50] sm:$0xff]
  %v451 = vld [vmem:[%s1 + $0xc58] sm:$0xff]
  %v452 = vld [vmem:[%s1 + $0xc60] sm:$0xff]
  %v453 = vld [vmem:[%s1 + $0xc68] sm:$0xff]
  %v454 = vld [vmem:[%s1 + $0xc70] sm:$0xff]
  %v455 = vld [vmem:[%s1 + $0xc78] sm:$0xff]
  %v495 = vunpack.c.l.b16 %v17
  %v496 = vunpack.c.h.b16 %v17
  %v497 = vunpack.c.l.b16 %v18
  %v498 = vunpack.c.h.b16 %v18
  %v499 = vunpack.c.l.b16 %v19
  %v500 = vunpack.c.h.b16 %v19
  %v501 = vunpack.c.l.b16 %v20
  %v502 = vunpack.c.h.b16 %v20
  %v503 = vunpack.c.l.b16 %v21
  %v504 = vunpack.c.h.b16 %v21
  %v505 = vunpack.c.l.b16 %v22
  %v506 = vunpack.c.h.b16 %v22
  %v507 = vunpack.c.l.b16 %v23
  %v508 = vunpack.c.h.b16 %v23
  %v509 = vunpack.c.l.b16 %v24
  %v510 = vunpack.c.h.b16 %v24
  %v511 = vunpack.c.l.b16 %v25
  %v512 = vunpack.c.h.b16 %v25
  %v513 = vunpack.c.l.b16 %v26
  %v514 = vunpack.c.h.b16 %v26
  %v515 = vunpack.c.l.b16 %v27
  %v516 = vunpack.c.h.b16 %v27
  %v517 = vunpack.c.l.b16 %v28
  %v518 = vunpack.c.h.b16 %v28
  %v519 = vunpack.c.l.b16 %v29
  %v520 = vunpack.c.l.b16 %v30
  %v521 = vunpack.c.h.b16 %v30
  %v522 = vunpack.c.l.b16 %v31
  %v523 = vunpack.c.h.b16 %v31
  %v524 = vunpack.c.l.b16 %v32
  %v525 = vunpack.c.h.b16 %v32
  %v526 = vunpack.c.l.b16 %v33
  %v527 = vunpack.c.h.b16 %v33
  %v528 = vunpack.c.l.b16 %v34
  %v529 = vunpack.c.h.b16 %v34
  %v530 = vunpack.c.l.b16 %v35
  %v531 = vunpack.c.h.b16 %v35
  %v532 = vunpack.c.l.b16 %v36
  %v533 = vunpack.c.h.b16 %v36
  %v534 = vunpack.c.l.b16 %v37
  %v535 = vunpack.c.h.b16 %v37
  %v536 = vunpack.c.l.b16 %v38
  %v537 = vunpack.c.h.b16 %v38
  %v538 = vunpack.c.l.b16 %v39
  %v539 = vunpack.c.h.b16 %v39
  %v540 = vunpack.c.l.b16 %v40
  %v541 = vunpack.c.h.b16 %v40
  %v542 = vunpack.c.l.b16 %v41
  %v543 = vunpack.c.h.b16 %v41
  %v544 = vunpack.c.l.b16 %v42
  %v545 = vunpack.c.l.b16 %v43
  %v546 = vunpack.c.h.b16 %v43
  %v547 = vunpack.c.l.b16 %v44
  %v548 = vunpack.c.h.b16 %v44
  %v549 = vunpack.c.l.b16 %v45
  %v550 = vunpack.c.h.b16 %v45
  %v551 = vunpack.c.l.b16 %v46
  %v552 = vunpack.c.h.b16 %v46
  %v553 = vunpack.c.l.b16 %v47
  %v554 = vunpack.c.h.b16 %v47
  %v555 = vunpack.c.l.b16 %v48
  %v556 = vunpack.c.h.b16 %v48
  %v557 = vunpack.c.l.b16 %v49
  %v558 = vunpack.c.h.b16 %v49
  %v559 = vunpack.c.l.b16 %v50
  %v560 = vunpack.c.h.b16 %v50
  %v561 = vunpack.c.l.b16 %v51
  %v562 = vunpack.c.h.b16 %v51
  %v563 = vunpack.c.l.b16 %v52
  %v564 = vunpack.c.h.b16 %v52
  %v565 = vunpack.c.l.b16 %v53
  %v566 = vunpack.c.h.b16 %v53
  %v567 = vunpack.c.l.b16 %v54
  %v568 = vunpack.c.h.b16 %v54
  %v569 = vunpack.c.l.b16 %v55
  %v570 = vpack.c.b16 %v520, %v495
  %v571 = vpack.c.b16 %v521, %v496
  %v572 = vpack.c.b16 %v522, %v497
  %v573 = vpack.c.b16 %v523, %v498
  %v574 = vpack.c.b16 %v524, %v499
  %v575 = vpack.c.b16 %v525, %v500
  %v576 = vpack.c.b16 %v526, %v501
  %v577 = vpack.c.b16 %v527, %v502
  %v578 = vpack.c.b16 %v528, %v503
  %v579 = vpack.c.b16 %v529, %v504
  %v580 = vpack.c.b16 %v530, %v505
  %v581 = vpack.c.b16 %v531, %v506
  %v582 = vpack.c.b16 %v532, %v507
  %v583 = vpack.c.b16 %v533, %v508
  %v584 = vpack.c.b16 %v534, %v509
  %v585 = vpack.c.b16 %v535, %v510
  %v586 = vpack.c.b16 %v536, %v511
  %v587 = vpack.c.b16 %v537, %v512
  %v588 = vpack.c.b16 %v538, %v513
  %v589 = vpack.c.b16 %v539, %v514
  %v590 = vpack.c.b16 %v540, %v515
  %v591 = vpack.c.b16 %v541, %v516
  %v592 = vpack.c.b16 %v542, %v517
  %v593 = vpack.c.b16 %v543, %v518
  %v594 = vpack.c.b16 %v544, %v519
  %v595 = vpack.c.b16 %v545, %v545
  %v596 = vpack.c.b16 %v546, %v546
  %v597 = vpack.c.b16 %v547, %v547
  %v598 = vpack.c.b16 %v548, %v548
  %v599 = vpack.c.b16 %v549, %v549
  %v600 = vpack.c.b16 %v550, %v550
  %v601 = vpack.c.b16 %v551, %v551
  %v602 = vpack.c.b16 %v552, %v552
  %v603 = vpack.c.b16 %v553, %v553
  %v604 = vpack.c.b16 %v554, %v554
  %v605 = vpack.c.b16 %v555, %v555
  %v606 = vpack.c.b16 %v556, %v556
  %v607 = vpack.c.b16 %v557, %v557
  %v608 = vpack.c.b16 %v558, %v558
  %v609 = vpack.c.b16 %v559, %v559
  %v610 = vpack.c.b16 %v560, %v560
  %v611 = vpack.c.b16 %v561, %v561
  %v612 = vpack.c.b16 %v562, %v562
  %v613 = vpack.c.b16 %v563, %v563
  %v614 = vpack.c.b16 %v564, %v564
  %v615 = vpack.c.b16 %v565, %v565
  %v616 = vpack.c.b16 %v566, %v566
  %v617 = vpack.c.b16 %v567, %v567
  %v618 = vpack.c.b16 %v568, %v568
  %v619 = vpack.c.b16 %v569, %v569
  %v1070 = vunpack.c.l.b16 %v56
  %v1071 = vunpack.c.h.b16 %v56
  %v1072 = vunpack.c.l.b16 %v57
  %v1073 = vunpack.c.h.b16 %v57
  %v1074 = vunpack.c.l.b16 %v58
  %v1075 = vunpack.c.h.b16 %v58
  %v1076 = vunpack.c.l.b16 %v59
  %v1077 = vunpack.c.h.b16 %v59
  %v1078 = vunpack.c.l.b16 %v60
  %v1079 = vunpack.c.h.b16 %v60
  %v1080 = vunpack.c.l.b16 %v61
  %v1081 = vunpack.c.h.b16 %v61
  %v1082 = vunpack.c.l.b16 %v62
  %v1083 = vunpack.c.h.b16 %v62
  %v1084 = vunpack.c.l.b16 %v63
  %v1085 = vunpack.c.h.b16 %v63
  %v1086 = vunpack.c.l.b16 %v64
  %v1087 = vunpack.c.h.b16 %v64
  %v1088 = vunpack.c.l.b16 %v65
  %v1089 = vunpack.c.h.b16 %v65
  %v1090 = vunpack.c.l.b16 %v66
  %v1091 = vunpack.c.h.b16 %v66
  %v1092 = vunpack.c.l.b16 %v67
  %v1093 = vunpack.c.h.b16 %v67
  %v1094 = vunpack.c.l.b16 %v68
  %v1095 = vunpack.c.h.b16 %v68
  %v1096 = vunpack.c.l.b16 %v69
  %v1097 = vunpack.c.h.b16 %v69
  %v1098 = vunpack.c.l.b16 %v70
  %v1099 = vunpack.c.h.b16 %v70
  %v1100 = vunpack.c.l.b16 %v71
  %v1101 = vunpack.c.h.b16 %v71
  %v1102 = vunpack.c.l.b16 %v72
  %v1103 = vunpack.c.h.b16 %v72
  %v1104 = vunpack.c.l.b16 %v73
  %v1105 = vunpack.c.h.b16 %v73
  %v1106 = vunpack.c.l.b16 %v74
  %v1107 = vunpack.c.h.b16 %v74
  %v1108 = vunpack.c.l.b16 %v75
  %v1109 = vunpack.c.h.b16 %v75
  %v1110 = vunpack.c.l.b16 %v76
  %v1111 = vunpack.c.h.b16 %v76
  %v1112 = vunpack.c.l.b16 %v77
  %v1113 = vunpack.c.h.b16 %v77
  %v1114 = vunpack.c.l.b16 %v78
  %v1115 = vunpack.c.h.b16 %v78
  %v1116 = vunpack.c.l.b16 %v79
  %v1117 = vunpack.c.h.b16 %v79
  %v1118 = vunpack.c.l.b16 %v80
  %v1119 = vunpack.c.h.b16 %v80
  %v1120 = vunpack.c.l.b16 %v81
  %v1121 = vunpack.c.h.b16 %v81
  %v1122 = vunpack.c.l.b16 %v82
  %v1123 = vunpack.c.h.b16 %v82
  %v1124 = vunpack.c.l.b16 %v83
  %v1125 = vunpack.c.h.b16 %v83
  %v1126 = vunpack.c.l.b16 %v84
  %v1127 = vunpack.c.h.b16 %v84
  %v1128 = vunpack.c.l.b16 %v85
  %v1129 = vunpack.c.h.b16 %v85
  %v1130 = vunpack.c.l.b16 %v86
  %v1131 = vunpack.c.h.b16 %v86
  %v1132 = vunpack.c.l.b16 %v87
  %v1133 = vunpack.c.h.b16 %v87
  %v1134 = vunpack.c.l.b16 %v88
  %v1135 = vunpack.c.h.b16 %v88
  %v1136 = vunpack.c.l.b16 %v89
  %v1137 = vunpack.c.h.b16 %v89
  %v1138 = vunpack.c.l.b16 %v90
  %v1139 = vunpack.c.h.b16 %v90
  %v1140 = vunpack.c.l.b16 %v91
  %v1141 = vunpack.c.h.b16 %v91
  %v1142 = vunpack.c.l.b16 %v92
  %v1143 = vunpack.c.h.b16 %v92
  %v1144 = vunpack.c.l.b16 %v93
  %v1145 = vunpack.c.h.b16 %v93
  %v1146 = vunpack.c.l.b16 %v94
  %v1147 = vunpack.c.h.b16 %v94
  %v1148 = vunpack.c.l.b16 %v95
  %v1149 = vunpack.c.h.b16 %v95
  %v1150 = vunpack.c.l.b16 %v96
  %v1151 = vunpack.c.h.b16 %v96
  %v1152 = vunpack.c.l.b16 %v97
  %v1153 = vunpack.c.h.b16 %v97
  %v1154 = vunpack.c.l.b16 %v98
  %v1155 = vunpack.c.h.b16 %v98
  %v1156 = vunpack.c.l.b16 %v99
  %v1157 = vunpack.c.h.b16 %v99
  %v1158 = vunpack.c.l.b16 %v100
  %v1159 = vunpack.c.h.b16 %v100
  %v1160 = vunpack.c.l.b16 %v101
  %v1161 = vunpack.c.h.b16 %v101
  %v1162 = vunpack.c.l.b16 %v102
  %v1163 = vunpack.c.h.b16 %v102
  %v1164 = vunpack.c.l.b16 %v103
  %v1165 = vunpack.c.h.b16 %v103
  %v1166 = vunpack.c.l.b16 %v104
  %v1167 = vunpack.c.h.b16 %v104
  %v1168 = vunpack.c.l.b16 %v105
  %v1169 = vunpack.c.h.b16 %v105
  %v1170 = vunpack.c.l.b16 %v106
  %v1171 = vunpack.c.h.b16 %v106
  %v1172 = vunpack.c.l.b16 %v107
  %v1173 = vunpack.c.h.b16 %v107
  %v1174 = vunpack.c.l.b16 %v108
  %v1175 = vunpack.c.h.b16 %v108
  %v1176 = vunpack.c.l.b16 %v109
  %v1177 = vunpack.c.h.b16 %v109
  %v1178 = vunpack.c.l.b16 %v110
  %v1179 = vunpack.c.h.b16 %v110
  %v1180 = vunpack.c.l.b16 %v111
  %v1181 = vunpack.c.h.b16 %v111
  %v1182 = vunpack.c.l.b16 %v112
  %v1183 = vunpack.c.h.b16 %v112
  %v1184 = vunpack.c.l.b16 %v113
  %v1185 = vunpack.c.h.b16 %v113
  %v1186 = vunpack.c.l.b16 %v114
  %v1187 = vunpack.c.h.b16 %v114
  %v1188 = vunpack.c.l.b16 %v115
  %v1189 = vunpack.c.h.b16 %v115
  %v1190 = vunpack.c.l.b16 %v116
  %v1191 = vunpack.c.h.b16 %v116
  %v1192 = vunpack.c.l.b16 %v117
  %v1193 = vunpack.c.h.b16 %v117
  %v1194 = vunpack.c.l.b16 %v118
  %v1195 = vunpack.c.h.b16 %v118
  %v1196 = vunpack.c.l.b16 %v119
  %v1197 = vunpack.c.h.b16 %v119
  %v1198 = vunpack.c.l.b16 %v120
  %v1199 = vunpack.c.h.b16 %v120
  %v1200 = vunpack.c.l.b16 %v121
  %v1201 = vunpack.c.h.b16 %v121
  %v1202 = vunpack.c.l.b16 %v122
  %v1203 = vunpack.c.h.b16 %v122
  %v1204 = vunpack.c.l.b16 %v123
  %v1205 = vunpack.c.h.b16 %v123
  %v1206 = vunpack.c.l.b16 %v124
  %v1207 = vunpack.c.h.b16 %v124
  %v1208 = vunpack.c.l.b16 %v125
  %v1209 = vunpack.c.h.b16 %v125
  %v1210 = vunpack.c.l.b16 %v126
  %v1211 = vunpack.c.h.b16 %v126
  %v1212 = vunpack.c.l.b16 %v127
  %v1213 = vunpack.c.h.b16 %v127
  %v1214 = vunpack.c.l.b16 %v128
  %v1215 = vunpack.c.h.b16 %v128
  %v1216 = vunpack.c.l.b16 %v129
  %v1217 = vunpack.c.h.b16 %v129
  %v1218 = vunpack.c.l.b16 %v130
  %v1219 = vunpack.c.h.b16 %v130
  %v1220 = vunpack.c.l.b16 %v131
  %v1221 = vunpack.c.h.b16 %v131
  %v1222 = vunpack.c.l.b16 %v132
  %v1223 = vunpack.c.h.b16 %v132
  %v1224 = vunpack.c.l.b16 %v133
  %v1225 = vunpack.c.h.b16 %v133
  %v1226 = vunpack.c.l.b16 %v134
  %v1227 = vunpack.c.h.b16 %v134
  %v1228 = vunpack.c.l.b16 %v135
  %v1229 = vunpack.c.h.b16 %v135
  %v1230 = vunpack.c.l.b16 %v136
  %v1231 = vunpack.c.h.b16 %v136
  %v1232 = vunpack.c.l.b16 %v137
  %v1233 = vunpack.c.h.b16 %v137
  %v1234 = vunpack.c.l.b16 %v138
  %v1235 = vunpack.c.h.b16 %v138
  %v1236 = vunpack.c.l.b16 %v139
  %v1237 = vunpack.c.h.b16 %v139
  %v1238 = vunpack.c.l.b16 %v140
  %v1239 = vunpack.c.h.b16 %v140
  %v1240 = vunpack.c.l.b16 %v141
  %v1241 = vunpack.c.h.b16 %v141
  %v1242 = vunpack.c.l.b16 %v142
  %v1243 = vunpack.c.h.b16 %v142
  %v1244 = vunpack.c.l.b16 %v143
  %v1245 = vunpack.c.h.b16 %v143
  %v1246 = vunpack.c.l.b16 %v144
  %v1247 = vunpack.c.h.b16 %v144
  %v1248 = vunpack.c.l.b16 %v145
  %v1249 = vunpack.c.h.b16 %v145
  %v1250 = vunpack.c.l.b16 %v146
  %v1251 = vunpack.c.h.b16 %v146
  %v1252 = vunpack.c.l.b16 %v147
  %v1253 = vunpack.c.h.b16 %v147
  %v1254 = vunpack.c.l.b16 %v148
  %v1255 = vunpack.c.h.b16 %v148
  %v1256 = vunpack.c.l.b16 %v149
  %v1257 = vunpack.c.h.b16 %v149
  %v1258 = vunpack.c.l.b16 %v150
  %v1259 = vunpack.c.h.b16 %v150
  %v1260 = vunpack.c.l.b16 %v151
  %v1261 = vunpack.c.h.b16 %v151
  %v1262 = vunpack.c.l.b16 %v152
  %v1263 = vunpack.c.h.b16 %v152
  %v1264 = vunpack.c.l.b16 %v153
  %v1265 = vunpack.c.h.b16 %v153
  %v1266 = vunpack.c.l.b16 %v154
  %v1267 = vunpack.c.h.b16 %v154
  %v1268 = vunpack.c.l.b16 %v155
  %v1269 = vunpack.c.h.b16 %v155
  %v1270 = vunpack.c.l.b16 %v156
  %v1271 = vunpack.c.h.b16 %v156
  %v1272 = vunpack.c.l.b16 %v157
  %v1273 = vunpack.c.h.b16 %v157
  %v1274 = vunpack.c.l.b16 %v158
  %v1275 = vunpack.c.h.b16 %v158
  %v1276 = vunpack.c.l.b16 %v159
  %v1277 = vunpack.c.h.b16 %v159
  %v1278 = vunpack.c.l.b16 %v160
  %v1279 = vunpack.c.h.b16 %v160
  %v1280 = vunpack.c.l.b16 %v161
  %v1281 = vunpack.c.h.b16 %v161
  %v1282 = vunpack.c.l.b16 %v162
  %v1283 = vunpack.c.h.b16 %v162
  %v1284 = vunpack.c.l.b16 %v163
  %v1285 = vunpack.c.h.b16 %v163
  %v1286 = vunpack.c.l.b16 %v164
  %v1287 = vunpack.c.h.b16 %v164
  %v1288 = vunpack.c.l.b16 %v165
  %v1289 = vunpack.c.h.b16 %v165
  %v1290 = vunpack.c.l.b16 %v166
  %v1291 = vunpack.c.h.b16 %v166
  %v1292 = vunpack.c.l.b16 %v167
  %v1293 = vunpack.c.h.b16 %v167
  %v1294 = vunpack.c.l.b16 %v168
  %v1295 = vunpack.c.h.b16 %v168
  %v1296 = vunpack.c.l.b16 %v169
  %v1297 = vunpack.c.h.b16 %v169
  %v1298 = vunpack.c.l.b16 %v170
  %v1299 = vunpack.c.h.b16 %v170
  %v1300 = vunpack.c.l.b16 %v171
  %v1301 = vunpack.c.h.b16 %v171
  %v1302 = vunpack.c.l.b16 %v172
  %v1303 = vunpack.c.h.b16 %v172
  %v1304 = vunpack.c.l.b16 %v173
  %v1305 = vunpack.c.h.b16 %v173
  %v1306 = vunpack.c.l.b16 %v174
  %v1307 = vunpack.c.h.b16 %v174
  %v1308 = vunpack.c.l.b16 %v175
  %v1309 = vunpack.c.h.b16 %v175
  %v1310 = vunpack.c.l.b16 %v176
  %v1311 = vunpack.c.h.b16 %v176
  %v1312 = vunpack.c.l.b16 %v177
  %v1313 = vunpack.c.h.b16 %v177
  %v1314 = vunpack.c.l.b16 %v178
  %v1315 = vunpack.c.h.b16 %v178
  %v1316 = vunpack.c.l.b16 %v179
  %v1317 = vunpack.c.h.b16 %v179
  %v1318 = vunpack.c.l.b16 %v180
  %v1319 = vunpack.c.h.b16 %v180
  %v1320 = vunpack.c.l.b16 %v181
  %v1321 = vunpack.c.h.b16 %v181
  %v1322 = vunpack.c.l.b16 %v182
  %v1323 = vunpack.c.h.b16 %v182
  %v1324 = vunpack.c.l.b16 %v183
  %v1325 = vunpack.c.h.b16 %v183
  %v1326 = vunpack.c.l.b16 %v184
  %v1327 = vunpack.c.h.b16 %v184
  %v1328 = vunpack.c.l.b16 %v185
  %v1329 = vunpack.c.h.b16 %v185
  %v1330 = vunpack.c.l.b16 %v186
  %v1331 = vunpack.c.h.b16 %v186
  %v1332 = vunpack.c.l.b16 %v187
  %v1333 = vunpack.c.h.b16 %v187
  %v1334 = vunpack.c.l.b16 %v188
  %v1335 = vunpack.c.h.b16 %v188
  %v1336 = vunpack.c.l.b16 %v189
  %v1337 = vunpack.c.h.b16 %v189
  %v1338 = vunpack.c.l.b16 %v190
  %v1339 = vunpack.c.h.b16 %v190
  %v1340 = vunpack.c.l.b16 %v191
  %v1341 = vunpack.c.h.b16 %v191
  %v1342 = vunpack.c.l.b16 %v192
  %v1343 = vunpack.c.h.b16 %v192
  %v1344 = vunpack.c.l.b16 %v193
  %v1345 = vunpack.c.h.b16 %v193
  %v1346 = vunpack.c.l.b16 %v194
  %v1347 = vunpack.c.h.b16 %v194
  %v1348 = vunpack.c.l.b16 %v195
  %v1349 = vunpack.c.h.b16 %v195
  %v1350 = vunpack.c.l.b16 %v196
  %v1351 = vunpack.c.h.b16 %v196
  %v1352 = vunpack.c.l.b16 %v197
  %v1353 = vunpack.c.h.b16 %v197
  %v1354 = vunpack.c.l.b16 %v198
  %v1355 = vunpack.c.h.b16 %v198
  %v1356 = vunpack.c.l.b16 %v199
  %v1357 = vunpack.c.h.b16 %v199
  %v1358 = vunpack.c.l.b16 %v200
  %v1359 = vunpack.c.h.b16 %v200
  %v1360 = vunpack.c.l.b16 %v201
  %v1361 = vunpack.c.h.b16 %v201
  %v1362 = vunpack.c.l.b16 %v202
  %v1363 = vunpack.c.h.b16 %v202
  %v1364 = vunpack.c.l.b16 %v203
  %v1365 = vunpack.c.h.b16 %v203
  %v1366 = vunpack.c.l.b16 %v204
  %v1367 = vunpack.c.h.b16 %v204
  %v1368 = vunpack.c.l.b16 %v205
  %v1369 = vunpack.c.h.b16 %v205
  %v1370 = vunpack.c.l.b16 %v206
  %v1371 = vunpack.c.h.b16 %v206
  %v1372 = vunpack.c.l.b16 %v207
  %v1373 = vunpack.c.h.b16 %v207
  %v1374 = vunpack.c.l.b16 %v208
  %v1375 = vunpack.c.h.b16 %v208
  %v1376 = vunpack.c.l.b16 %v209
  %v1377 = vunpack.c.h.b16 %v209
  %v1378 = vunpack.c.l.b16 %v210
  %v1379 = vunpack.c.h.b16 %v210
  %v1380 = vunpack.c.l.b16 %v211
  %v1381 = vunpack.c.h.b16 %v211
  %v1382 = vunpack.c.l.b16 %v212
  %v1383 = vunpack.c.h.b16 %v212
  %v1384 = vunpack.c.l.b16 %v213
  %v1385 = vunpack.c.h.b16 %v213
  %v1386 = vunpack.c.l.b16 %v214
  %v1387 = vunpack.c.h.b16 %v214
  %v1388 = vunpack.c.l.b16 %v215
  %v1389 = vunpack.c.h.b16 %v215
  %v1390 = vunpack.c.l.b16 %v216
  %v1391 = vunpack.c.h.b16 %v216
  %v1392 = vunpack.c.l.b16 %v217
  %v1393 = vunpack.c.h.b16 %v217
  %v1394 = vunpack.c.l.b16 %v218
  %v1395 = vunpack.c.h.b16 %v218
  %v1396 = vunpack.c.l.b16 %v219
  %v1397 = vunpack.c.h.b16 %v219
  %v1398 = vunpack.c.l.b16 %v220
  %v1399 = vunpack.c.h.b16 %v220
  %v1400 = vunpack.c.l.b16 %v221
  %v1401 = vunpack.c.h.b16 %v221
  %v1402 = vunpack.c.l.b16 %v222
  %v1403 = vunpack.c.h.b16 %v222
  %v1404 = vunpack.c.l.b16 %v223
  %v1405 = vunpack.c.h.b16 %v223
  %v1406 = vunpack.c.l.b16 %v224
  %v1407 = vunpack.c.h.b16 %v224
  %v1408 = vunpack.c.l.b16 %v225
  %v1409 = vunpack.c.h.b16 %v225
  %v1410 = vunpack.c.l.b16 %v226
  %v1411 = vunpack.c.h.b16 %v226
  %v1412 = vunpack.c.l.b16 %v227
  %v1413 = vunpack.c.h.b16 %v227
  %v1414 = vunpack.c.l.b16 %v228
  %v1415 = vunpack.c.h.b16 %v228
  %v1416 = vunpack.c.l.b16 %v229
  %v1417 = vunpack.c.h.b16 %v229
  %v1418 = vunpack.c.l.b16 %v230
  %v1419 = vunpack.c.h.b16 %v230
  %v1420 = vunpack.c.l.b16 %v231
  %v1421 = vunpack.c.h.b16 %v231
  %v1422 = vunpack.c.l.b16 %v232
  %v1423 = vunpack.c.h.b16 %v232
  %v1424 = vunpack.c.l.b16 %v233
  %v1425 = vunpack.c.h.b16 %v233
  %v1426 = vunpack.c.l.b16 %v234
  %v1427 = vunpack.c.h.b16 %v234
  %v1428 = vunpack.c.l.b16 %v235
  %v1429 = vunpack.c.h.b16 %v235
  %v1430 = vunpack.c.l.b16 %v236
  %v1431 = vunpack.c.h.b16 %v236
  %v1432 = vunpack.c.l.b16 %v237
  %v1433 = vunpack.c.h.b16 %v237
  %v1434 = vunpack.c.l.b16 %v238
  %v1435 = vunpack.c.h.b16 %v238
  %v1436 = vunpack.c.l.b16 %v239
  %v1437 = vunpack.c.h.b16 %v239
  %v1438 = vunpack.c.l.b16 %v240
  %v1439 = vunpack.c.h.b16 %v240
  %v1440 = vunpack.c.l.b16 %v241
  %v1441 = vunpack.c.h.b16 %v241
  %v1442 = vunpack.c.l.b16 %v242
  %v1443 = vunpack.c.h.b16 %v242
  %v1444 = vunpack.c.l.b16 %v243
  %v1445 = vunpack.c.h.b16 %v243
  %v1446 = vunpack.c.l.b16 %v244
  %v1447 = vunpack.c.h.b16 %v244
  %v1448 = vunpack.c.l.b16 %v245
  %v1449 = vunpack.c.h.b16 %v245
  %v1450 = vunpack.c.l.b16 %v246
  %v1451 = vunpack.c.h.b16 %v246
  %v1452 = vunpack.c.l.b16 %v247
  %v1453 = vunpack.c.h.b16 %v247
  %v1454 = vunpack.c.l.b16 %v248
  %v1455 = vunpack.c.h.b16 %v248
  %v1456 = vunpack.c.l.b16 %v249
  %v1457 = vunpack.c.h.b16 %v249
  %v1458 = vunpack.c.l.b16 %v250
  %v1459 = vunpack.c.h.b16 %v250
  %v1460 = vunpack.c.l.b16 %v251
  %v1461 = vunpack.c.h.b16 %v251
  %v1462 = vunpack.c.l.b16 %v252
  %v1463 = vunpack.c.h.b16 %v252
  %v1464 = vunpack.c.l.b16 %v253
  %v1465 = vunpack.c.h.b16 %v253
  %v1466 = vunpack.c.l.b16 %v254
  %v1467 = vunpack.c.h.b16 %v254
  %v1468 = vunpack.c.l.b16 %v255
  %v1469 = vunpack.c.h.b16 %v255
  %v1470 = vunpack.c.l.b16 %v256
  %v1471 = vunpack.c.h.b16 %v256
  %v1472 = vunpack.c.l.b16 %v257
  %v1473 = vunpack.c.h.b16 %v257
  %v1474 = vunpack.c.l.b16 %v258
  %v1475 = vunpack.c.h.b16 %v258
  %v1476 = vunpack.c.l.b16 %v259
  %v1477 = vunpack.c.h.b16 %v259
  %v1478 = vunpack.c.l.b16 %v260
  %v1479 = vunpack.c.h.b16 %v260
  %v1480 = vunpack.c.l.b16 %v261
  %v1481 = vunpack.c.h.b16 %v261
  %v1482 = vunpack.c.l.b16 %v262
  %v1483 = vunpack.c.h.b16 %v262
  %v1484 = vunpack.c.l.b16 %v263
  %v1485 = vunpack.c.h.b16 %v263
  %v1486 = vunpack.c.l.b16 %v264
  %v1487 = vunpack.c.h.b16 %v264
  %v1488 = vunpack.c.l.b16 %v265
  %v1489 = vunpack.c.h.b16 %v265
  %v1490 = vunpack.c.l.b16 %v266
  %v1491 = vunpack.c.h.b16 %v266
  %v1492 = vunpack.c.l.b16 %v267
  %v1493 = vunpack.c.h.b16 %v267
  %v1494 = vunpack.c.l.b16 %v268
  %v1495 = vunpack.c.h.b16 %v268
  %v1496 = vunpack.c.l.b16 %v269
  %v1497 = vunpack.c.h.b16 %v269
  %v1498 = vunpack.c.l.b16 %v270
  %v1499 = vunpack.c.h.b16 %v270
  %v1500 = vunpack.c.l.b16 %v271
  %v1501 = vunpack.c.h.b16 %v271
  %v1502 = vunpack.c.l.b16 %v272
  %v1503 = vunpack.c.h.b16 %v272
  %v1504 = vunpack.c.l.b16 %v273
  %v1505 = vunpack.c.h.b16 %v273
  %v1506 = vunpack.c.l.b16 %v274
  %v1507 = vunpack.c.h.b16 %v274
  %v1508 = vunpack.c.l.b16 %v275
  %v1509 = vunpack.c.h.b16 %v275
  %v1510 = vunpack.c.l.b16 %v276
  %v1511 = vunpack.c.h.b16 %v276
  %v1512 = vunpack.c.l.b16 %v277
  %v1513 = vunpack.c.h.b16 %v277
  %v1514 = vunpack.c.l.b16 %v278
  %v1515 = vunpack.c.h.b16 %v278
  %v1516 = vunpack.c.l.b16 %v279
  %v1517 = vunpack.c.h.b16 %v279
  %v1518 = vunpack.c.l.b16 %v280
  %v1519 = vunpack.c.h.b16 %v280
  %v1520 = vunpack.c.l.b16 %v281
  %v1521 = vunpack.c.h.b16 %v281
  %v1522 = vunpack.c.l.b16 %v282
  %v1523 = vunpack.c.h.b16 %v282
  %v1524 = vunpack.c.l.b16 %v283
  %v1525 = vunpack.c.h.b16 %v283
  %v1526 = vunpack.c.l.b16 %v284
  %v1527 = vunpack.c.h.b16 %v284
  %v1528 = vunpack.c.l.b16 %v285
  %v1529 = vunpack.c.h.b16 %v285
  %v1530 = vunpack.c.l.b16 %v286
  %v1531 = vunpack.c.h.b16 %v286
  %v1532 = vunpack.c.l.b16 %v287
  %v1533 = vunpack.c.h.b16 %v287
  %v1534 = vunpack.c.l.b16 %v288
  %v1535 = vunpack.c.h.b16 %v288
  %v1536 = vunpack.c.l.b16 %v289
  %v1537 = vunpack.c.h.b16 %v289
  %v1538 = vunpack.c.l.b16 %v290
  %v1539 = vunpack.c.h.b16 %v290
  %v1540 = vunpack.c.l.b16 %v291
  %v1541 = vunpack.c.h.b16 %v291
  %v1542 = vunpack.c.l.b16 %v292
  %v1543 = vunpack.c.h.b16 %v292
  %v1544 = vunpack.c.l.b16 %v293
  %v1545 = vunpack.c.h.b16 %v293
  %v1546 = vunpack.c.l.b16 %v294
  %v1547 = vunpack.c.h.b16 %v294
  %v1548 = vunpack.c.l.b16 %v295
  %v1549 = vunpack.c.h.b16 %v295
  %v1550 = vunpack.c.l.b16 %v296
  %v1551 = vunpack.c.h.b16 %v296
  %v1552 = vunpack.c.l.b16 %v297
  %v1553 = vunpack.c.h.b16 %v297
  %v1554 = vunpack.c.l.b16 %v298
  %v1555 = vunpack.c.h.b16 %v298
  %v1556 = vunpack.c.l.b16 %v299
  %v1557 = vunpack.c.h.b16 %v299
  %v1558 = vunpack.c.l.b16 %v300
  %v1559 = vunpack.c.h.b16 %v300
  %v1560 = vunpack.c.l.b16 %v301
  %v1561 = vunpack.c.h.b16 %v301
  %v1562 = vunpack.c.l.b16 %v302
  %v1563 = vunpack.c.h.b16 %v302
  %v1564 = vunpack.c.l.b16 %v303
  %v1565 = vunpack.c.h.b16 %v303
  %v1566 = vunpack.c.l.b16 %v304
  %v1567 = vunpack.c.h.b16 %v304
  %v1568 = vunpack.c.l.b16 %v305
  %v1569 = vunpack.c.h.b16 %v305
  %v1570 = vunpack.c.l.b16 %v306
  %v1571 = vunpack.c.h.b16 %v306
  %v1572 = vunpack.c.l.b16 %v307
  %v1573 = vunpack.c.h.b16 %v307
  %v1574 = vunpack.c.l.b16 %v308
  %v1575 = vunpack.c.h.b16 %v308
  %v1576 = vunpack.c.l.b16 %v309
  %v1577 = vunpack.c.h.b16 %v309
  %v1578 = vunpack.c.l.b16 %v310
  %v1579 = vunpack.c.h.b16 %v310
  %v1580 = vunpack.c.l.b16 %v311
  %v1581 = vunpack.c.h.b16 %v311
  %v1582 = vunpack.c.l.b16 %v312
  %v1583 = vunpack.c.h.b16 %v312
  %v1584 = vunpack.c.l.b16 %v313
  %v1585 = vunpack.c.h.b16 %v313
  %v1586 = vunpack.c.l.b16 %v314
  %v1587 = vunpack.c.h.b16 %v314
  %v1588 = vunpack.c.l.b16 %v315
  %v1589 = vunpack.c.h.b16 %v315
  %v1590 = vunpack.c.l.b16 %v316
  %v1591 = vunpack.c.h.b16 %v316
  %v1592 = vunpack.c.l.b16 %v317
  %v1593 = vunpack.c.h.b16 %v317
  %v1594 = vunpack.c.l.b16 %v318
  %v1595 = vunpack.c.h.b16 %v318
  %v1596 = vunpack.c.l.b16 %v319
  %v1597 = vunpack.c.h.b16 %v319
  %v1598 = vunpack.c.l.b16 %v320
  %v1599 = vunpack.c.h.b16 %v320
  %v1600 = vunpack.c.l.b16 %v321
  %v1601 = vunpack.c.h.b16 %v321
  %v1602 = vunpack.c.l.b16 %v322
  %v1603 = vunpack.c.h.b16 %v322
  %v1604 = vunpack.c.l.b16 %v323
  %v1605 = vunpack.c.h.b16 %v323
  %v1606 = vunpack.c.l.b16 %v324
  %v1607 = vunpack.c.h.b16 %v324
  %v1608 = vunpack.c.l.b16 %v325
  %v1609 = vunpack.c.h.b16 %v325
  %v1610 = vunpack.c.l.b16 %v326
  %v1611 = vunpack.c.h.b16 %v326
  %v1612 = vunpack.c.l.b16 %v327
  %v1613 = vunpack.c.h.b16 %v327
  %v1614 = vunpack.c.l.b16 %v328
  %v1615 = vunpack.c.h.b16 %v328
  %v1616 = vunpack.c.l.b16 %v329
  %v1617 = vunpack.c.h.b16 %v329
  %v1618 = vunpack.c.l.b16 %v330
  %v1619 = vunpack.c.h.b16 %v330
  %v1620 = vunpack.c.l.b16 %v331
  %v1621 = vunpack.c.h.b16 %v331
  %v1622 = vunpack.c.l.b16 %v332
  %v1623 = vunpack.c.h.b16 %v332
  %v1624 = vunpack.c.l.b16 %v333
  %v1625 = vunpack.c.h.b16 %v333
  %v1626 = vunpack.c.l.b16 %v334
  %v1627 = vunpack.c.h.b16 %v334
  %v1628 = vunpack.c.l.b16 %v335
  %v1629 = vunpack.c.h.b16 %v335
  %v1630 = vunpack.c.l.b16 %v336
  %v1631 = vunpack.c.h.b16 %v336
  %v1632 = vunpack.c.l.b16 %v337
  %v1633 = vunpack.c.h.b16 %v337
  %v1634 = vunpack.c.l.b16 %v338
  %v1635 = vunpack.c.h.b16 %v338
  %v1636 = vunpack.c.l.b16 %v339
  %v1637 = vunpack.c.h.b16 %v339
  %v1638 = vunpack.c.l.b16 %v340
  %v1639 = vunpack.c.h.b16 %v340
  %v1640 = vunpack.c.l.b16 %v341
  %v1641 = vunpack.c.h.b16 %v341
  %v1642 = vunpack.c.l.b16 %v342
  %v1643 = vunpack.c.h.b16 %v342
  %v1644 = vunpack.c.l.b16 %v343
  %v1645 = vunpack.c.h.b16 %v343
  %v1646 = vunpack.c.l.b16 %v344
  %v1647 = vunpack.c.h.b16 %v344
  %v1648 = vunpack.c.l.b16 %v345
  %v1649 = vunpack.c.h.b16 %v345
  %v1650 = vunpack.c.l.b16 %v346
  %v1651 = vunpack.c.h.b16 %v346
  %v1652 = vunpack.c.l.b16 %v347
  %v1653 = vunpack.c.h.b16 %v347
  %v1654 = vunpack.c.l.b16 %v348
  %v1655 = vunpack.c.h.b16 %v348
  %v1656 = vunpack.c.l.b16 %v349
  %v1657 = vunpack.c.h.b16 %v349
  %v1658 = vunpack.c.l.b16 %v350
  %v1659 = vunpack.c.h.b16 %v350
  %v1660 = vunpack.c.l.b16 %v351
  %v1661 = vunpack.c.h.b16 %v351
  %v1662 = vunpack.c.l.b16 %v352
  %v1663 = vunpack.c.h.b16 %v352
  %v1664 = vunpack.c.l.b16 %v353
  %v1665 = vunpack.c.h.b16 %v353
  %v1666 = vunpack.c.l.b16 %v354
  %v1667 = vunpack.c.h.b16 %v354
  %v1668 = vunpack.c.l.b16 %v355
  %v1669 = vunpack.c.h.b16 %v355
  %v1670 = vunpack.c.l.b16 %v356
  %v1671 = vunpack.c.h.b16 %v356
  %v1672 = vunpack.c.l.b16 %v357
  %v1673 = vunpack.c.h.b16 %v357
  %v1674 = vunpack.c.l.b16 %v358
  %v1675 = vunpack.c.h.b16 %v358
  %v1676 = vunpack.c.l.b16 %v359
  %v1677 = vunpack.c.h.b16 %v359
  %v1678 = vunpack.c.l.b16 %v360
  %v1679 = vunpack.c.h.b16 %v360
  %v1680 = vunpack.c.l.b16 %v361
  %v1681 = vunpack.c.h.b16 %v361
  %v1682 = vunpack.c.l.b16 %v362
  %v1683 = vunpack.c.h.b16 %v362
  %v1684 = vunpack.c.l.b16 %v363
  %v1685 = vunpack.c.h.b16 %v363
  %v1686 = vunpack.c.l.b16 %v364
  %v1687 = vunpack.c.h.b16 %v364
  %v1688 = vunpack.c.l.b16 %v365
  %v1689 = vunpack.c.h.b16 %v365
  %v1690 = vunpack.c.l.b16 %v366
  %v1691 = vunpack.c.h.b16 %v366
  %v1692 = vunpack.c.l.b16 %v367
  %v1693 = vunpack.c.h.b16 %v367
  %v1694 = vunpack.c.l.b16 %v368
  %v1695 = vunpack.c.h.b16 %v368
  %v1696 = vunpack.c.l.b16 %v369
  %v1697 = vunpack.c.h.b16 %v369
  %v1698 = vunpack.c.l.b16 %v370
  %v1699 = vunpack.c.h.b16 %v370
  %v1700 = vunpack.c.l.b16 %v371
  %v1701 = vunpack.c.h.b16 %v371
  %v1702 = vunpack.c.l.b16 %v372
  %v1703 = vunpack.c.h.b16 %v372
  %v1704 = vunpack.c.l.b16 %v373
  %v1705 = vunpack.c.h.b16 %v373
  %v1706 = vunpack.c.l.b16 %v374
  %v1707 = vunpack.c.h.b16 %v374
  %v1708 = vunpack.c.l.b16 %v375
  %v1709 = vunpack.c.h.b16 %v375
  %v1710 = vunpack.c.l.b16 %v376
  %v1711 = vunpack.c.h.b16 %v376
  %v1712 = vunpack.c.l.b16 %v377
  %v1713 = vunpack.c.h.b16 %v377
  %v1714 = vunpack.c.l.b16 %v378
  %v1715 = vunpack.c.h.b16 %v378
  %v1716 = vunpack.c.l.b16 %v379
  %v1717 = vunpack.c.h.b16 %v379
  %v1718 = vunpack.c.l.b16 %v380
  %v1719 = vunpack.c.h.b16 %v380
  %v1720 = vunpack.c.l.b16 %v381
  %v1721 = vunpack.c.h.b16 %v381
  %v1722 = vunpack.c.l.b16 %v382
  %v1723 = vunpack.c.h.b16 %v382
  %v1724 = vunpack.c.l.b16 %v383
  %v1725 = vunpack.c.h.b16 %v383
  %v1726 = vunpack.c.l.b16 %v384
  %v1727 = vunpack.c.h.b16 %v384
  %v1728 = vunpack.c.l.b16 %v385
  %v1729 = vunpack.c.h.b16 %v385
  %v1730 = vunpack.c.l.b16 %v386
  %v1731 = vunpack.c.h.b16 %v386
  %v1732 = vunpack.c.l.b16 %v387
  %v1733 = vunpack.c.h.b16 %v387
  %v1734 = vunpack.c.l.b16 %v388
  %v1735 = vunpack.c.h.b16 %v388
  %v1736 = vunpack.c.l.b16 %v389
  %v1737 = vunpack.c.h.b16 %v389
  %v1738 = vunpack.c.l.b16 %v390
  %v1739 = vunpack.c.h.b16 %v390
  %v1740 = vunpack.c.l.b16 %v391
  %v1741 = vunpack.c.h.b16 %v391
  %v1742 = vunpack.c.l.b16 %v392
  %v1743 = vunpack.c.h.b16 %v392
  %v1744 = vunpack.c.l.b16 %v393
  %v1745 = vunpack.c.h.b16 %v393
  %v1746 = vunpack.c.l.b16 %v394
  %v1747 = vunpack.c.h.b16 %v394
  %v1748 = vunpack.c.l.b16 %v395
  %v1749 = vunpack.c.h.b16 %v395
  %v1750 = vunpack.c.l.b16 %v396
  %v1751 = vunpack.c.h.b16 %v396
  %v1752 = vunpack.c.l.b16 %v397
  %v1753 = vunpack.c.h.b16 %v397
  %v1754 = vunpack.c.l.b16 %v398
  %v1755 = vunpack.c.h.b16 %v398
  %v1756 = vunpack.c.l.b16 %v399
  %v1757 = vunpack.c.h.b16 %v399
  %v1758 = vunpack.c.l.b16 %v400
  %v1759 = vunpack.c.h.b16 %v400
  %v1760 = vunpack.c.l.b16 %v401
  %v1761 = vunpack.c.h.b16 %v401
  %v1762 = vunpack.c.l.b16 %v402
  %v1763 = vunpack.c.h.b16 %v402
  %v1764 = vunpack.c.l.b16 %v403
  %v1765 = vunpack.c.h.b16 %v403
  %v1766 = vunpack.c.l.b16 %v404
  %v1767 = vunpack.c.h.b16 %v404
  %v1768 = vunpack.c.l.b16 %v405
  %v1769 = vunpack.c.h.b16 %v405
  %v1770 = vunpack.c.l.b16 %v406
  %v1771 = vunpack.c.h.b16 %v406
  %v1772 = vunpack.c.l.b16 %v407
  %v1773 = vunpack.c.h.b16 %v407
  %v1774 = vunpack.c.l.b16 %v408
  %v1775 = vunpack.c.h.b16 %v408
  %v1776 = vunpack.c.l.b16 %v409
  %v1777 = vunpack.c.h.b16 %v409
  %v1778 = vunpack.c.l.b16 %v410
  %v1779 = vunpack.c.h.b16 %v410
  %v1780 = vunpack.c.l.b16 %v411
  %v1781 = vunpack.c.h.b16 %v411
  %v1782 = vunpack.c.l.b16 %v412
  %v1783 = vunpack.c.h.b16 %v412
  %v1784 = vunpack.c.l.b16 %v413
  %v1785 = vunpack.c.h.b16 %v413
  %v1786 = vunpack.c.l.b16 %v414
  %v1787 = vunpack.c.h.b16 %v414
  %v1788 = vunpack.c.l.b16 %v415
  %v1789 = vunpack.c.h.b16 %v415
  %v1790 = vunpack.c.l.b16 %v416
  %v1791 = vunpack.c.h.b16 %v416
  %v1792 = vunpack.c.l.b16 %v417
  %v1793 = vunpack.c.h.b16 %v417
  %v1794 = vunpack.c.l.b16 %v418
  %v1795 = vunpack.c.h.b16 %v418
  %v1796 = vunpack.c.l.b16 %v419
  %v1797 = vunpack.c.h.b16 %v419
  %v1798 = vunpack.c.l.b16 %v420
  %v1799 = vunpack.c.h.b16 %v420
  %v1800 = vunpack.c.l.b16 %v421
  %v1801 = vunpack.c.h.b16 %v421
  %v1802 = vunpack.c.l.b16 %v422
  %v1803 = vunpack.c.h.b16 %v422
  %v1804 = vunpack.c.l.b16 %v423
  %v1805 = vunpack.c.h.b16 %v423
  %v1806 = vunpack.c.l.b16 %v424
  %v1807 = vunpack.c.h.b16 %v424
  %v1808 = vunpack.c.l.b16 %v425
  %v1809 = vunpack.c.h.b16 %v425
  %v1810 = vunpack.c.l.b16 %v426
  %v1811 = vunpack.c.h.b16 %v426
  %v1812 = vunpack.c.l.b16 %v427
  %v1813 = vunpack.c.h.b16 %v427
  %v1814 = vunpack.c.l.b16 %v428
  %v1815 = vunpack.c.h.b16 %v428
  %v1816 = vunpack.c.l.b16 %v429
  %v1817 = vunpack.c.h.b16 %v429
  %v1818 = vunpack.c.l.b16 %v430
  %v1819 = vunpack.c.h.b16 %v430
  %v1820 = vunpack.c.l.b16 %v431
  %v1821 = vunpack.c.h.b16 %v431
  %v1822 = vunpack.c.l.b16 %v432
  %v1823 = vunpack.c.h.b16 %v432
  %v1824 = vunpack.c.l.b16 %v433
  %v1825 = vunpack.c.h.b16 %v433
  %v1826 = vunpack.c.l.b16 %v434
  %v1827 = vunpack.c.h.b16 %v434
  %v1828 = vunpack.c.l.b16 %v435
  %v1829 = vunpack.c.h.b16 %v435
  %v1830 = vunpack.c.l.b16 %v436
  %v1831 = vunpack.c.h.b16 %v436
  %v1832 = vunpack.c.l.b16 %v437
  %v1833 = vunpack.c.h.b16 %v437
  %v1834 = vunpack.c.l.b16 %v438
  %v1835 = vunpack.c.h.b16 %v438
  %v1836 = vunpack.c.l.b16 %v439
  %v1837 = vunpack.c.h.b16 %v439
  %v1838 = vunpack.c.l.b16 %v440
  %v1839 = vunpack.c.h.b16 %v440
  %v1840 = vunpack.c.l.b16 %v441
  %v1841 = vunpack.c.h.b16 %v441
  %v1842 = vunpack.c.l.b16 %v442
  %v1843 = vunpack.c.h.b16 %v442
  %v1844 = vunpack.c.l.b16 %v443
  %v1845 = vunpack.c.h.b16 %v443
  %v1846 = vunpack.c.l.b16 %v444
  %v1847 = vunpack.c.h.b16 %v444
  %v1848 = vunpack.c.l.b16 %v445
  %v1849 = vunpack.c.h.b16 %v445
  %v1850 = vunpack.c.l.b16 %v446
  %v1851 = vunpack.c.h.b16 %v446
  %v1852 = vunpack.c.l.b16 %v447
  %v1853 = vunpack.c.h.b16 %v447
  %v1854 = vunpack.c.l.b16 %v448
  %v1855 = vunpack.c.h.b16 %v448
  %v1856 = vunpack.c.l.b16 %v449
  %v1857 = vunpack.c.h.b16 %v449
  %v1858 = vunpack.c.l.b16 %v450
  %v1859 = vunpack.c.h.b16 %v450
  %v1860 = vunpack.c.l.b16 %v451
  %v1861 = vunpack.c.h.b16 %v451
  %v1862 = vunpack.c.l.b16 %v452
  %v1863 = vunpack.c.h.b16 %v452
  %v1864 = vunpack.c.l.b16 %v453
  %v1865 = vunpack.c.h.b16 %v453
  %v1866 = vunpack.c.l.b16 %v454
  %v1867 = vunpack.c.h.b16 %v454
  %v1868 = vunpack.c.l.b16 %v455
  %v1869 = vunpack.c.h.b16 %v455
  %v1870 = vpack.c.b16 %v1072, %v1070
  %v1871 = vpack.c.b16 %v1073, %v1071
  %v1872 = vpack.c.b16 %v1076, %v1074
  %v1873 = vpack.c.b16 %v1077, %v1075
  %v1874 = vpack.c.b16 %v1080, %v1078
  %v1875 = vpack.c.b16 %v1081, %v1079
  %v1876 = vpack.c.b16 %v1084, %v1082
  %v1877 = vpack.c.b16 %v1085, %v1083
  %v1878 = vpack.c.b16 %v1088, %v1086
  %v1879 = vpack.c.b16 %v1089, %v1087
  %v1880 = vpack.c.b16 %v1092, %v1090
  %v1881 = vpack.c.b16 %v1093, %v1091
  %v1882 = vpack.c.b16 %v1096, %v1094
  %v1883 = vpack.c.b16 %v1097, %v1095
  %v1884 = vpack.c.b16 %v1100, %v1098
  %v1885 = vpack.c.b16 %v1101, %v1099
  %v1886 = vpack.c.b16 %v1104, %v1102
  %v1887 = vpack.c.b16 %v1105, %v1103
  %v1888 = vpack.c.b16 %v1108, %v1106
  %v1889 = vpack.c.b16 %v1109, %v1107
  %v1890 = vpack.c.b16 %v1112, %v1110
  %v1891 = vpack.c.b16 %v1113, %v1111
  %v1892 = vpack.c.b16 %v1116, %v1114
  %v1893 = vpack.c.b16 %v1117, %v1115
  %v1894 = vpack.c.b16 %v1120, %v1118
  %v1895 = vpack.c.b16 %v1121, %v1119
  %v1896 = vpack.c.b16 %v1124, %v1122
  %v1897 = vpack.c.b16 %v1125, %v1123
  %v1898 = vpack.c.b16 %v1128, %v1126
  %v1899 = vpack.c.b16 %v1129, %v1127
  %v1900 = vpack.c.b16 %v1132, %v1130
  %v1901 = vpack.c.b16 %v1133, %v1131
  %v1902 = vpack.c.b16 %v1136, %v1134
  %v1903 = vpack.c.b16 %v1137, %v1135
  %v1904 = vpack.c.b16 %v1140, %v1138
  %v1905 = vpack.c.b16 %v1141, %v1139
  %v1906 = vpack.c.b16 %v1144, %v1142
  %v1907 = vpack.c.b16 %v1145, %v1143
  %v1908 = vpack.c.b16 %v1148, %v1146
  %v1909 = vpack.c.b16 %v1149, %v1147
  %v1910 = vpack.c.b16 %v1152, %v1150
  %v1911 = vpack.c.b16 %v1153, %v1151
  %v1912 = vpack.c.b16 %v1156, %v1154
  %v1913 = vpack.c.b16 %v1157, %v1155
  %v1914 = vpack.c.b16 %v1160, %v1158
  %v1915 = vpack.c.b16 %v1161, %v1159
  %v1916 = vpack.c.b16 %v1164, %v1162
  %v1917 = vpack.c.b16 %v1165, %v1163
  %v1918 = vpack.c.b16 %v1168, %v1166
  %v1919 = vpack.c.b16 %v1169, %v1167
  %v1920 = vpack.c.b16 %v1172, %v1170
  %v1921 = vpack.c.b16 %v1173, %v1171
  %v1922 = vpack.c.b16 %v1176, %v1174
  %v1923 = vpack.c.b16 %v1177, %v1175
  %v1924 = vpack.c.b16 %v1180, %v1178
  %v1925 = vpack.c.b16 %v1181, %v1179
  %v1926 = vpack.c.b16 %v1184, %v1182
  %v1927 = vpack.c.b16 %v1185, %v1183
  %v1928 = vpack.c.b16 %v1188, %v1186
  %v1929 = vpack.c.b16 %v1189, %v1187
  %v1930 = vpack.c.b16 %v1192, %v1190
  %v1931 = vpack.c.b16 %v1193, %v1191
  %v1932 = vpack.c.b16 %v1196, %v1194
  %v1933 = vpack.c.b16 %v1197, %v1195
  %v1934 = vpack.c.b16 %v1200, %v1198
  %v1935 = vpack.c.b16 %v1201, %v1199
  %v1936 = vpack.c.b16 %v1204, %v1202
  %v1937 = vpack.c.b16 %v1205, %v1203
  %v1938 = vpack.c.b16 %v1208, %v1206
  %v1939 = vpack.c.b16 %v1209, %v1207
  %v1940 = vpack.c.b16 %v1212, %v1210
  %v1941 = vpack.c.b16 %v1213, %v1211
  %v1942 = vpack.c.b16 %v1216, %v1214
  %v1943 = vpack.c.b16 %v1217, %v1215
  %v1944 = vpack.c.b16 %v1220, %v1218
  %v1945 = vpack.c.b16 %v1221, %v1219
  %v1946 = vpack.c.b16 %v1224, %v1222
  %v1947 = vpack.c.b16 %v1225, %v1223
  %v1948 = vpack.c.b16 %v1228, %v1226
  %v1949 = vpack.c.b16 %v1229, %v1227
  %v1950 = vpack.c.b16 %v1232, %v1230
  %v1951 = vpack.c.b16 %v1233, %v1231
  %v1952 = vpack.c.b16 %v1236, %v1234
  %v1953 = vpack.c.b16 %v1237, %v1235
  %v1954 = vpack.c.b16 %v1240, %v1238
  %v1955 = vpack.c.b16 %v1241, %v1239
  %v1956 = vpack.c.b16 %v1244, %v1242
  %v1957 = vpack.c.b16 %v1245, %v1243
  %v1958 = vpack.c.b16 %v1248, %v1246
  %v1959 = vpack.c.b16 %v1249, %v1247
  %v1960 = vpack.c.b16 %v1252, %v1250
  %v1961 = vpack.c.b16 %v1253, %v1251
  %v1962 = vpack.c.b16 %v1256, %v1254
  %v1963 = vpack.c.b16 %v1257, %v1255
  %v1964 = vpack.c.b16 %v1260, %v1258
  %v1965 = vpack.c.b16 %v1261, %v1259
  %v1966 = vpack.c.b16 %v1264, %v1262
  %v1967 = vpack.c.b16 %v1265, %v1263
  %v1968 = vpack.c.b16 %v1268, %v1266
  %v1969 = vpack.c.b16 %v1269, %v1267
  %v1970 = vpack.c.b16 %v1272, %v1270
  %v1971 = vpack.c.b16 %v1273, %v1271
  %v1972 = vpack.c.b16 %v1276, %v1274
  %v1973 = vpack.c.b16 %v1277, %v1275
  %v1974 = vpack.c.b16 %v1280, %v1278
  %v1975 = vpack.c.b16 %v1281, %v1279
  %v1976 = vpack.c.b16 %v1284, %v1282
  %v1977 = vpack.c.b16 %v1285, %v1283
  %v1978 = vpack.c.b16 %v1288, %v1286
  %v1979 = vpack.c.b16 %v1289, %v1287
  %v1980 = vpack.c.b16 %v1292, %v1290
  %v1981 = vpack.c.b16 %v1293, %v1291
  %v1982 = vpack.c.b16 %v1296, %v1294
  %v1983 = vpack.c.b16 %v1297, %v1295
  %v1984 = vpack.c.b16 %v1300, %v1298
  %v1985 = vpack.c.b16 %v1301, %v1299
  %v1986 = vpack.c.b16 %v1304, %v1302
  %v1987 = vpack.c.b16 %v1305, %v1303
  %v1988 = vpack.c.b16 %v1308, %v1306
  %v1989 = vpack.c.b16 %v1309, %v1307
  %v1990 = vpack.c.b16 %v1312, %v1310
  %v1991 = vpack.c.b16 %v1313, %v1311
  %v1992 = vpack.c.b16 %v1316, %v1314
  %v1993 = vpack.c.b16 %v1317, %v1315
  %v1994 = vpack.c.b16 %v1320, %v1318
  %v1995 = vpack.c.b16 %v1321, %v1319
  %v1996 = vpack.c.b16 %v1324, %v1322
  %v1997 = vpack.c.b16 %v1325, %v1323
  %v1998 = vpack.c.b16 %v1328, %v1326
  %v1999 = vpack.c.b16 %v1329, %v1327
  %v2000 = vpack.c.b16 %v1332, %v1330
  %v2001 = vpack.c.b16 %v1333, %v1331
  %v2002 = vpack.c.b16 %v1336, %v1334
  %v2003 = vpack.c.b16 %v1337, %v1335
  %v2004 = vpack.c.b16 %v1340, %v1338
  %v2005 = vpack.c.b16 %v1341, %v1339
  %v2006 = vpack.c.b16 %v1344, %v1342
  %v2007 = vpack.c.b16 %v1345, %v1343
  %v2008 = vpack.c.b16 %v1348, %v1346
  %v2009 = vpack.c.b16 %v1349, %v1347
  %v2010 = vpack.c.b16 %v1352, %v1350
  %v2011 = vpack.c.b16 %v1353, %v1351
  %v2012 = vpack.c.b16 %v1356, %v1354
  %v2013 = vpack.c.b16 %v1357, %v1355
  %v2014 = vpack.c.b16 %v1360, %v1358
  %v2015 = vpack.c.b16 %v1361, %v1359
  %v2016 = vpack.c.b16 %v1364, %v1362
  %v2017 = vpack.c.b16 %v1365, %v1363
  %v2018 = vpack.c.b16 %v1368, %v1366
  %v2019 = vpack.c.b16 %v1369, %v1367
  %v2020 = vpack.c.b16 %v1372, %v1370
  %v2021 = vpack.c.b16 %v1373, %v1371
  %v2022 = vpack.c.b16 %v1376, %v1374
  %v2023 = vpack.c.b16 %v1377, %v1375
  %v2024 = vpack.c.b16 %v1380, %v1378
  %v2025 = vpack.c.b16 %v1381, %v1379
  %v2026 = vpack.c.b16 %v1384, %v1382
  %v2027 = vpack.c.b16 %v1385, %v1383
  %v2028 = vpack.c.b16 %v1388, %v1386
  %v2029 = vpack.c.b16 %v1389, %v1387
  %v2030 = vpack.c.b16 %v1392, %v1390
  %v2031 = vpack.c.b16 %v1393, %v1391
  %v2032 = vpack.c.b16 %v1396, %v1394
  %v2033 = vpack.c.b16 %v1397, %v1395
  %v2034 = vpack.c.b16 %v1400, %v1398
  %v2035 = vpack.c.b16 %v1401, %v1399
  %v2036 = vpack.c.b16 %v1404, %v1402
  %v2037 = vpack.c.b16 %v1405, %v1403
  %v2038 = vpack.c.b16 %v1408, %v1406
  %v2039 = vpack.c.b16 %v1409, %v1407
  %v2040 = vpack.c.b16 %v1412, %v1410
  %v2041 = vpack.c.b16 %v1413, %v1411
  %v2042 = vpack.c.b16 %v1416, %v1414
  %v2043 = vpack.c.b16 %v1417, %v1415
  %v2044 = vpack.c.b16 %v1420, %v1418
  %v2045 = vpack.c.b16 %v1421, %v1419
  %v2046 = vpack.c.b16 %v1424, %v1422
  %v2047 = vpack.c.b16 %v1425, %v1423
  %v2048 = vpack.c.b16 %v1428, %v1426
  %v2049 = vpack.c.b16 %v1429, %v1427
  %v2050 = vpack.c.b16 %v1432, %v1430
  %v2051 = vpack.c.b16 %v1433, %v1431
  %v2052 = vpack.c.b16 %v1436, %v1434
  %v2053 = vpack.c.b16 %v1437, %v1435
  %v2054 = vpack.c.b16 %v1440, %v1438
  %v2055 = vpack.c.b16 %v1441, %v1439
  %v2056 = vpack.c.b16 %v1444, %v1442
  %v2057 = vpack.c.b16 %v1445, %v1443
  %v2058 = vpack.c.b16 %v1448, %v1446
  %v2059 = vpack.c.b16 %v1449, %v1447
  %v2060 = vpack.c.b16 %v1452, %v1450
  %v2061 = vpack.c.b16 %v1453, %v1451
  %v2062 = vpack.c.b16 %v1456, %v1454
  %v2063 = vpack.c.b16 %v1457, %v1455
  %v2064 = vpack.c.b16 %v1460, %v1458
  %v2065 = vpack.c.b16 %v1461, %v1459
  %v2066 = vpack.c.b16 %v1464, %v1462
  %v2067 = vpack.c.b16 %v1465, %v1463
  %v2068 = vpack.c.b16 %v1468, %v1466
  %v2069 = vpack.c.b16 %v1469, %v1467
  %v2070 = vpack.c.b16 %v1472, %v1470
  %v2071 = vpack.c.b16 %v1473, %v1471
  %v2072 = vpack.c.b16 %v1476, %v1474
  %v2073 = vpack.c.b16 %v1477, %v1475
  %v2074 = vpack.c.b16 %v1480, %v1478
  %v2075 = vpack.c.b16 %v1481, %v1479
  %v2076 = vpack.c.b16 %v1484, %v1482
  %v2077 = vpack.c.b16 %v1485, %v1483
  %v2078 = vpack.c.b16 %v1488, %v1486
  %v2079 = vpack.c.b16 %v1489, %v1487
  %v2080 = vpack.c.b16 %v1492, %v1490
  %v2081 = vpack.c.b16 %v1493, %v1491
  %v2082 = vpack.c.b16 %v1496, %v1494
  %v2083 = vpack.c.b16 %v1497, %v1495
  %v2084 = vpack.c.b16 %v1500, %v1498
  %v2085 = vpack.c.b16 %v1501, %v1499
  %v2086 = vpack.c.b16 %v1504, %v1502
  %v2087 = vpack.c.b16 %v1505, %v1503
  %v2088 = vpack.c.b16 %v1508, %v1506
  %v2089 = vpack.c.b16 %v1509, %v1507
  %v2090 = vpack.c.b16 %v1512, %v1510
  %v2091 = vpack.c.b16 %v1513, %v1511
  %v2092 = vpack.c.b16 %v1516, %v1514
  %v2093 = vpack.c.b16 %v1517, %v1515
  %v2094 = vpack.c.b16 %v1520, %v1518
  %v2095 = vpack.c.b16 %v1521, %v1519
  %v2096 = vpack.c.b16 %v1524, %v1522
  %v2097 = vpack.c.b16 %v1525, %v1523
  %v2098 = vpack.c.b16 %v1528, %v1526
  %v2099 = vpack.c.b16 %v1529, %v1527
  %v2100 = vpack.c.b16 %v1532, %v1530
  %v2101 = vpack.c.b16 %v1533, %v1531
  %v2102 = vpack.c.b16 %v1536, %v1534
  %v2103 = vpack.c.b16 %v1537, %v1535
  %v2104 = vpack.c.b16 %v1540, %v1538
  %v2105 = vpack.c.b16 %v1541, %v1539
  %v2106 = vpack.c.b16 %v1544, %v1542
  %v2107 = vpack.c.b16 %v1545, %v1543
  %v2108 = vpack.c.b16 %v1548, %v1546
  %v2109 = vpack.c.b16 %v1549, %v1547
  %v2110 = vpack.c.b16 %v1552, %v1550
  %v2111 = vpack.c.b16 %v1553, %v1551
  %v2112 = vpack.c.b16 %v1556, %v1554
  %v2113 = vpack.c.b16 %v1557, %v1555
  %v2114 = vpack.c.b16 %v1560, %v1558
  %v2115 = vpack.c.b16 %v1561, %v1559
  %v2116 = vpack.c.b16 %v1564, %v1562
  %v2117 = vpack.c.b16 %v1565, %v1563
  %v2118 = vpack.c.b16 %v1568, %v1566
  %v2119 = vpack.c.b16 %v1569, %v1567
  %v2120 = vpack.c.b16 %v1572, %v1570
  %v2121 = vpack.c.b16 %v1573, %v1571
  %v2122 = vpack.c.b16 %v1576, %v1574
  %v2123 = vpack.c.b16 %v1577, %v1575
  %v2124 = vpack.c.b16 %v1580, %v1578
  %v2125 = vpack.c.b16 %v1581, %v1579
  %v2126 = vpack.c.b16 %v1584, %v1582
  %v2127 = vpack.c.b16 %v1585, %v1583
  %v2128 = vpack.c.b16 %v1588, %v1586
  %v2129 = vpack.c.b16 %v1589, %v1587
  %v2130 = vpack.c.b16 %v1592, %v1590
  %v2131 = vpack.c.b16 %v1593, %v1591
  %v2132 = vpack.c.b16 %v1596, %v1594
  %v2133 = vpack.c.b16 %v1597, %v1595
  %v2134 = vpack.c.b16 %v1600, %v1598
  %v2135 = vpack.c.b16 %v1601, %v1599
  %v2136 = vpack.c.b16 %v1604, %v1602
  %v2137 = vpack.c.b16 %v1605, %v1603
  %v2138 = vpack.c.b16 %v1608, %v1606
  %v2139 = vpack.c.b16 %v1609, %v1607
  %v2140 = vpack.c.b16 %v1612, %v1610
  %v2141 = vpack.c.b16 %v1613, %v1611
  %v2142 = vpack.c.b16 %v1616, %v1614
  %v2143 = vpack.c.b16 %v1617, %v1615
  %v2144 = vpack.c.b16 %v1620, %v1618
  %v2145 = vpack.c.b16 %v1621, %v1619
  %v2146 = vpack.c.b16 %v1624, %v1622
  %v2147 = vpack.c.b16 %v1625, %v1623
  %v2148 = vpack.c.b16 %v1628, %v1626
  %v2149 = vpack.c.b16 %v1629, %v1627
  %v2150 = vpack.c.b16 %v1632, %v1630
  %v2151 = vpack.c.b16 %v1633, %v1631
  %v2152 = vpack.c.b16 %v1636, %v1634
  %v2153 = vpack.c.b16 %v1637, %v1635
  %v2154 = vpack.c.b16 %v1640, %v1638
  %v2155 = vpack.c.b16 %v1641, %v1639
  %v2156 = vpack.c.b16 %v1644, %v1642
  %v2157 = vpack.c.b16 %v1645, %v1643
  %v2158 = vpack.c.b16 %v1648, %v1646
  %v2159 = vpack.c.b16 %v1649, %v1647
  %v2160 = vpack.c.b16 %v1652, %v1650
  %v2161 = vpack.c.b16 %v1653, %v1651
  %v2162 = vpack.c.b16 %v1656, %v1654
  %v2163 = vpack.c.b16 %v1657, %v1655
  %v2164 = vpack.c.b16 %v1660, %v1658
  %v2165 = vpack.c.b16 %v1661, %v1659
  %v2166 = vpack.c.b16 %v1664, %v1662
  %v2167 = vpack.c.b16 %v1665, %v1663
  %v2168 = vpack.c.b16 %v1668, %v1666
  %v2169 = vpack.c.b16 %v1669, %v1667
  %v2170 = vpack.c.b16 %v1672, %v1670
  %v2171 = vpack.c.b16 %v1673, %v1671
  %v2172 = vpack.c.b16 %v1676, %v1674
  %v2173 = vpack.c.b16 %v1677, %v1675
  %v2174 = vpack.c.b16 %v1680, %v1678
  %v2175 = vpack.c.b16 %v1681, %v1679
  %v2176 = vpack.c.b16 %v1684, %v1682
  %v2177 = vpack.c.b16 %v1685, %v1683
  %v2178 = vpack.c.b16 %v1688, %v1686
  %v2179 = vpack.c.b16 %v1689, %v1687
  %v2180 = vpack.c.b16 %v1692, %v1690
  %v2181 = vpack.c.b16 %v1693, %v1691
  %v2182 = vpack.c.b16 %v1696, %v1694
  %v2183 = vpack.c.b16 %v1697, %v1695
  %v2184 = vpack.c.b16 %v1700, %v1698
  %v2185 = vpack.c.b16 %v1701, %v1699
  %v2186 = vpack.c.b16 %v1704, %v1702
  %v2187 = vpack.c.b16 %v1705, %v1703
  %v2188 = vpack.c.b16 %v1708, %v1706
  %v2189 = vpack.c.b16 %v1709, %v1707
  %v2190 = vpack.c.b16 %v1712, %v1710
  %v2191 = vpack.c.b16 %v1713, %v1711
  %v2192 = vpack.c.b16 %v1716, %v1714
  %v2193 = vpack.c.b16 %v1717, %v1715
  %v2194 = vpack.c.b16 %v1720, %v1718
  %v2195 = vpack.c.b16 %v1721, %v1719
  %v2196 = vpack.c.b16 %v1724, %v1722
  %v2197 = vpack.c.b16 %v1725, %v1723
  %v2198 = vpack.c.b16 %v1728, %v1726
  %v2199 = vpack.c.b16 %v1729, %v1727
  %v2200 = vpack.c.b16 %v1732, %v1730
  %v2201 = vpack.c.b16 %v1733, %v1731
  %v2202 = vpack.c.b16 %v1736, %v1734
  %v2203 = vpack.c.b16 %v1737, %v1735
  %v2204 = vpack.c.b16 %v1740, %v1738
  %v2205 = vpack.c.b16 %v1741, %v1739
  %v2206 = vpack.c.b16 %v1744, %v1742
  %v2207 = vpack.c.b16 %v1745, %v1743
  %v2208 = vpack.c.b16 %v1748, %v1746
  %v2209 = vpack.c.b16 %v1749, %v1747
  %v2210 = vpack.c.b16 %v1752, %v1750
  %v2211 = vpack.c.b16 %v1753, %v1751
  %v2212 = vpack.c.b16 %v1756, %v1754
  %v2213 = vpack.c.b16 %v1757, %v1755
  %v2214 = vpack.c.b16 %v1760, %v1758
  %v2215 = vpack.c.b16 %v1761, %v1759
  %v2216 = vpack.c.b16 %v1764, %v1762
  %v2217 = vpack.c.b16 %v1765, %v1763
  %v2218 = vpack.c.b16 %v1768, %v1766
  %v2219 = vpack.c.b16 %v1769, %v1767
  %v2220 = vpack.c.b16 %v1772, %v1770
  %v2221 = vpack.c.b16 %v1773, %v1771
  %v2222 = vpack.c.b16 %v1776, %v1774
  %v2223 = vpack.c.b16 %v1777, %v1775
  %v2224 = vpack.c.b16 %v1780, %v1778
  %v2225 = vpack.c.b16 %v1781, %v1779
  %v2226 = vpack.c.b16 %v1784, %v1782
  %v2227 = vpack.c.b16 %v1785, %v1783
  %v2228 = vpack.c.b16 %v1788, %v1786
  %v2229 = vpack.c.b16 %v1789, %v1787
  %v2230 = vpack.c.b16 %v1792, %v1790
  %v2231 = vpack.c.b16 %v1793, %v1791
  %v2232 = vpack.c.b16 %v1796, %v1794
  %v2233 = vpack.c.b16 %v1797, %v1795
  %v2234 = vpack.c.b16 %v1800, %v1798
  %v2235 = vpack.c.b16 %v1801, %v1799
  %v2236 = vpack.c.b16 %v1804, %v1802
  %v2237 = vpack.c.b16 %v1805, %v1803
  %v2238 = vpack.c.b16 %v1808, %v1806
  %v2239 = vpack.c.b16 %v1809, %v1807
  %v2240 = vpack.c.b16 %v1812, %v1810
  %v2241 = vpack.c.b16 %v1813, %v1811
  %v2242 = vpack.c.b16 %v1816, %v1814
  %v2243 = vpack.c.b16 %v1817, %v1815
  %v2244 = vpack.c.b16 %v1820, %v1818
  %v2245 = vpack.c.b16 %v1821, %v1819
  %v2246 = vpack.c.b16 %v1824, %v1822
  %v2247 = vpack.c.b16 %v1825, %v1823
  %v2248 = vpack.c.b16 %v1828, %v1826
  %v2249 = vpack.c.b16 %v1829, %v1827
  %v2250 = vpack.c.b16 %v1832, %v1830
  %v2251 = vpack.c.b16 %v1833, %v1831
  %v2252 = vpack.c.b16 %v1836, %v1834
  %v2253 = vpack.c.b16 %v1837, %v1835
  %v2254 = vpack.c.b16 %v1840, %v1838
  %v2255 = vpack.c.b16 %v1841, %v1839
  %v2256 = vpack.c.b16 %v1844, %v1842
  %v2257 = vpack.c.b16 %v1845, %v1843
  %v2258 = vpack.c.b16 %v1848, %v1846
  %v2259 = vpack.c.b16 %v1849, %v1847
  %v2260 = vpack.c.b16 %v1852, %v1850
  %v2261 = vpack.c.b16 %v1853, %v1851
  %v2262 = vpack.c.b16 %v1856, %v1854
  %v2263 = vpack.c.b16 %v1857, %v1855
  %v2264 = vpack.c.b16 %v1860, %v1858
  %v2265 = vpack.c.b16 %v1861, %v1859
  %v2266 = vpack.c.b16 %v1864, %v1862
  %v2267 = vpack.c.b16 %v1865, %v1863
  %v2268 = vpack.c.b16 %v1868, %v1866
  %v2269 = vpack.c.b16 %v1869, %v1867
  %2670 = vmatpush.bf16.msra.mxu0 %v1884
  %2671 = vmatpush.bf16.msra.mxu0 %v1882
  %2672 = vmatpush.bf16.msra.mxu0 %v1880
  %2673 = vmatpush.bf16.msra.mxu0 %v1878
  %2674 = vmatpush.bf16.msra.mxu0 %v1876
  %2675 = vmatpush.bf16.msra.mxu0 %v1874
  %2676 = vmatpush.bf16.msra.mxu0 %v1872
  %2677 = vmatpush.bf16.msra.mxu0 %v1870
  %2678 = vmatmul.bf16.gmra.mxu0 %v570
  %v2679 = vpop.f32.mrf.mxu0
  %v2680 = vadd.f32 0.0, %v2679
  %v2681 = vpop.f32.mrf.mxu0
  %v2682 = vadd.f32 0.0, %v2681
  %2683 = vmatmul.bf16.gmra.mxu0 %v595
  %v2684 = vpop.f32.mrf.mxu0
  %v2685 = vadd.f32 0.0, %v2684
  %v2686 = vpop.f32.mrf.mxu0
  %2687 = vdwg.mxu0
  %2688 = vmatpush.bf16.msra.mxu0 %v1900
  %2689 = vmatpush.bf16.msra.mxu0 %v1898
  %2690 = vmatpush.bf16.msra.mxu0 %v1896
  %2691 = vmatpush.bf16.msra.mxu0 %v1894
  %2692 = vmatpush.bf16.msra.mxu0 %v1892
  %2693 = vmatpush.bf16.msra.mxu0 %v1890
  %2694 = vmatpush.bf16.msra.mxu0 %v1888
  %2695 = vmatpush.bf16.msra.mxu0 %v1886
  %2696 = vmatmul.bf16.gmra.mxu0 %v571
  %v2697 = vpop.f32.mrf.mxu0
  %v2698 = vadd.f32 %v2680, %v2697
  %v2699 = vpop.f32.mrf.mxu0
  %v2700 = vadd.f32 %v2682, %v2699
  %2701 = vmatmul.bf16.gmra.mxu0 %v596
  %v2702 = vpop.f32.mrf.mxu0
  %v2703 = vadd.f32 %v2685, %v2702
  %v2704 = vpop.f32.mrf.mxu0
  %2705 = vdwg.mxu0
  %2706 = vmatpush.bf16.msra.mxu0 %v1916
  %2707 = vmatpush.bf16.msra.mxu0 %v1914
  %2708 = vmatpush.bf16.msra.mxu0 %v1912
  %2709 = vmatpush.bf16.msra.mxu0 %v1910
  %2710 = vmatpush.bf16.msra.mxu0 %v1908
  %2711 = vmatpush.bf16.msra.mxu0 %v1906
  %2712 = vmatpush.bf16.msra.mxu0 %v1904
  %2713 = vmatpush.bf16.msra.mxu0 %v1902
  %2714 = vmatmul.bf16.gmra.mxu0 %v572
  %v2715 = vpop.f32.mrf.mxu0
  %v2716 = vadd.f32 %v2698, %v2715
  %v2717 = vpop.f32.mrf.mxu0
  %v2718 = vadd.f32 %v2700, %v2717
  %2719 = vmatmul.bf16.gmra.mxu0 %v597
  %v2720 = vpop.f32.mrf.mxu0
  %v2721 = vadd.f32 %v2703, %v2720
  %v2722 = vpop.f32.mrf.mxu0
  %2723 = vdwg.mxu0
  %2724 = vmatpush.bf16.msra.mxu0 %v1932
  %2725 = vmatpush.bf16.msra.mxu0 %v1930
  %2726 = vmatpush.bf16.msra.mxu0 %v1928
  %2727 = vmatpush.bf16.msra.mxu0 %v1926
  %2728 = vmatpush.bf16.msra.mxu0 %v1924
  %2729 = vmatpush.bf16.msra.mxu0 %v1922
  %2730 = vmatpush.bf16.msra.mxu0 %v1920
  %2731 = vmatpush.bf16.msra.mxu0 %v1918
  %2732 = vmatmul.bf16.gmra.mxu0 %v573
  %v2733 = vpop.f32.mrf.mxu0
  %v2734 = vadd.f32 %v2716, %v2733
  %v2735 = vpop.f32.mrf.mxu0
  %v2736 = vadd.f32 %v2718, %v2735
  %2737 = vmatmul.bf16.gmra.mxu0 %v598
  %v2738 = vpop.f32.mrf.mxu0
  %v2739 = vadd.f32 %v2721, %v2738
  %v2740 = vpop.f32.mrf.mxu0
  %2741 = vdwg.mxu0
  %2742 = vmatpush.bf16.msra.mxu0 %v1948
  %2743 = vmatpush.bf16.msra.mxu0 %v1946
  %2744 = vmatpush.bf16.msra.mxu0 %v1944
  %2745 = vmatpush.bf16.msra.mxu0 %v1942
  %2746 = vmatpush.bf16.msra.mxu0 %v1940
  %2747 = vmatpush.bf16.msra.mxu0 %v1938
  %2748 = vmatpush.bf16.msra.mxu0 %v1936
  %2749 = vmatpush.bf16.msra.mxu0 %v1934
  %2750 = vmatmul.bf16.gmra.mxu0 %v574
  %v2751 = vpop.f32.mrf.mxu0
  %v2752 = vadd.f32 %v2734, %v2751
  %v2753 = vpop.f32.mrf.mxu0
  %v2754 = vadd.f32 %v2736, %v2753
  %2755 = vmatmul.bf16.gmra.mxu0 %v599
  %v2756 = vpop.f32.mrf.mxu0
  %v2757 = vadd.f32 %v2739, %v2756
  %v2758 = vpop.f32.mrf.mxu0
  %2759 = vdwg.mxu0
  %2760 = vmatpush.bf16.msra.mxu0 %v1964
  %2761 = vmatpush.bf16.msra.mxu0 %v1962
  %2762 = vmatpush.bf16.msra.mxu0 %v1960
  %2763 = vmatpush.bf16.msra.mxu0 %v1958
  %2764 = vmatpush.bf16.msra.mxu0 %v1956
  %2765 = vmatpush.bf16.msra.mxu0 %v1954
  %2766 = vmatpush.bf16.msra.mxu0 %v1952
  %2767 = vmatpush.bf16.msra.mxu0 %v1950
  %2768 = vmatmul.bf16.gmra.mxu0 %v575
  %v2769 = vpop.f32.mrf.mxu0
  %v2770 = vadd.f32 %v2752, %v2769
  %v2771 = vpop.f32.mrf.mxu0
  %v2772 = vadd.f32 %v2754, %v2771
  %2773 = vmatmul.bf16.gmra.mxu0 %v600
  %v2774 = vpop.f32.mrf.mxu0
  %v2775 = vadd.f32 %v2757, %v2774
  %v2776 = vpop.f32.mrf.mxu0
  %2777 = vdwg.mxu0
  %2778 = vmatpush.bf16.msra.mxu0 %v1980
  %2779 = vmatpush.bf16.msra.mxu0 %v1978
  %2780 = vmatpush.bf16.msra.mxu0 %v1976
  %2781 = vmatpush.bf16.msra.mxu0 %v1974
  %2782 = vmatpush.bf16.msra.mxu0 %v1972
  %2783 = vmatpush.bf16.msra.mxu0 %v1970
  %2784 = vmatpush.bf16.msra.mxu0 %v1968
  %2785 = vmatpush.bf16.msra.mxu0 %v1966
  %2786 = vmatmul.bf16.gmra.mxu0 %v576
  %v2787 = vpop.f32.mrf.mxu0
  %v2788 = vadd.f32 %v2770, %v2787
  %v2789 = vpop.f32.mrf.mxu0
  %v2790 = vadd.f32 %v2772, %v2789
  %2791 = vmatmul.bf16.gmra.mxu0 %v601
  %v2792 = vpop.f32.mrf.mxu0
  %v2793 = vadd.f32 %v2775, %v2792
  %v2794 = vpop.f32.mrf.mxu0
  %2795 = vdwg.mxu0
  %2796 = vmatpush.bf16.msra.mxu0 %v1996
  %2797 = vmatpush.bf16.msra.mxu0 %v1994
  %2798 = vmatpush.bf16.msra.mxu0 %v1992
  %2799 = vmatpush.bf16.msra.mxu0 %v1990
  %2800 = vmatpush.bf16.msra.mxu0 %v1988
  %2801 = vmatpush.bf16.msra.mxu0 %v1986
  %2802 = vmatpush.bf16.msra.mxu0 %v1984
  %2803 = vmatpush.bf16.msra.mxu0 %v1982
  %2804 = vmatmul.bf16.gmra.mxu0 %v577
  %v2805 = vpop.f32.mrf.mxu0
  %v2806 = vadd.f32 %v2788, %v2805
  %v2807 = vpop.f32.mrf.mxu0
  %v2808 = vadd.f32 %v2790, %v2807
  %2809 = vmatmul.bf16.gmra.mxu0 %v602
  %v2810 = vpop.f32.mrf.mxu0
  %v2811 = vadd.f32 %v2793, %v2810
  %v2812 = vpop.f32.mrf.mxu0
  %2813 = vdwg.mxu0
  %2814 = vmatpush.bf16.msra.mxu0 %v2012
  %2815 = vmatpush.bf16.msra.mxu0 %v2010
  %2816 = vmatpush.bf16.msra.mxu0 %v2008
  %2817 = vmatpush.bf16.msra.mxu0 %v2006
  %2818 = vmatpush.bf16.msra.mxu0 %v2004
  %2819 = vmatpush.bf16.msra.mxu0 %v2002
  %2820 = vmatpush.bf16.msra.mxu0 %v2000
  %2821 = vmatpush.bf16.msra.mxu0 %v1998
  %2822 = vmatmul.bf16.gmra.mxu0 %v578
  %v2823 = vpop.f32.mrf.mxu0
  %v2824 = vadd.f32 %v2806, %v2823
  %v2825 = vpop.f32.mrf.mxu0
  %v2826 = vadd.f32 %v2808, %v2825
  %2827 = vmatmul.bf16.gmra.mxu0 %v603
  %v2828 = vpop.f32.mrf.mxu0
  %v2829 = vadd.f32 %v2811, %v2828
  %v2830 = vpop.f32.mrf.mxu0
  %2831 = vdwg.mxu0
  %2832 = vmatpush.bf16.msra.mxu0 %v2028
  %2833 = vmatpush.bf16.msra.mxu0 %v2026
  %2834 = vmatpush.bf16.msra.mxu0 %v2024
  %2835 = vmatpush.bf16.msra.mxu0 %v2022
  %2836 = vmatpush.bf16.msra.mxu0 %v2020
  %2837 = vmatpush.bf16.msra.mxu0 %v2018
  %2838 = vmatpush.bf16.msra.mxu0 %v2016
  %2839 = vmatpush.bf16.msra.mxu0 %v2014
  %2840 = vmatmul.bf16.gmra.mxu0 %v579
  %v2841 = vpop.f32.mrf.mxu0
  %v2842 = vadd.f32 %v2824, %v2841
  %v2843 = vpop.f32.mrf.mxu0
  %v2844 = vadd.f32 %v2826, %v2843
  %2845 = vmatmul.bf16.gmra.mxu0 %v604
  %v2846 = vpop.f32.mrf.mxu0
  %v2847 = vadd.f32 %v2829, %v2846
  %v2848 = vpop.f32.mrf.mxu0
  %2849 = vdwg.mxu0
  %2850 = vmatpush.bf16.msra.mxu0 %v2044
  %2851 = vmatpush.bf16.msra.mxu0 %v2042
  %2852 = vmatpush.bf16.msra.mxu0 %v2040
  %2853 = vmatpush.bf16.msra.mxu0 %v2038
  %2854 = vmatpush.bf16.msra.mxu0 %v2036
  %2855 = vmatpush.bf16.msra.mxu0 %v2034
  %2856 = vmatpush.bf16.msra.mxu0 %v2032
  %2857 = vmatpush.bf16.msra.mxu0 %v2030
  %2858 = vmatmul.bf16.gmra.mxu0 %v580
  %v2859 = vpop.f32.mrf.mxu0
  %v2860 = vadd.f32 %v2842, %v2859
  %v2861 = vpop.f32.mrf.mxu0
  %v2862 = vadd.f32 %v2844, %v2861
  %2863 = vmatmul.bf16.gmra.mxu0 %v605
  %v2864 = vpop.f32.mrf.mxu0
  %v2865 = vadd.f32 %v2847, %v2864
  %v2866 = vpop.f32.mrf.mxu0
  %2867 = vdwg.mxu0
  %2868 = vmatpush.bf16.msra.mxu0 %v2060
  %2869 = vmatpush.bf16.msra.mxu0 %v2058
  %2870 = vmatpush.bf16.msra.mxu0 %v2056
  %2871 = vmatpush.bf16.msra.mxu0 %v2054
  %2872 = vmatpush.bf16.msra.mxu0 %v2052
  %2873 = vmatpush.bf16.msra.mxu0 %v2050
  %2874 = vmatpush.bf16.msra.mxu0 %v2048
  %2875 = vmatpush.bf16.msra.mxu0 %v2046
  %2876 = vmatmul.bf16.gmra.mxu0 %v581
  %v2877 = vpop.f32.mrf.mxu0
  %v2878 = vadd.f32 %v2860, %v2877
  %v2879 = vpop.f32.mrf.mxu0
  %v2880 = vadd.f32 %v2862, %v2879
  %2881 = vmatmul.bf16.gmra.mxu0 %v606
  %v2882 = vpop.f32.mrf.mxu0
  %v2883 = vadd.f32 %v2865, %v2882
  %v2884 = vpop.f32.mrf.mxu0
  %2885 = vdwg.mxu0
  %2886 = vmatpush.bf16.msra.mxu0 %v2076
  %2887 = vmatpush.bf16.msra.mxu0 %v2074
  %2888 = vmatpush.bf16.msra.mxu0 %v2072
  %2889 = vmatpush.bf16.msra.mxu0 %v2070
  %2890 = vmatpush.bf16.msra.mxu0 %v2068
  %2891 = vmatpush.bf16.msra.mxu0 %v2066
  %2892 = vmatpush.bf16.msra.mxu0 %v2064
  %2893 = vmatpush.bf16.msra.mxu0 %v2062
  %2894 = vmatmul.bf16.gmra.mxu0 %v582
  %v2895 = vpop.f32.mrf.mxu0
  %v2896 = vadd.f32 %v2878, %v2895
  %v2897 = vpop.f32.mrf.mxu0
  %v2898 = vadd.f32 %v2880, %v2897
  %2899 = vmatmul.bf16.gmra.mxu0 %v607
  %v2900 = vpop.f32.mrf.mxu0
  %v2901 = vadd.f32 %v2883, %v2900
  %v2902 = vpop.f32.mrf.mxu0
  %2903 = vdwg.mxu0
  %2904 = vmatpush.bf16.msra.mxu0 %v2092
  %2905 = vmatpush.bf16.msra.mxu0 %v2090
  %2906 = vmatpush.bf16.msra.mxu0 %v2088
  %2907 = vmatpush.bf16.msra.mxu0 %v2086
  %2908 = vmatpush.bf16.msra.mxu0 %v2084
  %2909 = vmatpush.bf16.msra.mxu0 %v2082
  %2910 = vmatpush.bf16.msra.mxu0 %v2080
  %2911 = vmatpush.bf16.msra.mxu0 %v2078
  %2912 = vmatmul.bf16.gmra.mxu0 %v583
  %v2913 = vpop.f32.mrf.mxu0
  %v2914 = vadd.f32 %v2896, %v2913
  %v2915 = vpop.f32.mrf.mxu0
  %v2916 = vadd.f32 %v2898, %v2915
  %2917 = vmatmul.bf16.gmra.mxu0 %v608
  %v2918 = vpop.f32.mrf.mxu0
  %v2919 = vadd.f32 %v2901, %v2918
  %v2920 = vpop.f32.mrf.mxu0
  %2921 = vdwg.mxu0
  %2922 = vmatpush.bf16.msra.mxu0 %v2108
  %2923 = vmatpush.bf16.msra.mxu0 %v2106
  %2924 = vmatpush.bf16.msra.mxu0 %v2104
  %2925 = vmatpush.bf16.msra.mxu0 %v2102
  %2926 = vmatpush.bf16.msra.mxu0 %v2100
  %2927 = vmatpush.bf16.msra.mxu0 %v2098
  %2928 = vmatpush.bf16.msra.mxu0 %v2096
  %2929 = vmatpush.bf16.msra.mxu0 %v2094
  %2930 = vmatmul.bf16.gmra.mxu0 %v584
  %v2931 = vpop.f32.mrf.mxu0
  %v2932 = vadd.f32 %v2914, %v2931
  %v2933 = vpop.f32.mrf.mxu0
  %v2934 = vadd.f32 %v2916, %v2933
  %2935 = vmatmul.bf16.gmra.mxu0 %v609
  %v2936 = vpop.f32.mrf.mxu0
  %v2937 = vadd.f32 %v2919, %v2936
  %v2938 = vpop.f32.mrf.mxu0
  %2939 = vdwg.mxu0
  %2940 = vmatpush.bf16.msra.mxu0 %v2124
  %2941 = vmatpush.bf16.msra.mxu0 %v2122
  %2942 = vmatpush.bf16.msra.mxu0 %v2120
  %2943 = vmatpush.bf16.msra.mxu0 %v2118
  %2944 = vmatpush.bf16.msra.mxu0 %v2116
  %2945 = vmatpush.bf16.msra.mxu0 %v2114
  %2946 = vmatpush.bf16.msra.mxu0 %v2112
  %2947 = vmatpush.bf16.msra.mxu0 %v2110
  %2948 = vmatmul.bf16.gmra.mxu0 %v585
  %v2949 = vpop.f32.mrf.mxu0
  %v2950 = vadd.f32 %v2932, %v2949
  %v2951 = vpop.f32.mrf.mxu0
  %v2952 = vadd.f32 %v2934, %v2951
  %2953 = vmatmul.bf16.gmra.mxu0 %v610
  %v2954 = vpop.f32.mrf.mxu0
  %v2955 = vadd.f32 %v2937, %v2954
  %v2956 = vpop.f32.mrf.mxu0
  %2957 = vdwg.mxu0
  %2958 = vmatpush.bf16.msra.mxu0 %v2140
  %2959 = vmatpush.bf16.msra.mxu0 %v2138
  %2960 = vmatpush.bf16.msra.mxu0 %v2136
  %2961 = vmatpush.bf16.msra.mxu0 %v2134
  %2962 = vmatpush.bf16.msra.mxu0 %v2132
  %2963 = vmatpush.bf16.msra.mxu0 %v2130
  %2964 = vmatpush.bf16.msra.mxu0 %v2128
  %2965 = vmatpush.bf16.msra.mxu0 %v2126
  %2966 = vmatmul.bf16.gmra.mxu0 %v586
  %v2967 = vpop.f32.mrf.mxu0
  %v2968 = vadd.f32 %v2950, %v2967
  %v2969 = vpop.f32.mrf.mxu0
  %v2970 = vadd.f32 %v2952, %v2969
  %2971 = vmatmul.bf16.gmra.mxu0 %v611
  %v2972 = vpop.f32.mrf.mxu0
  %v2973 = vadd.f32 %v2955, %v2972
  %v2974 = vpop.f32.mrf.mxu0
  %2975 = vdwg.mxu0
  %2976 = vmatpush.bf16.msra.mxu0 %v2156
  %2977 = vmatpush.bf16.msra.mxu0 %v2154
  %2978 = vmatpush.bf16.msra.mxu0 %v2152
  %2979 = vmatpush.bf16.msra.mxu0 %v2150
  %2980 = vmatpush.bf16.msra.mxu0 %v2148
  %2981 = vmatpush.bf16.msra.mxu0 %v2146
  %2982 = vmatpush.bf16.msra.mxu0 %v2144
  %2983 = vmatpush.bf16.msra.mxu0 %v2142
  %2984 = vmatmul.bf16.gmra.mxu0 %v587
  %v2985 = vpop.f32.mrf.mxu0
  %v2986 = vadd.f32 %v2968, %v2985
  %v2987 = vpop.f32.mrf.mxu0
  %v2988 = vadd.f32 %v2970, %v2987
  %2989 = vmatmul.bf16.gmra.mxu0 %v612
  %v2990 = vpop.f32.mrf.mxu0
  %v2991 = vadd.f32 %v2973, %v2990
  %v2992 = vpop.f32.mrf.mxu0
  %2993 = vdwg.mxu0
  %2994 = vmatpush.bf16.msra.mxu0 %v2172
  %2995 = vmatpush.bf16.msra.mxu0 %v2170
  %2996 = vmatpush.bf16.msra.mxu0 %v2168
  %2997 = vmatpush.bf16.msra.mxu0 %v2166
  %2998 = vmatpush.bf16.msra.mxu0 %v2164
  %2999 = vmatpush.bf16.msra.mxu0 %v2162
  %3000 = vmatpush.bf16.msra.mxu0 %v2160
  %3001 = vmatpush.bf16.msra.mxu0 %v2158
  %3002 = vmatmul.bf16.gmra.mxu0 %v588
  %v3003 = vpop.f32.mrf.mxu0
  %v3004 = vadd.f32 %v2986, %v3003
  %v3005 = vpop.f32.mrf.mxu0
  %v3006 = vadd.f32 %v2988, %v3005
  %3007 = vmatmul.bf16.gmra.mxu0 %v613
  %v3008 = vpop.f32.mrf.mxu0
  %v3009 = vadd.f32 %v2991, %v3008
  %v3010 = vpop.f32.mrf.mxu0
  %3011 = vdwg.mxu0
  %3012 = vmatpush.bf16.msra.mxu0 %v2188
  %3013 = vmatpush.bf16.msra.mxu0 %v2186
  %3014 = vmatpush.bf16.msra.mxu0 %v2184
  %3015 = vmatpush.bf16.msra.mxu0 %v2182
  %3016 = vmatpush.bf16.msra.mxu0 %v2180
  %3017 = vmatpush.bf16.msra.mxu0 %v2178
  %3018 = vmatpush.bf16.msra.mxu0 %v2176
  %3019 = vmatpush.bf16.msra.mxu0 %v2174
  %3020 = vmatmul.bf16.gmra.mxu0 %v589
  %v3021 = vpop.f32.mrf.mxu0
  %v3022 = vadd.f32 %v3004, %v3021
  %v3023 = vpop.f32.mrf.mxu0
  %v3024 = vadd.f32 %v3006, %v3023
  %3025 = vmatmul.bf16.gmra.mxu0 %v614
  %v3026 = vpop.f32.mrf.mxu0
  %v3027 = vadd.f32 %v3009, %v3026
  %v3028 = vpop.f32.mrf.mxu0
  %3029 = vdwg.mxu0
  %3030 = vmatpush.bf16.msra.mxu0 %v2204
  %3031 = vmatpush.bf16.msra.mxu0 %v2202
  %3032 = vmatpush.bf16.msra.mxu0 %v2200
  %3033 = vmatpush.bf16.msra.mxu0 %v2198
  %3034 = vmatpush.bf16.msra.mxu0 %v2196
  %3035 = vmatpush.bf16.msra.mxu0 %v2194
  %3036 = vmatpush.bf16.msra.mxu0 %v2192
  %3037 = vmatpush.bf16.msra.mxu0 %v2190
  %3038 = vmatmul.bf16.gmra.mxu0 %v590
  %v3039 = vpop.f32.mrf.mxu0
  %v3040 = vadd.f32 %v3022, %v3039
  %v3041 = vpop.f32.mrf.mxu0
  %v3042 = vadd.f32 %v3024, %v3041
  %3043 = vmatmul.bf16.gmra.mxu0 %v615
  %v3044 = vpop.f32.mrf.mxu0
  %v3045 = vadd.f32 %v3027, %v3044
  %v3046 = vpop.f32.mrf.mxu0
  %3047 = vdwg.mxu0
  %3048 = vmatpush.bf16.msra.mxu0 %v2220
  %3049 = vmatpush.bf16.msra.mxu0 %v2218
  %3050 = vmatpush.bf16.msra.mxu0 %v2216
  %3051 = vmatpush.bf16.msra.mxu0 %v2214
  %3052 = vmatpush.bf16.msra.mxu0 %v2212
  %3053 = vmatpush.bf16.msra.mxu0 %v2210
  %3054 = vmatpush.bf16.msra.mxu0 %v2208
  %3055 = vmatpush.bf16.msra.mxu0 %v2206
  %3056 = vmatmul.bf16.gmra.mxu0 %v591
  %v3057 = vpop.f32.mrf.mxu0
  %v3058 = vadd.f32 %v3040, %v3057
  %v3059 = vpop.f32.mrf.mxu0
  %v3060 = vadd.f32 %v3042, %v3059
  %3061 = vmatmul.bf16.gmra.mxu0 %v616
  %v3062 = vpop.f32.mrf.mxu0
  %v3063 = vadd.f32 %v3045, %v3062
  %v3064 = vpop.f32.mrf.mxu0
  %3065 = vdwg.mxu0
  %3066 = vmatpush.bf16.msra.mxu0 %v2236
  %3067 = vmatpush.bf16.msra.mxu0 %v2234
  %3068 = vmatpush.bf16.msra.mxu0 %v2232
  %3069 = vmatpush.bf16.msra.mxu0 %v2230
  %3070 = vmatpush.bf16.msra.mxu0 %v2228
  %3071 = vmatpush.bf16.msra.mxu0 %v2226
  %3072 = vmatpush.bf16.msra.mxu0 %v2224
  %3073 = vmatpush.bf16.msra.mxu0 %v2222
  %3074 = vmatmul.bf16.gmra.mxu0 %v592
  %v3075 = vpop.f32.mrf.mxu0
  %v3076 = vadd.f32 %v3058, %v3075
  %v3077 = vpop.f32.mrf.mxu0
  %v3078 = vadd.f32 %v3060, %v3077
  %3079 = vmatmul.bf16.gmra.mxu0 %v617
  %v3080 = vpop.f32.mrf.mxu0
  %v3081 = vadd.f32 %v3063, %v3080
  %v3082 = vpop.f32.mrf.mxu0
  %3083 = vdwg.mxu0
  %3084 = vmatpush.bf16.msra.mxu0 %v2252
  %3085 = vmatpush.bf16.msra.mxu0 %v2250
  %3086 = vmatpush.bf16.msra.mxu0 %v2248
  %3087 = vmatpush.bf16.msra.mxu0 %v2246
  %3088 = vmatpush.bf16.msra.mxu0 %v2244
  %3089 = vmatpush.bf16.msra.mxu0 %v2242
  %3090 = vmatpush.bf16.msra.mxu0 %v2240
  %3091 = vmatpush.bf16.msra.mxu0 %v2238
  %3092 = vmatmul.bf16.gmra.mxu0 %v593
  %v3093 = vpop.f32.mrf.mxu0
  %v3094 = vadd.f32 %v3076, %v3093
  %v3095 = vpop.f32.mrf.mxu0
  %v3096 = vadd.f32 %v3078, %v3095
  %3097 = vmatmul.bf16.gmra.mxu0 %v618
  %v3098 = vpop.f32.mrf.mxu0
  %v3099 = vadd.f32 %v3081, %v3098
  %v3100 = vpop.f32.mrf.mxu0
  %3101 = vdwg.mxu0
  %3102 = vmatpush.bf16.msra.mxu0 %v2268
  %3103 = vmatpush.bf16.msra.mxu0 %v2266
  %3104 = vmatpush.bf16.msra.mxu0 %v2264
  %3105 = vmatpush.bf16.msra.mxu0 %v2262
  %3106 = vmatpush.bf16.msra.mxu0 %v2260
  %3107 = vmatpush.bf16.msra.mxu0 %v2258
  %3108 = vmatpush.bf16.msra.mxu0 %v2256
  %3109 = vmatpush.bf16.msra.mxu0 %v2254
  %3110 = vmatmul.bf16.gmra.mxu0 %v594
  %v3111 = vpop.f32.mrf.mxu0
  %v3112 = vadd.f32 %v3094, %v3111
  %v3113 = vpop.f32.mrf.mxu0
  %v3114 = vadd.f32 %v3096, %v3113
  %3115 = vmatmul.bf16.gmra.mxu0 %v619
  %v3116 = vpop.f32.mrf.mxu0
  %v3117 = vadd.f32 %v3099, %v3116
  %v3118 = vpop.f32.mrf.mxu0
  %3119 = vdwg.mxu0
  %3120 = vmatpush.bf16.msra.mxu0 %v1885
  %3121 = vmatpush.bf16.msra.mxu0 %v1883
  %3122 = vmatpush.bf16.msra.mxu0 %v1881
  %3123 = vmatpush.bf16.msra.mxu0 %v1879
  %3124 = vmatpush.bf16.msra.mxu0 %v1877
  %3125 = vmatpush.bf16.msra.mxu0 %v1875
  %3126 = vmatpush.bf16.msra.mxu0 %v1873
  %3127 = vmatpush.bf16.msra.mxu0 %v1871
  %3128 = vmatmul.bf16.gmra.mxu0 %v570
  %v3129 = vpop.f32.mrf.mxu0
  %v3130 = vadd.f32 0.0, %v3129
  %v3131 = vpop.f32.mrf.mxu0
  %v3132 = vadd.f32 0.0, %v3131
  %3133 = vmatmul.bf16.gmra.mxu0 %v595
  %v3134 = vpop.f32.mrf.mxu0
  %v3135 = vadd.f32 0.0, %v3134
  %v3136 = vpop.f32.mrf.mxu0
  %3137 = vdwg.mxu0
  %3138 = vmatpush.bf16.msra.mxu0 %v1901
  %3139 = vmatpush.bf16.msra.mxu0 %v1899
  %3140 = vmatpush.bf16.msra.mxu0 %v1897
  %3141 = vmatpush.bf16.msra.mxu0 %v1895
  %3142 = vmatpush.bf16.msra.mxu0 %v1893
  %3143 = vmatpush.bf16.msra.mxu0 %v1891
  %3144 = vmatpush.bf16.msra.mxu0 %v1889
  %3145 = vmatpush.bf16.msra.mxu0 %v1887
  %3146 = vmatmul.bf16.gmra.mxu0 %v571
  %v3147 = vpop.f32.mrf.mxu0
  %v3148 = vadd.f32 %v3130, %v3147
  %v3149 = vpop.f32.mrf.mxu0
  %v3150 = vadd.f32 %v3132, %v3149
  %3151 = vmatmul.bf16.gmra.mxu0 %v596
  %v3152 = vpop.f32.mrf.mxu0
  %v3153 = vadd.f32 %v3135, %v3152
  %v3154 = vpop.f32.mrf.mxu0
  %3155 = vdwg.mxu0
  %3156 = vmatpush.bf16.msra.mxu0 %v1917
  %3157 = vmatpush.bf16.msra.mxu0 %v1915
  %3158 = vmatpush.bf16.msra.mxu0 %v1913
  %3159 = vmatpush.bf16.msra.mxu0 %v1911
  %3160 = vmatpush.bf16.msra.mxu0 %v1909
  %3161 = vmatpush.bf16.msra.mxu0 %v1907
  %3162 = vmatpush.bf16.msra.mxu0 %v1905
  %3163 = vmatpush.bf16.msra.mxu0 %v1903
  %3164 = vmatmul.bf16.gmra.mxu0 %v572
  %v3165 = vpop.f32.mrf.mxu0
  %v3166 = vadd.f32 %v3148, %v3165
  %v3167 = vpop.f32.mrf.mxu0
  %v3168 = vadd.f32 %v3150, %v3167
  %3169 = vmatmul.bf16.gmra.mxu0 %v597
  %v3170 = vpop.f32.mrf.mxu0
  %v3171 = vadd.f32 %v3153, %v3170
  %v3172 = vpop.f32.mrf.mxu0
  %3173 = vdwg.mxu0
  %3174 = vmatpush.bf16.msra.mxu0 %v1933
  %3175 = vmatpush.bf16.msra.mxu0 %v1931
  %3176 = vmatpush.bf16.msra.mxu0 %v1929
  %3177 = vmatpush.bf16.msra.mxu0 %v1927
  %3178 = vmatpush.bf16.msra.mxu0 %v1925
  %3179 = vmatpush.bf16.msra.mxu0 %v1923
  %3180 = vmatpush.bf16.msra.mxu0 %v1921
  %3181 = vmatpush.bf16.msra.mxu0 %v1919
  %3182 = vmatmul.bf16.gmra.mxu0 %v573
  %v3183 = vpop.f32.mrf.mxu0
  %v3184 = vadd.f32 %v3166, %v3183
  %v3185 = vpop.f32.mrf.mxu0
  %v3186 = vadd.f32 %v3168, %v3185
  %3187 = vmatmul.bf16.gmra.mxu0 %v598
  %v3188 = vpop.f32.mrf.mxu0
  %v3189 = vadd.f32 %v3171, %v3188
  %v3190 = vpop.f32.mrf.mxu0
  %3191 = vdwg.mxu0
  %3192 = vmatpush.bf16.msra.mxu0 %v1949
  %3193 = vmatpush.bf16.msra.mxu0 %v1947
  %3194 = vmatpush.bf16.msra.mxu0 %v1945
  %3195 = vmatpush.bf16.msra.mxu0 %v1943
  %3196 = vmatpush.bf16.msra.mxu0 %v1941
  %3197 = vmatpush.bf16.msra.mxu0 %v1939
  %3198 = vmatpush.bf16.msra.mxu0 %v1937
  %3199 = vmatpush.bf16.msra.mxu0 %v1935
  %3200 = vmatmul.bf16.gmra.mxu0 %v574
  %v3201 = vpop.f32.mrf.mxu0
  %v3202 = vadd.f32 %v3184, %v3201
  %v3203 = vpop.f32.mrf.mxu0
  %v3204 = vadd.f32 %v3186, %v3203
  %3205 = vmatmul.bf16.gmra.mxu0 %v599
  %v3206 = vpop.f32.mrf.mxu0
  %v3207 = vadd.f32 %v3189, %v3206
  %v3208 = vpop.f32.mrf.mxu0
  %3209 = vdwg.mxu0
  %3210 = vmatpush.bf16.msra.mxu0 %v1965
  %3211 = vmatpush.bf16.msra.mxu0 %v1963
  %3212 = vmatpush.bf16.msra.mxu0 %v1961
  %3213 = vmatpush.bf16.msra.mxu0 %v1959
  %3214 = vmatpush.bf16.msra.mxu0 %v1957
  %3215 = vmatpush.bf16.msra.mxu0 %v1955
  %3216 = vmatpush.bf16.msra.mxu0 %v1953
  %3217 = vmatpush.bf16.msra.mxu0 %v1951
  %3218 = vmatmul.bf16.gmra.mxu0 %v575
  %v3219 = vpop.f32.mrf.mxu0
  %v3220 = vadd.f32 %v3202, %v3219
  %v3221 = vpop.f32.mrf.mxu0
  %v3222 = vadd.f32 %v3204, %v3221
  %3223 = vmatmul.bf16.gmra.mxu0 %v600
  %v3224 = vpop.f32.mrf.mxu0
  %v3225 = vadd.f32 %v3207, %v3224
  %v3226 = vpop.f32.mrf.mxu0
  %3227 = vdwg.mxu0
  %3228 = vmatpush.bf16.msra.mxu0 %v1981
  %3229 = vmatpush.bf16.msra.mxu0 %v1979
  %3230 = vmatpush.bf16.msra.mxu0 %v1977
  %3231 = vmatpush.bf16.msra.mxu0 %v1975
  %3232 = vmatpush.bf16.msra.mxu0 %v1973
  %3233 = vmatpush.bf16.msra.mxu0 %v1971
  %3234 = vmatpush.bf16.msra.mxu0 %v1969
  %3235 = vmatpush.bf16.msra.mxu0 %v1967
  %3236 = vmatmul.bf16.gmra.mxu0 %v576
  %v3237 = vpop.f32.mrf.mxu0
  %v3238 = vadd.f32 %v3220, %v3237
  %v3239 = vpop.f32.mrf.mxu0
  %v3240 = vadd.f32 %v3222, %v3239
  %3241 = vmatmul.bf16.gmra.mxu0 %v601
  %v3242 = vpop.f32.mrf.mxu0
  %v3243 = vadd.f32 %v3225, %v3242
  %v3244 = vpop.f32.mrf.mxu0
  %3245 = vdwg.mxu0
  %3246 = vmatpush.bf16.msra.mxu0 %v1997
  %3247 = vmatpush.bf16.msra.mxu0 %v1995
  %3248 = vmatpush.bf16.msra.mxu0 %v1993
  %3249 = vmatpush.bf16.msra.mxu0 %v1991
  %3250 = vmatpush.bf16.msra.mxu0 %v1989
  %3251 = vmatpush.bf16.msra.mxu0 %v1987
  %3252 = vmatpush.bf16.msra.mxu0 %v1985
  %3253 = vmatpush.bf16.msra.mxu0 %v1983
  %3254 = vmatmul.bf16.gmra.mxu0 %v577
  %v3255 = vpop.f32.mrf.mxu0
  %v3256 = vadd.f32 %v3238, %v3255
  %v3257 = vpop.f32.mrf.mxu0
  %v3258 = vadd.f32 %v3240, %v3257
  %3259 = vmatmul.bf16.gmra.mxu0 %v602
  %v3260 = vpop.f32.mrf.mxu0
  %v3261 = vadd.f32 %v3243, %v3260
  %v3262 = vpop.f32.mrf.mxu0
  %3263 = vdwg.mxu0
  %3264 = vmatpush.bf16.msra.mxu0 %v2013
  %3265 = vmatpush.bf16.msra.mxu0 %v2011
  %3266 = vmatpush.bf16.msra.mxu0 %v2009
  %3267 = vmatpush.bf16.msra.mxu0 %v2007
  %3268 = vmatpush.bf16.msra.mxu0 %v2005
  %3269 = vmatpush.bf16.msra.mxu0 %v2003
  %3270 = vmatpush.bf16.msra.mxu0 %v2001
  %3271 = vmatpush.bf16.msra.mxu0 %v1999
  %3272 = vmatmul.bf16.gmra.mxu0 %v578
  %v3273 = vpop.f32.mrf.mxu0
  %v3274 = vadd.f32 %v3256, %v3273
  %v3275 = vpop.f32.mrf.mxu0
  %v3276 = vadd.f32 %v3258, %v3275
  %3277 = vmatmul.bf16.gmra.mxu0 %v603
  %v3278 = vpop.f32.mrf.mxu0
  %v3279 = vadd.f32 %v3261, %v3278
  %v3280 = vpop.f32.mrf.mxu0
  %3281 = vdwg.mxu0
  %3282 = vmatpush.bf16.msra.mxu0 %v2029
  %3283 = vmatpush.bf16.msra.mxu0 %v2027
  %3284 = vmatpush.bf16.msra.mxu0 %v2025
  %3285 = vmatpush.bf16.msra.mxu0 %v2023
  %3286 = vmatpush.bf16.msra.mxu0 %v2021
  %3287 = vmatpush.bf16.msra.mxu0 %v2019
  %3288 = vmatpush.bf16.msra.mxu0 %v2017
  %3289 = vmatpush.bf16.msra.mxu0 %v2015
  %3290 = vmatmul.bf16.gmra.mxu0 %v579
  %v3291 = vpop.f32.mrf.mxu0
  %v3292 = vadd.f32 %v3274, %v3291
  %v3293 = vpop.f32.mrf.mxu0
  %v3294 = vadd.f32 %v3276, %v3293
  %3295 = vmatmul.bf16.gmra.mxu0 %v604
  %v3296 = vpop.f32.mrf.mxu0
  %v3297 = vadd.f32 %v3279, %v3296
  %v3298 = vpop.f32.mrf.mxu0
  %3299 = vdwg.mxu0
  %3300 = vmatpush.bf16.msra.mxu0 %v2045
  %3301 = vmatpush.bf16.msra.mxu0 %v2043
  %3302 = vmatpush.bf16.msra.mxu0 %v2041
  %3303 = vmatpush.bf16.msra.mxu0 %v2039
  %3304 = vmatpush.bf16.msra.mxu0 %v2037
  %3305 = vmatpush.bf16.msra.mxu0 %v2035
  %3306 = vmatpush.bf16.msra.mxu0 %v2033
  %3307 = vmatpush.bf16.msra.mxu0 %v2031
  %3308 = vmatmul.bf16.gmra.mxu0 %v580
  %v3309 = vpop.f32.mrf.mxu0
  %v3310 = vadd.f32 %v3292, %v3309
  %v3311 = vpop.f32.mrf.mxu0
  %v3312 = vadd.f32 %v3294, %v3311
  %3313 = vmatmul.bf16.gmra.mxu0 %v605
  %v3314 = vpop.f32.mrf.mxu0
  %v3315 = vadd.f32 %v3297, %v3314
  %v3316 = vpop.f32.mrf.mxu0
  %3317 = vdwg.mxu0
  %3318 = vmatpush.bf16.msra.mxu0 %v2061
  %3319 = vmatpush.bf16.msra.mxu0 %v2059
  %3320 = vmatpush.bf16.msra.mxu0 %v2057
  %3321 = vmatpush.bf16.msra.mxu0 %v2055
  %3322 = vmatpush.bf16.msra.mxu0 %v2053
  %3323 = vmatpush.bf16.msra.mxu0 %v2051
  %3324 = vmatpush.bf16.msra.mxu0 %v2049
  %3325 = vmatpush.bf16.msra.mxu0 %v2047
  %3326 = vmatmul.bf16.gmra.mxu0 %v581
  %v3327 = vpop.f32.mrf.mxu0
  %v3328 = vadd.f32 %v3310, %v3327
  %v3329 = vpop.f32.mrf.mxu0
  %v3330 = vadd.f32 %v3312, %v3329
  %3331 = vmatmul.bf16.gmra.mxu0 %v606
  %v3332 = vpop.f32.mrf.mxu0
  %v3333 = vadd.f32 %v3315, %v3332
  %v3334 = vpop.f32.mrf.mxu0
  %3335 = vdwg.mxu0
  %3336 = vmatpush.bf16.msra.mxu0 %v2077
  %3337 = vmatpush.bf16.msra.mxu0 %v2075
  %3338 = vmatpush.bf16.msra.mxu0 %v2073
  %3339 = vmatpush.bf16.msra.mxu0 %v2071
  %3340 = vmatpush.bf16.msra.mxu0 %v2069
  %3341 = vmatpush.bf16.msra.mxu0 %v2067
  %3342 = vmatpush.bf16.msra.mxu0 %v2065
  %3343 = vmatpush.bf16.msra.mxu0 %v2063
  %3344 = vmatmul.bf16.gmra.mxu0 %v582
  %v3345 = vpop.f32.mrf.mxu0
  %v3346 = vadd.f32 %v3328, %v3345
  %v3347 = vpop.f32.mrf.mxu0
  %v3348 = vadd.f32 %v3330, %v3347
  %3349 = vmatmul.bf16.gmra.mxu0 %v607
  %v3350 = vpop.f32.mrf.mxu0
  %v3351 = vadd.f32 %v3333, %v3350
  %v3352 = vpop.f32.mrf.mxu0
  %3353 = vdwg.mxu0
  %3354 = vmatpush.bf16.msra.mxu0 %v2093
  %3355 = vmatpush.bf16.msra.mxu0 %v2091
  %3356 = vmatpush.bf16.msra.mxu0 %v2089
  %3357 = vmatpush.bf16.msra.mxu0 %v2087
  %3358 = vmatpush.bf16.msra.mxu0 %v2085
  %3359 = vmatpush.bf16.msra.mxu0 %v2083
  %3360 = vmatpush.bf16.msra.mxu0 %v2081
  %3361 = vmatpush.bf16.msra.mxu0 %v2079
  %3362 = vmatmul.bf16.gmra.mxu0 %v583
  %v3363 = vpop.f32.mrf.mxu0
  %v3364 = vadd.f32 %v3346, %v3363
  %v3365 = vpop.f32.mrf.mxu0
  %v3366 = vadd.f32 %v3348, %v3365
  %3367 = vmatmul.bf16.gmra.mxu0 %v608
  %v3368 = vpop.f32.mrf.mxu0
  %v3369 = vadd.f32 %v3351, %v3368
  %v3370 = vpop.f32.mrf.mxu0
  %3371 = vdwg.mxu0
  %3372 = vmatpush.bf16.msra.mxu0 %v2109
  %3373 = vmatpush.bf16.msra.mxu0 %v2107
  %3374 = vmatpush.bf16.msra.mxu0 %v2105
  %3375 = vmatpush.bf16.msra.mxu0 %v2103
  %3376 = vmatpush.bf16.msra.mxu0 %v2101
  %3377 = vmatpush.bf16.msra.mxu0 %v2099
  %3378 = vmatpush.bf16.msra.mxu0 %v2097
  %3379 = vmatpush.bf16.msra.mxu0 %v2095
  %3380 = vmatmul.bf16.gmra.mxu0 %v584
  %v3381 = vpop.f32.mrf.mxu0
  %v3382 = vadd.f32 %v3364, %v3381
  %v3383 = vpop.f32.mrf.mxu0
  %v3384 = vadd.f32 %v3366, %v3383
  %3385 = vmatmul.bf16.gmra.mxu0 %v609
  %v3386 = vpop.f32.mrf.mxu0
  %v3387 = vadd.f32 %v3369, %v3386
  %v3388 = vpop.f32.mrf.mxu0
  %3389 = vdwg.mxu0
  %3390 = vmatpush.bf16.msra.mxu0 %v2125
  %3391 = vmatpush.bf16.msra.mxu0 %v2123
  %3392 = vmatpush.bf16.msra.mxu0 %v2121
  %3393 = vmatpush.bf16.msra.mxu0 %v2119
  %3394 = vmatpush.bf16.msra.mxu0 %v2117
  %3395 = vmatpush.bf16.msra.mxu0 %v2115
  %3396 = vmatpush.bf16.msra.mxu0 %v2113
  %3397 = vmatpush.bf16.msra.mxu0 %v2111
  %3398 = vmatmul.bf16.gmra.mxu0 %v585
  %v3399 = vpop.f32.mrf.mxu0
  %v3400 = vadd.f32 %v3382, %v3399
  %v3401 = vpop.f32.mrf.mxu0
  %v3402 = vadd.f32 %v3384, %v3401
  %3403 = vmatmul.bf16.gmra.mxu0 %v610
  %v3404 = vpop.f32.mrf.mxu0
  %v3405 = vadd.f32 %v3387, %v3404
  %v3406 = vpop.f32.mrf.mxu0
  %3407 = vdwg.mxu0
  %3408 = vmatpush.bf16.msra.mxu0 %v2141
  %3409 = vmatpush.bf16.msra.mxu0 %v2139
  %3410 = vmatpush.bf16.msra.mxu0 %v2137
  %3411 = vmatpush.bf16.msra.mxu0 %v2135
  %3412 = vmatpush.bf16.msra.mxu0 %v2133
  %3413 = vmatpush.bf16.msra.mxu0 %v2131
  %3414 = vmatpush.bf16.msra.mxu0 %v2129
  %3415 = vmatpush.bf16.msra.mxu0 %v2127
  %3416 = vmatmul.bf16.gmra.mxu0 %v586
  %v3417 = vpop.f32.mrf.mxu0
  %v3418 = vadd.f32 %v3400, %v3417
  %v3419 = vpop.f32.mrf.mxu0
  %v3420 = vadd.f32 %v3402, %v3419
  %3421 = vmatmul.bf16.gmra.mxu0 %v611
  %v3422 = vpop.f32.mrf.mxu0
  %v3423 = vadd.f32 %v3405, %v3422
  %v3424 = vpop.f32.mrf.mxu0
  %3425 = vdwg.mxu0
  %3426 = vmatpush.bf16.msra.mxu0 %v2157
  %3427 = vmatpush.bf16.msra.mxu0 %v2155
  %3428 = vmatpush.bf16.msra.mxu0 %v2153
  %3429 = vmatpush.bf16.msra.mxu0 %v2151
  %3430 = vmatpush.bf16.msra.mxu0 %v2149
  %3431 = vmatpush.bf16.msra.mxu0 %v2147
  %3432 = vmatpush.bf16.msra.mxu0 %v2145
  %3433 = vmatpush.bf16.msra.mxu0 %v2143
  %3434 = vmatmul.bf16.gmra.mxu0 %v587
  %v3435 = vpop.f32.mrf.mxu0
  %v3436 = vadd.f32 %v3418, %v3435
  %v3437 = vpop.f32.mrf.mxu0
  %v3438 = vadd.f32 %v3420, %v3437
  %3439 = vmatmul.bf16.gmra.mxu0 %v612
  %v3440 = vpop.f32.mrf.mxu0
  %v3441 = vadd.f32 %v3423, %v3440
  %v3442 = vpop.f32.mrf.mxu0
  %3443 = vdwg.mxu0
  %3444 = vmatpush.bf16.msra.mxu0 %v2173
  %3445 = vmatpush.bf16.msra.mxu0 %v2171
  %3446 = vmatpush.bf16.msra.mxu0 %v2169
  %3447 = vmatpush.bf16.msra.mxu0 %v2167
  %3448 = vmatpush.bf16.msra.mxu0 %v2165
  %3449 = vmatpush.bf16.msra.mxu0 %v2163
  %3450 = vmatpush.bf16.msra.mxu0 %v2161
  %3451 = vmatpush.bf16.msra.mxu0 %v2159
  %3452 = vmatmul.bf16.gmra.mxu0 %v588
  %v3453 = vpop.f32.mrf.mxu0
  %v3454 = vadd.f32 %v3436, %v3453
  %v3455 = vpop.f32.mrf.mxu0
  %v3456 = vadd.f32 %v3438, %v3455
  %3457 = vmatmul.bf16.gmra.mxu0 %v613
  %v3458 = vpop.f32.mrf.mxu0
  %v3459 = vadd.f32 %v3441, %v3458
  %v3460 = vpop.f32.mrf.mxu0
  %3461 = vdwg.mxu0
  %3462 = vmatpush.bf16.msra.mxu0 %v2189
  %3463 = vmatpush.bf16.msra.mxu0 %v2187
  %3464 = vmatpush.bf16.msra.mxu0 %v2185
  %3465 = vmatpush.bf16.msra.mxu0 %v2183
  %3466 = vmatpush.bf16.msra.mxu0 %v2181
  %3467 = vmatpush.bf16.msra.mxu0 %v2179
  %3468 = vmatpush.bf16.msra.mxu0 %v2177
  %3469 = vmatpush.bf16.msra.mxu0 %v2175
  %3470 = vmatmul.bf16.gmra.mxu0 %v589
  %v3471 = vpop.f32.mrf.mxu0
  %v3472 = vadd.f32 %v3454, %v3471
  %v3473 = vpop.f32.mrf.mxu0
  %v3474 = vadd.f32 %v3456, %v3473
  %3475 = vmatmul.bf16.gmra.mxu0 %v614
  %v3476 = vpop.f32.mrf.mxu0
  %v3477 = vadd.f32 %v3459, %v3476
  %v3478 = vpop.f32.mrf.mxu0
  %3479 = vdwg.mxu0
  %3480 = vmatpush.bf16.msra.mxu0 %v2205
  %3481 = vmatpush.bf16.msra.mxu0 %v2203
  %3482 = vmatpush.bf16.msra.mxu0 %v2201
  %3483 = vmatpush.bf16.msra.mxu0 %v2199
  %3484 = vmatpush.bf16.msra.mxu0 %v2197
  %3485 = vmatpush.bf16.msra.mxu0 %v2195
  %3486 = vmatpush.bf16.msra.mxu0 %v2193
  %3487 = vmatpush.bf16.msra.mxu0 %v2191
  %3488 = vmatmul.bf16.gmra.mxu0 %v590
  %v3489 = vpop.f32.mrf.mxu0
  %v3490 = vadd.f32 %v3472, %v3489
  %v3491 = vpop.f32.mrf.mxu0
  %v3492 = vadd.f32 %v3474, %v3491
  %3493 = vmatmul.bf16.gmra.mxu0 %v615
  %v3494 = vpop.f32.mrf.mxu0
  %v3495 = vadd.f32 %v3477, %v3494
  %v3496 = vpop.f32.mrf.mxu0
  %3497 = vdwg.mxu0
  %3498 = vmatpush.bf16.msra.mxu0 %v2221
  %3499 = vmatpush.bf16.msra.mxu0 %v2219
  %3500 = vmatpush.bf16.msra.mxu0 %v2217
  %3501 = vmatpush.bf16.msra.mxu0 %v2215
  %3502 = vmatpush.bf16.msra.mxu0 %v2213
  %3503 = vmatpush.bf16.msra.mxu0 %v2211
  %3504 = vmatpush.bf16.msra.mxu0 %v2209
  %3505 = vmatpush.bf16.msra.mxu0 %v2207
  %3506 = vmatmul.bf16.gmra.mxu0 %v591
  %v3507 = vpop.f32.mrf.mxu0
  %v3508 = vadd.f32 %v3490, %v3507
  %v3509 = vpop.f32.mrf.mxu0
  %v3510 = vadd.f32 %v3492, %v3509
  %3511 = vmatmul.bf16.gmra.mxu0 %v616
  %v3512 = vpop.f32.mrf.mxu0
  %v3513 = vadd.f32 %v3495, %v3512
  %v3514 = vpop.f32.mrf.mxu0
  %3515 = vdwg.mxu0
  %3516 = vmatpush.bf16.msra.mxu0 %v2237
  %3517 = vmatpush.bf16.msra.mxu0 %v2235
  %3518 = vmatpush.bf16.msra.mxu0 %v2233
  %3519 = vmatpush.bf16.msra.mxu0 %v2231
  %3520 = vmatpush.bf16.msra.mxu0 %v2229
  %3521 = vmatpush.bf16.msra.mxu0 %v2227
  %3522 = vmatpush.bf16.msra.mxu0 %v2225
  %3523 = vmatpush.bf16.msra.mxu0 %v2223
  %3524 = vmatmul.bf16.gmra.mxu0 %v592
  %v3525 = vpop.f32.mrf.mxu0
  %v3526 = vadd.f32 %v3508, %v3525
  %v3527 = vpop.f32.mrf.mxu0
  %v3528 = vadd.f32 %v3510, %v3527
  %3529 = vmatmul.bf16.gmra.mxu0 %v617
  %v3530 = vpop.f32.mrf.mxu0
  %v3531 = vadd.f32 %v3513, %v3530
  %v3532 = vpop.f32.mrf.mxu0
  %3533 = vdwg.mxu0
  %3534 = vmatpush.bf16.msra.mxu0 %v2253
  %3535 = vmatpush.bf16.msra.mxu0 %v2251
  %3536 = vmatpush.bf16.msra.mxu0 %v2249
  %3537 = vmatpush.bf16.msra.mxu0 %v2247
  %3538 = vmatpush.bf16.msra.mxu0 %v2245
  %3539 = vmatpush.bf16.msra.mxu0 %v2243
  %3540 = vmatpush.bf16.msra.mxu0 %v2241
  %3541 = vmatpush.bf16.msra.mxu0 %v2239
  %3542 = vmatmul.bf16.gmra.mxu0 %v593
  %v3543 = vpop.f32.mrf.mxu0
  %v3544 = vadd.f32 %v3526, %v3543
  %v3545 = vpop.f32.mrf.mxu0
  %v3546 = vadd.f32 %v3528, %v3545
  %3547 = vmatmul.bf16.gmra.mxu0 %v618
  %v3548 = vpop.f32.mrf.mxu0
  %v3549 = vadd.f32 %v3531, %v3548
  %v3550 = vpop.f32.mrf.mxu0
  %3551 = vdwg.mxu0
  %3552 = vmatpush.bf16.msra.mxu0 %v2269
  %3553 = vmatpush.bf16.msra.mxu0 %v2267
  %3554 = vmatpush.bf16.msra.mxu0 %v2265
  %3555 = vmatpush.bf16.msra.mxu0 %v2263
  %3556 = vmatpush.bf16.msra.mxu0 %v2261
  %3557 = vmatpush.bf16.msra.mxu0 %v2259
  %3558 = vmatpush.bf16.msra.mxu0 %v2257
  %3559 = vmatpush.bf16.msra.mxu0 %v2255
  %3560 = vmatmul.bf16.gmra.mxu0 %v594
  %v3561 = vpop.f32.mrf.mxu0
  %v3562 = vadd.f32 %v3544, %v3561
  %v3563 = vpop.f32.mrf.mxu0
  %v3564 = vadd.f32 %v3546, %v3563
  %3565 = vmatmul.bf16.gmra.mxu0 %v619
  %v3566 = vpop.f32.mrf.mxu0
  %v3567 = vadd.f32 %v3549, %v3566
  %v3568 = vpop.f32.mrf.mxu0
  %3569 = vdwg.mxu0
  %v3570 = vld [vmem:[%s2] sm:$0x3]
  %v3572 = vperm.slane %v3570, 0
  %v3573 = vperm.slane %v3570, 1
  %v3576 = vmul.f32 %v3112, %v3572
  %v3577 = vmul.f32 %v3562, %v3573
  %v3578 = vmul.f32 %v3114, %v3572
  %v3579 = vmul.f32 %v3564, %v3573
  %v3580 = vmul.f32 %v3117, %v3572
  %v3581 = vmul.f32 %v3567, %v3573
  %v3582 = vld [vmem:[%s3] sm:$0x3]
  %v3584 = vperm.slane %v3582, 0
  %v3585 = vperm.slane %v3582, 1
  %v3588 = vadd.f32 %v3576, %v3584
  %v3589 = vadd.f32 %v3577, %v3585
  %v3590 = vadd.f32 %v3578, %v3584
  %v3591 = vadd.f32 %v3579, %v3585
  %v3592 = vadd.f32 %v3580, %v3584
  %v3593 = vadd.f32 %v3581, %v3585
  %v3594 = vmax.f32 %v3588, 0.0
  %v3595 = vmax.f32 %v3589, 0.0
  %v3596 = vmax.f32 %v3590, 0.0
  %v3597 = vmax.f32 %v3591, 0.0
  %v3598 = vmax.f32 %v3592, 0.0
  %v3599 = vmax.f32 %v3593, 0.0
  %v3600 = vpack.c.bf16 %v3595, %v3594
  %v3601 = vpack.c.bf16 %v3597, %v3596
  %v3602 = vpack.c.bf16 %v3599, %v3598
  %3603 = vst [vmem:[%s4] sm:$0xff] %v3600
  %3604 = vst [vmem:[%s4 + $0x8] sm:$0xff] %v3601
  %3605 = vst [vmem:[%s4 + $0x10] sm:$0x11] %v3602
  // Predicated region
  $region18: #{alexnet_forward.4} parent=0 // pred_check
    _
  $region19: #{alexnet_forward.4} parent=0 // pred_check_branch
    %3607 = sbr.rel (0) target = $region21
  $region20: #{alexnet_forward.4} parent=0 // pred_region
    _
  $region21: #{alexnet_forward.4} parent=0 // pred_fallthru
    _
  // Predicated region
  $region22: #{alexnet_forward.4} parent=0 // pred_check
    _
  $region23: #{alexnet_forward.4} parent=0 // pred_check_branch
    %3609 = sbr.rel (0) target = $region25
  $region24: #{alexnet_forward.4} parent=0 // pred_region
    _
  $region25: #{alexnet_forward.4} parent=0 // pred_fallthru
    _

</llo_original>
